<compile_context>
chip_gen: v5e
topology: v5e:2x2
jax: 0.10.0
libtpu: 0.0.40
codegen_flags: <defaults>
</compile_context>

<pallas_src>
import functools

import jax
import jax.numpy as jnp
from jax.experimental import pallas as pl
from jax.experimental.pallas import tpu as pltpu


def _round_up(x, m):
    return ((x + m - 1) // m) * m


def _pad2(a, shape):
    return jnp.pad(a, [(0, s - d) for d, s in zip(a.shape, shape)])


# ----------------------------------------------------------------------------
# Kernel: one grid step == TBLK decode time steps (unrolled, register-carried).
# ----------------------------------------------------------------------------
def _rnn_decoder_kernel(hp, tblk, h0_ref, dtc_ref, wx_ref, wh_ref, bhh_ref,
                        w1_ref, b1_ref, w2_ref, b2_ref,
                        solz_ref, predx_ref, h_sc, p_sc):
    """Shapes (padded):
      h0_ref : (Bp, Hp)          dtc_ref: (TBLK, 3*Hp)  (delta_t*W_dt + b_ih)
      wx_ref : (Op, 3*Hp)        wh_ref : (Hp, 3*Hp)    bhh_ref: (1, 3*Hp)
      w1_ref : (Hp, Up)  b1_ref: (1, Up)  w2_ref: (Up, Op)  b2_ref: (1, Op)
      solz_ref : (TBLK, Bp, Hp)  predx_ref: (TBLK, Bp, Op)
      h_sc, p_sc : VMEM scratch carrying hidden/pred across grid blocks.
    """
    i = pl.program_id(0)

    @pl.when(i == 0)
    def _():
        h_sc[...] = h0_ref[...]
        p_sc[...] = jnp.zeros_like(p_sc)   # step 0 never reads pred; keep finite

    # Register-carried recurrence state for this block.
    h = h_sc[...]
    pred = p_sc[...]

    def sigmoid(x):
        # Exact sigmoid via EUP tanh (no VALU divide on the serial gate chain).
        return 0.5 * (jnp.tanh(0.5 * x) + 1.0)

    # Fully-unrolled local time loop: tblk is a compile-time constant, so the
    # LLO scheduler sees every step and can overlap MXU/EUP work across steps.
    for lt in range(tblk):
        dt_row = dtc_ref[pl.ds(lt, 1), :]                          # (1, 3Hp)
        gi = jnp.dot(pred, wx_ref[...],
                     preferred_element_type=jnp.float32) + dt_row
        gh = jnp.dot(h, wh_ref[...],
                     preferred_element_type=jnp.float32) + bhh_ref[...]
        r = sigmoid(gi[:, :hp] + gh[:, :hp])
        z = sigmoid(gi[:, hp:2 * hp] + gh[:, hp:2 * hp])
        n = jnp.tanh(gi[:, 2 * hp:] + r * gh[:, 2 * hp:])
        h_new = (1.0 - z) * n + z * h
        if lt == 0:
            # Global step i*TBLK: only step 0 of grid block 0 skips the GRU
            # (hidden state stays first_point there).
            h = jnp.where(i > 0, h_new, h)
        else:
            h = h_new

        u = jnp.tanh(jnp.dot(h, w1_ref[...],
                             preferred_element_type=jnp.float32) + b1_ref[...])
        pred = jnp.dot(u, w2_ref[...],
                       preferred_element_type=jnp.float32) + b2_ref[...]

        solz_ref[lt] = h.astype(solz_ref.dtype)
        predx_ref[lt] = pred.astype(predx_ref.dtype)

    # Carry state into the next grid block.
    h_sc[...] = h
    p_sc[...] = pred


# ----------------------------------------------------------------------------
# Parameter init (mimics nn.GRUCell / init_network_weights) & kernel packing.
# ----------------------------------------------------------------------------
def init_rnn_decoder_params(key, latent_dim, output_dim, n_units,
                            dtype=jnp.float32):
    H, O, U = latent_dim, output_dim, n_units
    ks = jax.random.split(key, 6)
    k = 1.0 / (H ** 0.5)                       # GRUCell default bound
    w_ih = jax.random.uniform(ks[0], (3 * H, O + 1), dtype, -k, k)
    w_hh = jax.random.uniform(ks[1], (3 * H, H), dtype, -k, k)
    b_ih = jax.random.uniform(ks[2], (3 * H,), dtype, -k, k)
    b_hh = jax.random.uniform(ks[3], (3 * H,), dtype, -k, k)
    # output_net: utils.init_network_weights ~ N(0, 0.1) weights, zero bias.
    w1 = 0.1 * jax.random.normal(ks[4], (U, H), dtype)
    b1 = jnp.zeros((U,), dtype)
    w2 = 0.1 * jax.random.normal(ks[5], (O, U), dtype)
    b2 = jnp.zeros((O,), dtype)
    return dict(w_ih=w_ih, b_ih=b_ih, w_hh=w_hh, b_hh=b_hh,
                w1=w1, b1=b1, w2=w2, b2=b2)


def _prepare_kernel_params(params, latent_dim, output_dim, n_units):
    """Pre-transpose to (in, out) and zero-pad lane dims to multiples of 128."""
    H, O, U = latent_dim, output_dim, n_units
    Hp, Op, Up = _round_up(H, 128), _round_up(O, 128), _round_up(U, 128)
    f32 = jnp.float32

    w_ih = params["w_ih"].astype(f32)   # (3H, O+1), gate order [r, z, n]
    b_ih = params["b_ih"].astype(f32)
    w_hh = params["w_hh"].astype(f32)   # (3H, H)
    b_hh = params["b_hh"].astype(f32)

    wx_g, wdt_g, bih_g, wh_g, bhh_g = [], [], [], [], []
    for g in range(3):                  # pad each gate chunk separately
        rows = slice(g * H, (g + 1) * H)
        wx_g.append(_pad2(w_ih[rows, :O].T, (Op, Hp)))       # (Op, Hp)
        wdt_g.append(jnp.pad(w_ih[rows, O], (0, Hp - H)))    # (Hp,)
        bih_g.append(jnp.pad(b_ih[rows], (0, Hp - H)))       # (Hp,)
        wh_g.append(_pad2(w_hh[rows, :].T, (Hp, Hp)))        # (Hp, Hp)
        bhh_g.append(jnp.pad(b_hh[rows], (0, Hp - H)))       # (Hp,)

    return dict(
        wx=jnp.concatenate(wx_g, axis=1),                    # (Op, 3Hp)
        w_dt=jnp.concatenate(wdt_g, axis=0),                 # (3Hp,)
        b_ih=jnp.concatenate(bih_g, axis=0),                 # (3Hp,)
        wh=jnp.concatenate(wh_g, axis=1),                    # (Hp, 3Hp)
        b_hh=jnp.concatenate(bhh_g, axis=0)[None, :],        # (1, 3Hp)
        w1=_pad2(params["w1"].astype(f32).T, (Hp, Up)),      # (Hp, Up)
        b1=jnp.pad(params["b1"].astype(f32), (0, Up - U))[None, :],
        w2=_pad2(params["w2"].astype(f32).T, (Up, Op)),      # (Up, Op)
        b2=jnp.pad(params["b2"].astype(f32), (0, Op - O))[None, :],
        dims=(Hp, Op, Up),
    )


# ----------------------------------------------------------------------------
# Pallas-backed forward (equivalent of RNNDecoder.forward).
# ----------------------------------------------------------------------------
def rnn_decoder_forward(first_point, time_steps_to_predict, params, n_units):
    _, B, H = first_point.shape
    O = params["w2"].shape[0]
    T = time_steps_to_predict.shape[0]

    kp = _prepare_kernel_params(params, H, O, n_units)
    Hp, Op, Up = kp["dims"]
    Bp = _round_up(max(B, 1), 8)

    # Time-block size: unroll up to 32 decode steps per grid step (multiple of
    # 8 so the (TBLK, 3Hp) dtc slab satisfies the (8,128) tiling rule).
    TBLK = min(32, _round_up(T, 8))
    Tp = _round_up(T, TBLK)
    n_blocks = Tp // TBLK

    h0 = jnp.zeros((Bp, Hp), jnp.float32)
    h0 = h0.at[:B, :H].set(first_point[0].astype(jnp.float32))

    ts = time_steps_to_predict.astype(jnp.float32)
    delta = jnp.concatenate([jnp.zeros((1,), jnp.float32), ts[1:] - ts[:-1]])
    delta = jnp.pad(delta, (0, Tp - T))
    # Fold delta_t * W_ih[:, -1] + b_ih into one lane-dense per-step row so the
    # kernel never concatenates along lanes and needs no per-step scalar work.
    dtc = delta[:, None] * kp["w_dt"][None, :] + kp["b_ih"][None, :]   # (Tp,3Hp)

    args = (h0, dtc, kp["wx"], kp["wh"], kp["b_hh"],
            kp["w1"], kp["b1"], kp["w2"], kp["b2"])

    def const_spec(a):
        nd = a.ndim
        return pl.BlockSpec(a.shape, lambda i, _nd=nd: (0,) * _nd)

    in_specs = [
        const_spec(h0),                                        # initial hidden
        pl.BlockSpec((TBLK, 3 * Hp), lambda i: (i, 0)),        # dtc slab / block
        const_spec(kp["wx"]), const_spec(kp["wh"]), const_spec(kp["b_hh"]),
        const_spec(kp["w1"]), const_spec(kp["b1"]),
        const_spec(kp["w2"]), const_spec(kp["b2"]),
    ]
    out_specs = (
        pl.BlockSpec((TBLK, Bp, Hp), lambda i: (i, 0, 0)),
        pl.BlockSpec((TBLK, Bp, Op), lambda i: (i, 0, 0)),
    )
    out_shape = (
        jax.ShapeDtypeStruct((Tp, Bp, Hp), jnp.float32),
        jax.ShapeDtypeStruct((Tp, Bp, Op), jnp.float32),
    )

    flops = 2 * Tp * Bp * (Op * 3 * Hp + Hp * 3 * Hp + Hp * Up + Up * Op)
    transcendentals = Tp * Bp * (3 * Hp + Up)
    bytes_accessed = 4 * (sum(int(a.size) for a in args) + Tp * Bp * (Hp + Op))

    kernel = functools.partial(_rnn_decoder_kernel, Hp, TBLK)
    sol_z_p, pred_x_p = pl.pallas_call(
        kernel,
        out_shape=out_shape,
        grid=(n_blocks,),
        in_specs=in_specs,
        out_specs=out_specs,
        scratch_shapes=[pltpu.VMEM((Bp, Hp), jnp.float32),   # hidden carry
                        pltpu.VMEM((Bp, Op), jnp.float32)],  # prev prediction
        compiler_params=pltpu.CompilerParams(
            dimension_semantics=("arbitrary",),              # sequential recurrence
            vmem_limit_bytes=32 * 1024 * 1024),
        cost_estimate=pl.CostEstimate(flops=flops,
                                      transcendentals=transcendentals,
                                      bytes_accessed=bytes_accessed),
    )(*args)

    # TODO(synk): if callers accept time-major output, skip this XLA transpose.
    sol_z = sol_z_p[:T, :B, :H].transpose(1, 0, 2)[None]      # (1, B, T, latent)
    pred_x = pred_x_p[:T, :B, :O].transpose(1, 0, 2)[None]    # (1, B, T, output)
    return sol_z, pred_x


# ----------------------------------------------------------------------------
# Pure-JAX reference (mirrors the PyTorch forward exactly).
# ----------------------------------------------------------------------------
def rnn_decoder_forward_ref(first_point, time_steps_to_predict, params):
    h = first_point[0].astype(jnp.float32)
    B, H = h.shape
    hi = jax.lax.Precision.HIGHEST
    w_ih, b_ih = params["w_ih"], params["b_ih"]
    w_hh, b_hh = params["w_hh"], params["b_hh"]
    w1, b1, w2, b2 = params["w1"], params["b1"], params["w2"], params["b2"]

    def out_net(hh):
        u = jnp.tanh(jnp.dot(hh, w1.T, precision=hi) + b1)
        return jnp.dot(u, w2.T, precision=hi) + b2

    ts = time_steps_to_predict.astype(jnp.float32)
    delta = jnp.concatenate([jnp.zeros((1,), jnp.float32), ts[1:] - ts[:-1]])
    sol, preds = [h], [out_net(h)]
    for t in range(1, ts.shape[0]):
        x = jnp.concatenate(
            [preds[-1], jnp.full((B, 1), delta[t], jnp.float32)], axis=-1)
        gi = jnp.dot(x, w_ih.T, precision=hi) + b_ih
        gh = jnp.dot(h, w_hh.T, precision=hi) + b_hh
        r = jax.nn.sigmoid(gi[:, :H] + gh[:, :H])
        z = jax.nn.sigmoid(gi[:, H:2 * H] + gh[:, H:2 * H])
        n = jnp.tanh(gi[:, 2 * H:] + r * gh[:, 2 * H:])
        h = (1.0 - z) * n + z * h
        sol.append(h)
        preds.append(out_net(h))
    sol_z = jnp.stack(sol, 0).transpose(1, 0, 2)[None]
    pred_x = jnp.stack(preds, 0).transpose(1, 0, 2)[None]
    return sol_z, pred_x


if __name__ == "__main__":
    latent_dim, output_dim, n_units = 32, 8, 32
    batch, T = 2, 8

    key = jax.random.PRNGKey(0)
    k_param, k_h0 = jax.random.split(key)
    params = init_rnn_decoder_params(k_param, latent_dim, output_dim, n_units)

    first_point = jax.random.normal(k_h0, (1, batch, latent_dim), jnp.float32)
    time_steps = jnp.linspace(0.0, 1.0, T, dtype=jnp.float32)

    sol_z, pred_x = rnn_decoder_forward(first_point, time_steps, params,
                                        n_units=n_units)
    sol_z, pred_x = jax.block_until_ready((sol_z, pred_x))

    sol_z_ref, pred_x_ref = rnn_decoder_forward_ref(first_point, time_steps,
                                                    params)
    assert sol_z.shape == (1, batch, T, latent_dim)
    assert pred_x.shape == (1, batch, T, output_dim)
    assert jnp.allclose(sol_z, sol_z_ref, atol=1e-4, rtol=1e-4), "sol_z mismatch"
    assert jnp.allclose(pred_x, pred_x_ref, atol=1e-4, rtol=1e-4), "pred_x mismatch"

    print("KERNEL_OK")
</pallas_src>

<mosaic_0001>
module attributes {stable_mosaic.version = 11 : i64} {
  func.func @_rnn_decoder_kernel(%arg0: i32, %arg1: memref<8x128xf32, #tpu.memory_space<vmem>>, %arg2: memref<8x384xf32, #tpu.memory_space<vmem>>, %arg3: memref<128x384xf32, #tpu.memory_space<vmem>>, %arg4: memref<128x384xf32, #tpu.memory_space<vmem>>, %arg5: memref<1x384xf32, #tpu.memory_space<vmem>>, %arg6: memref<128x128xf32, #tpu.memory_space<vmem>>, %arg7: memref<1x128xf32, #tpu.memory_space<vmem>>, %arg8: memref<128x128xf32, #tpu.memory_space<vmem>>, %arg9: memref<1x128xf32, #tpu.memory_space<vmem>>, %arg10: memref<8x8x128xf32, #tpu.memory_space<vmem>>, %arg11: memref<8x8x128xf32, #tpu.memory_space<vmem>>, %arg12: memref<8x128xf32, #tpu.memory_space<vmem>>, %arg13: memref<8x128xf32, #tpu.memory_space<vmem>>) attributes {dimension_semantics = [#tpu.dimension_semantics<arbitrary>], iteration_bounds = array<i64: 1>, scalar_prefetch = 0 : i64, scratch_operands = 2 : i64, tpu.core_type = #tpu.core_type<tc>, window_params = [{pipeline_mode = #tpu.pipeline_mode<synchronous>, transform_indices = @transform_0, window_bounds = array<i64: 8, 128>}, {transform_indices = @transform_1, window_bounds = array<i64: 8, 384>}, {pipeline_mode = #tpu.pipeline_mode<synchronous>, transform_indices = @transform_2, window_bounds = array<i64: 128, 384>}, {pipeline_mode = #tpu.pipeline_mode<synchronous>, transform_indices = @transform_3, window_bounds = array<i64: 128, 384>}, {pipeline_mode = #tpu.pipeline_mode<synchronous>, transform_indices = @transform_4, window_bounds = array<i64: 1, 384>}, {pipeline_mode = #tpu.pipeline_mode<synchronous>, transform_indices = @transform_5, window_bounds = array<i64: 128, 128>}, {pipeline_mode = #tpu.pipeline_mode<synchronous>, transform_indices = @transform_6, window_bounds = array<i64: 1, 128>}, {pipeline_mode = #tpu.pipeline_mode<synchronous>, transform_indices = @transform_7, window_bounds = array<i64: 128, 128>}, {pipeline_mode = #tpu.pipeline_mode<synchronous>, transform_indices = @transform_8, window_bounds = array<i64: 1, 128>}, {transform_indices = @transform_9, window_bounds = array<i64: 8, 8, 128>}, {transform_indices = @transform_10, window_bounds = array<i64: 8, 8, 128>}]} {
    %c0_i32 = arith.constant 0 : i32
    %0 = arith.cmpi eq, %arg0, %c0_i32 : i32
    %1 = arith.extui %0 : i1 to i32
    %c0_i32_0 = arith.constant 0 : i32
    %2 = arith.cmpi ne, %1, %c0_i32_0 : i32
    scf.if %2 {
      %c0_265 = arith.constant 0 : index
      %c0_266 = arith.constant 0 : index
      %465 = vector.load %arg1[%c0_265, %c0_266] : memref<8x128xf32, #tpu.memory_space<vmem>>, vector<8x128xf32>
      %c0_267 = arith.constant 0 : index
      %c0_268 = arith.constant 0 : index
      %466 = vector.load %arg12[%c0_267, %c0_268] : memref<8x128xf32, #tpu.memory_space<vmem>>, vector<8x128xf32>
      tpu.vector_store %arg12[%c0_267, %c0_268], %465 {strides = array<i32>} : memref<8x128xf32, #tpu.memory_space<vmem>>, vector<8x128xf32>,
      %cst_269 = arith.constant 0.000000e+00 : f32
      %467 = vector.broadcast %cst_269 : f32 to vector<8x128xf32>
      %c0_270 = arith.constant 0 : index
      %c0_271 = arith.constant 0 : index
      %468 = vector.load %arg13[%c0_270, %c0_271] : memref<8x128xf32, #tpu.memory_space<vmem>>, vector<8x128xf32>
      tpu.vector_store %arg13[%c0_270, %c0_271], %467 {strides = array<i32>} : memref<8x128xf32, #tpu.memory_space<vmem>>, vector<8x128xf32>,
    } else {
    }
    %c0 = arith.constant 0 : index
    %c0_1 = arith.constant 0 : index
    %3 = vector.load %arg12[%c0, %c0_1] : memref<8x128xf32, #tpu.memory_space<vmem>>, vector<8x128xf32>
    %c0_2 = arith.constant 0 : index
    %c0_3 = arith.constant 0 : index
    %4 = vector.load %arg13[%c0_2, %c0_3] : memref<8x128xf32, #tpu.memory_space<vmem>>, vector<8x128xf32>
    %c0_4 = arith.constant 0 : index
    %c0_5 = arith.constant 0 : index
    %5 = vector.load %arg2[%c0_4, %c0_5] : memref<8x384xf32, #tpu.memory_space<vmem>>, vector<1x384xf32>
    %c0_6 = arith.constant 0 : index
    %c0_7 = arith.constant 0 : index
    %6 = vector.load %arg3[%c0_6, %c0_7] : memref<128x384xf32, #tpu.memory_space<vmem>>, vector<128x384xf32>
    %cst = arith.constant dense<0.000000e+00> : vector<8x384xf32>
    %7 = tpu.matmul %4, %6, %cst {dimension_numbers = #tpu.dot_dimension_numbers<[1], [0], [0], [1], [0, 0, 1, 1], [], []>} : vector<8x128xf32>, vector<128x384xf32>, vector<8x384xf32> -> vector<8x384xf32>
    %8 = vector.broadcast %5 : vector<1x384xf32> to vector<8x384xf32>
    %9 = arith.addf %7, %8 : vector<8x384xf32>
    %c0_8 = arith.constant 0 : index
    %c0_9 = arith.constant 0 : index
    %10 = vector.load %arg4[%c0_8, %c0_9] : memref<128x384xf32, #tpu.memory_space<vmem>>, vector<128x384xf32>
    %cst_10 = arith.constant dense<0.000000e+00> : vector<8x384xf32>
    %11 = tpu.matmul %3, %10, %cst_10 {dimension_numbers = #tpu.dot_dimension_numbers<[1], [0], [0], [1], [0, 0, 1, 1], [], []>} : vector<8x128xf32>, vector<128x384xf32>, vector<8x384xf32> -> vector<8x384xf32>
    %c0_11 = arith.constant 0 : index
    %c0_12 = arith.constant 0 : index
    %12 = vector.load %arg5[%c0_11, %c0_12] : memref<1x384xf32, #tpu.memory_space<vmem>>, vector<1x384xf32>
    %13 = vector.broadcast %12 : vector<1x384xf32> to vector<8x384xf32>
    %14 = arith.addf %11, %13 : vector<8x384xf32>
    %15 = vector.extract_strided_slice %9 {offsets = [0, 0], sizes = [8, 128], strides = [1, 1]} : vector<8x384xf32> to vector<8x128xf32>
    %16 = vector.extract_strided_slice %14 {offsets = [0, 0], sizes = [8, 128], strides = [1, 1]} : vector<8x384xf32> to vector<8x128xf32>
    %17 = arith.addf %15, %16 : vector<8x128xf32>
    %cst_13 = arith.constant 5.000000e-01 : f32
    %18 = vector.broadcast %cst_13 : f32 to vector<8x128xf32>
    %19 = arith.mulf %18, %17 : vector<8x128xf32>
    %20 = math.tanh %19 : vector<8x128xf32>
    %cst_14 = arith.constant 1.000000e+00 : f32
    %21 = vector.broadcast %cst_14 : f32 to vector<8x128xf32>
    %22 = arith.addf %20, %21 : vector<8x128xf32>
    %cst_15 = arith.constant 5.000000e-01 : f32
    %23 = vector.broadcast %cst_15 : f32 to vector<8x128xf32>
    %24 = arith.mulf %23, %22 : vector<8x128xf32>
    %25 = vector.extract_strided_slice %9 {offsets = [0, 128], sizes = [8, 128], strides = [1, 1]} : vector<8x384xf32> to vector<8x128xf32>
    %26 = vector.extract_strided_slice %14 {offsets = [0, 128], sizes = [8, 128], strides = [1, 1]} : vector<8x384xf32> to vector<8x128xf32>
    %27 = arith.addf %25, %26 : vector<8x128xf32>
    %cst_16 = arith.constant 5.000000e-01 : f32
    %28 = vector.broadcast %cst_16 : f32 to vector<8x128xf32>
    %29 = arith.mulf %28, %27 : vector<8x128xf32>
    %30 = math.tanh %29 : vector<8x128xf32>
    %cst_17 = arith.constant 1.000000e+00 : f32
    %31 = vector.broadcast %cst_17 : f32 to vector<8x128xf32>
    %32 = arith.addf %30, %31 : vector<8x128xf32>
    %cst_18 = arith.constant 5.000000e-01 : f32
    %33 = vector.broadcast %cst_18 : f32 to vector<8x128xf32>
    %34 = arith.mulf %33, %32 : vector<8x128xf32>
    %35 = vector.extract_strided_slice %9 {offsets = [0, 256], sizes = [8, 128], strides = [1, 1]} : vector<8x384xf32> to vector<8x128xf32>
    %36 = vector.extract_strided_slice %14 {offsets = [0, 256], sizes = [8, 128], strides = [1, 1]} : vector<8x384xf32> to vector<8x128xf32>
    %37 = arith.mulf %24, %36 : vector<8x128xf32>
    %38 = arith.addf %35, %37 : vector<8x128xf32>
    %39 = math.tanh %38 : vector<8x128xf32>
    %cst_19 = arith.constant 1.000000e+00 : f32
    %40 = vector.broadcast %cst_19 : f32 to vector<8x128xf32>
    %41 = arith.subf %40, %34 : vector<8x128xf32>
    %42 = arith.mulf %41, %39 : vector<8x128xf32>
    %43 = arith.mulf %34, %3 : vector<8x128xf32>
    %44 = arith.addf %42, %43 : vector<8x128xf32>
    %c0_i32_20 = arith.constant 0 : i32
    %45 = arith.cmpi sgt, %arg0, %c0_i32_20 : i32
    %46 = arith.select %45, %44, %3 : vector<8x128xf32>
    %c0_21 = arith.constant 0 : index
    %c0_22 = arith.constant 0 : index
    %47 = vector.load %arg6[%c0_21, %c0_22] : memref<128x128xf32, #tpu.memory_space<vmem>>, vector<128x128xf32>
    %cst_23 = arith.constant dense<0.000000e+00> : vector<8x128xf32>
    %48 = tpu.matmul %46, %47, %cst_23 {dimension_numbers = #tpu.dot_dimension_numbers<[1], [0], [0], [1], [0, 0, 1, 1], [], []>} : vector<8x128xf32>, vector<128x128xf32>, vector<8x128xf32> -> vector<8x128xf32>
    %c0_24 = arith.constant 0 : index
    %c0_25 = arith.constant 0 : index
    %49 = vector.load %arg7[%c0_24, %c0_25] : memref<1x128xf32, #tpu.memory_space<vmem>>, vector<1x128xf32>
    %50 = vector.broadcast %49 : vector<1x128xf32> to vector<8x128xf32>
    %51 = arith.addf %48, %50 : vector<8x128xf32>
    %52 = math.tanh %51 : vector<8x128xf32>
    %c0_26 = arith.constant 0 : index
    %c0_27 = arith.constant 0 : index
    %53 = vector.load %arg8[%c0_26, %c0_27] : memref<128x128xf32, #tpu.memory_space<vmem>>, vector<128x128xf32>
    %cst_28 = arith.constant dense<0.000000e+00> : vector<8x128xf32>
    %54 = tpu.matmul %52, %53, %cst_28 {dimension_numbers = #tpu.dot_dimension_numbers<[1], [0], [0], [1], [0, 0, 1, 1], [], []>} : vector<8x128xf32>, vector<128x128xf32>, vector<8x128xf32> -> vector<8x128xf32>
    %c0_29 = arith.constant 0 : index
    %c0_30 = arith.constant 0 : index
    %55 = vector.load %arg9[%c0_29, %c0_30] : memref<1x128xf32, #tpu.memory_space<vmem>>, vector<1x128xf32>
    %56 = vector.broadcast %55 : vector<1x128xf32> to vector<8x128xf32>
    %57 = arith.addf %54, %56 : vector<8x128xf32>
    %c0_31 = arith.constant 0 : index
    %c0_32 = arith.constant 0 : index
    %c0_33 = arith.constant 0 : index
    %58 = vector.load %arg10[%c0_31, %c0_32, %c0_33] : memref<8x8x128xf32, #tpu.memory_space<vmem>>, vector<1x8x128xf32>
    %59 = vector.shape_cast %58 : vector<1x8x128xf32> to vector<8x128xf32>
    %60 = vector.shape_cast %46 : vector<8x128xf32> to vector<1x8x128xf32>
    tpu.vector_store %arg10[%c0_31, %c0_32, %c0_33], %60 {strides = array<i32>} : memref<8x8x128xf32, #tpu.memory_space<vmem>>, vector<1x8x128xf32>,
    %c0_34 = arith.constant 0 : index
    %c0_35 = arith.constant 0 : index
    %c0_36 = arith.constant 0 : index
    %61 = vector.load %arg11[%c0_34, %c0_35, %c0_36] : memref<8x8x128xf32, #tpu.memory_space<vmem>>, vector<1x8x128xf32>
    %62 = vector.shape_cast %61 : vector<1x8x128xf32> to vector<8x128xf32>
    %63 = vector.shape_cast %57 : vector<8x128xf32> to vector<1x8x128xf32>
    tpu.vector_store %arg11[%c0_34, %c0_35, %c0_36], %63 {strides = array<i32>} : memref<8x8x128xf32, #tpu.memory_space<vmem>>, vector<1x8x128xf32>,
    %c1 = arith.constant 1 : index
    %c0_37 = arith.constant 0 : index
    %64 = vector.load %arg2[%c1, %c0_37] : memref<8x384xf32, #tpu.memory_space<vmem>>, vector<1x384xf32>
    %c0_38 = arith.constant 0 : index
    %c0_39 = arith.constant 0 : index
    %65 = vector.load %arg3[%c0_38, %c0_39] : memref<128x384xf32, #tpu.memory_space<vmem>>, vector<128x384xf32>
    %cst_40 = arith.constant dense<0.000000e+00> : vector<8x384xf32>
    %66 = tpu.matmul %57, %65, %cst_40 {dimension_numbers = #tpu.dot_dimension_numbers<[1], [0], [0], [1], [0, 0, 1, 1], [], []>} : vector<8x128xf32>, vector<128x384xf32>, vector<8x384xf32> -> vector<8x384xf32>
    %67 = vector.broadcast %64 : vector<1x384xf32> to vector<8x384xf32>
    %68 = arith.addf %66, %67 : vector<8x384xf32>
    %c0_41 = arith.constant 0 : index
    %c0_42 = arith.constant 0 : index
    %69 = vector.load %arg4[%c0_41, %c0_42] : memref<128x384xf32, #tpu.memory_space<vmem>>, vector<128x384xf32>
    %cst_43 = arith.constant dense<0.000000e+00> : vector<8x384xf32>
    %70 = tpu.matmul %46, %69, %cst_43 {dimension_numbers = #tpu.dot_dimension_numbers<[1], [0], [0], [1], [0, 0, 1, 1], [], []>} : vector<8x128xf32>, vector<128x384xf32>, vector<8x384xf32> -> vector<8x384xf32>
    %c0_44 = arith.constant 0 : index
    %c0_45 = arith.constant 0 : index
    %71 = vector.load %arg5[%c0_44, %c0_45] : memref<1x384xf32, #tpu.memory_space<vmem>>, vector<1x384xf32>
    %72 = vector.broadcast %71 : vector<1x384xf32> to vector<8x384xf32>
    %73 = arith.addf %70, %72 : vector<8x384xf32>
    %74 = vector.extract_strided_slice %68 {offsets = [0, 0], sizes = [8, 128], strides = [1, 1]} : vector<8x384xf32> to vector<8x128xf32>
    %75 = vector.extract_strided_slice %73 {offsets = [0, 0], sizes = [8, 128], strides = [1, 1]} : vector<8x384xf32> to vector<8x128xf32>
    %76 = arith.addf %74, %75 : vector<8x128xf32>
    %cst_46 = arith.constant 5.000000e-01 : f32
    %77 = vector.broadcast %cst_46 : f32 to vector<8x128xf32>
    %78 = arith.mulf %77, %76 : vector<8x128xf32>
    %79 = math.tanh %78 : vector<8x128xf32>
    %cst_47 = arith.constant 1.000000e+00 : f32
    %80 = vector.broadcast %cst_47 : f32 to vector<8x128xf32>
    %81 = arith.addf %79, %80 : vector<8x128xf32>
    %cst_48 = arith.constant 5.000000e-01 : f32
    %82 = vector.broadcast %cst_48 : f32 to vector<8x128xf32>
    %83 = arith.mulf %82, %81 : vector<8x128xf32>
    %84 = vector.extract_strided_slice %68 {offsets = [0, 128], sizes = [8, 128], strides = [1, 1]} : vector<8x384xf32> to vector<8x128xf32>
    %85 = vector.extract_strided_slice %73 {offsets = [0, 128], sizes = [8, 128], strides = [1, 1]} : vector<8x384xf32> to vector<8x128xf32>
    %86 = arith.addf %84, %85 : vector<8x128xf32>
    %cst_49 = arith.constant 5.000000e-01 : f32
    %87 = vector.broadcast %cst_49 : f32 to vector<8x128xf32>
    %88 = arith.mulf %87, %86 : vector<8x128xf32>
    %89 = math.tanh %88 : vector<8x128xf32>
    %cst_50 = arith.constant 1.000000e+00 : f32
    %90 = vector.broadcast %cst_50 : f32 to vector<8x128xf32>
    %91 = arith.addf %89, %90 : vector<8x128xf32>
    %cst_51 = arith.constant 5.000000e-01 : f32
    %92 = vector.broadcast %cst_51 : f32 to vector<8x128xf32>
    %93 = arith.mulf %92, %91 : vector<8x128xf32>
    %94 = vector.extract_strided_slice %68 {offsets = [0, 256], sizes = [8, 128], strides = [1, 1]} : vector<8x384xf32> to vector<8x128xf32>
    %95 = vector.extract_strided_slice %73 {offsets = [0, 256], sizes = [8, 128], strides = [1, 1]} : vector<8x384xf32> to vector<8x128xf32>
    %96 = arith.mulf %83, %95 : vector<8x128xf32>
    %97 = arith.addf %94, %96 : vector<8x128xf32>
    %98 = math.tanh %97 : vector<8x128xf32>
    %cst_52 = arith.constant 1.000000e+00 : f32
    %99 = vector.broadcast %cst_52 : f32 to vector<8x128xf32>
    %100 = arith.subf %99, %93 : vector<8x128xf32>
    %101 = arith.mulf %100, %98 : vector<8x128xf32>
    %102 = arith.mulf %93, %46 : vector<8x128xf32>
    %103 = arith.addf %101, %102 : vector<8x128xf32>
    %c0_53 = arith.constant 0 : index
    %c0_54 = arith.constant 0 : index
    %104 = vector.load %arg6[%c0_53, %c0_54] : memref<128x128xf32, #tpu.memory_space<vmem>>, vector<128x128xf32>
    %cst_55 = arith.constant dense<0.000000e+00> : vector<8x128xf32>
    %105 = tpu.matmul %103, %104, %cst_55 {dimension_numbers = #tpu.dot_dimension_numbers<[1], [0], [0], [1], [0, 0, 1, 1], [], []>} : vector<8x128xf32>, vector<128x128xf32>, vector<8x128xf32> -> vector<8x128xf32>
    %c0_56 = arith.constant 0 : index
    %c0_57 = arith.constant 0 : index
    %106 = vector.load %arg7[%c0_56, %c0_57] : memref<1x128xf32, #tpu.memory_space<vmem>>, vector<1x128xf32>
    %107 = vector.broadcast %106 : vector<1x128xf32> to vector<8x128xf32>
    %108 = arith.addf %105, %107 : vector<8x128xf32>
    %109 = math.tanh %108 : vector<8x128xf32>
    %c0_58 = arith.constant 0 : index
    %c0_59 = arith.constant 0 : index
    %110 = vector.load %arg8[%c0_58, %c0_59] : memref<128x128xf32, #tpu.memory_space<vmem>>, vector<128x128xf32>
    %cst_60 = arith.constant dense<0.000000e+00> : vector<8x128xf32>
    %111 = tpu.matmul %109, %110, %cst_60 {dimension_numbers = #tpu.dot_dimension_numbers<[1], [0], [0], [1], [0, 0, 1, 1], [], []>} : vector<8x128xf32>, vector<128x128xf32>, vector<8x128xf32> -> vector<8x128xf32>
    %c0_61 = arith.constant 0 : index
    %c0_62 = arith.constant 0 : index
    %112 = vector.load %arg9[%c0_61, %c0_62] : memref<1x128xf32, #tpu.memory_space<vmem>>, vector<1x128xf32>
    %113 = vector.broadcast %112 : vector<1x128xf32> to vector<8x128xf32>
    %114 = arith.addf %111, %113 : vector<8x128xf32>
    %c1_63 = arith.constant 1 : index
    %c0_64 = arith.constant 0 : index
    %c0_65 = arith.constant 0 : index
    %115 = vector.load %arg10[%c1_63, %c0_64, %c0_65] : memref<8x8x128xf32, #tpu.memory_space<vmem>>, vector<1x8x128xf32>
    %116 = vector.shape_cast %115 : vector<1x8x128xf32> to vector<8x128xf32>
    %117 = vector.shape_cast %103 : vector<8x128xf32> to vector<1x8x128xf32>
    tpu.vector_store %arg10[%c1_63, %c0_64, %c0_65], %117 {strides = array<i32>} : memref<8x8x128xf32, #tpu.memory_space<vmem>>, vector<1x8x128xf32>,
    %c1_66 = arith.constant 1 : index
    %c0_67 = arith.constant 0 : index
    %c0_68 = arith.constant 0 : index
    %118 = vector.load %arg11[%c1_66, %c0_67, %c0_68] : memref<8x8x128xf32, #tpu.memory_space<vmem>>, vector<1x8x128xf32>
    %119 = vector.shape_cast %118 : vector<1x8x128xf32> to vector<8x128xf32>
    %120 = vector.shape_cast %114 : vector<8x128xf32> to vector<1x8x128xf32>
    tpu.vector_store %arg11[%c1_66, %c0_67, %c0_68], %120 {strides = array<i32>} : memref<8x8x128xf32, #tpu.memory_space<vmem>>, vector<1x8x128xf32>,
    %c2 = arith.constant 2 : index
    %c0_69 = arith.constant 0 : index
    %121 = vector.load %arg2[%c2, %c0_69] : memref<8x384xf32, #tpu.memory_space<vmem>>, vector<1x384xf32>
    %c0_70 = arith.constant 0 : index
    %c0_71 = arith.constant 0 : index
    %122 = vector.load %arg3[%c0_70, %c0_71] : memref<128x384xf32, #tpu.memory_space<vmem>>, vector<128x384xf32>
    %cst_72 = arith.constant dense<0.000000e+00> : vector<8x384xf32>
    %123 = tpu.matmul %114, %122, %cst_72 {dimension_numbers = #tpu.dot_dimension_numbers<[1], [0], [0], [1], [0, 0, 1, 1], [], []>} : vector<8x128xf32>, vector<128x384xf32>, vector<8x384xf32> -> vector<8x384xf32>
    %124 = vector.broadcast %121 : vector<1x384xf32> to vector<8x384xf32>
    %125 = arith.addf %123, %124 : vector<8x384xf32>
    %c0_73 = arith.constant 0 : index
    %c0_74 = arith.constant 0 : index
    %126 = vector.load %arg4[%c0_73, %c0_74] : memref<128x384xf32, #tpu.memory_space<vmem>>, vector<128x384xf32>
    %cst_75 = arith.constant dense<0.000000e+00> : vector<8x384xf32>
    %127 = tpu.matmul %103, %126, %cst_75 {dimension_numbers = #tpu.dot_dimension_numbers<[1], [0], [0], [1], [0, 0, 1, 1], [], []>} : vector<8x128xf32>, vector<128x384xf32>, vector<8x384xf32> -> vector<8x384xf32>
    %c0_76 = arith.constant 0 : index
    %c0_77 = arith.constant 0 : index
    %128 = vector.load %arg5[%c0_76, %c0_77] : memref<1x384xf32, #tpu.memory_space<vmem>>, vector<1x384xf32>
    %129 = vector.broadcast %128 : vector<1x384xf32> to vector<8x384xf32>
    %130 = arith.addf %127, %129 : vector<8x384xf32>
    %131 = vector.extract_strided_slice %125 {offsets = [0, 0], sizes = [8, 128], strides = [1, 1]} : vector<8x384xf32> to vector<8x128xf32>
    %132 = vector.extract_strided_slice %130 {offsets = [0, 0], sizes = [8, 128], strides = [1, 1]} : vector<8x384xf32> to vector<8x128xf32>
    %133 = arith.addf %131, %132 : vector<8x128xf32>
    %cst_78 = arith.constant 5.000000e-01 : f32
    %134 = vector.broadcast %cst_78 : f32 to vector<8x128xf32>
    %135 = arith.mulf %134, %133 : vector<8x128xf32>
    %136 = math.tanh %135 : vector<8x128xf32>
    %cst_79 = arith.constant 1.000000e+00 : f32
    %137 = vector.broadcast %cst_79 : f32 to vector<8x128xf32>
    %138 = arith.addf %136, %137 : vector<8x128xf32>
    %cst_80 = arith.constant 5.000000e-01 : f32
    %139 = vector.broadcast %cst_80 : f32 to vector<8x128xf32>
    %140 = arith.mulf %139, %138 : vector<8x128xf32>
    %141 = vector.extract_strided_slice %125 {offsets = [0, 128], sizes = [8, 128], strides = [1, 1]} : vector<8x384xf32> to vector<8x128xf32>
    %142 = vector.extract_strided_slice %130 {offsets = [0, 128], sizes = [8, 128], strides = [1, 1]} : vector<8x384xf32> to vector<8x128xf32>
    %143 = arith.addf %141, %142 : vector<8x128xf32>
    %cst_81 = arith.constant 5.000000e-01 : f32
    %144 = vector.broadcast %cst_81 : f32 to vector<8x128xf32>
    %145 = arith.mulf %144, %143 : vector<8x128xf32>
    %146 = math.tanh %145 : vector<8x128xf32>
    %cst_82 = arith.constant 1.000000e+00 : f32
    %147 = vector.broadcast %cst_82 : f32 to vector<8x128xf32>
    %148 = arith.addf %146, %147 : vector<8x128xf32>
    %cst_83 = arith.constant 5.000000e-01 : f32
    %149 = vector.broadcast %cst_83 : f32 to vector<8x128xf32>
    %150 = arith.mulf %149, %148 : vector<8x128xf32>
    %151 = vector.extract_strided_slice %125 {offsets = [0, 256], sizes = [8, 128], strides = [1, 1]} : vector<8x384xf32> to vector<8x128xf32>
    %152 = vector.extract_strided_slice %130 {offsets = [0, 256], sizes = [8, 128], strides = [1, 1]} : vector<8x384xf32> to vector<8x128xf32>
    %153 = arith.mulf %140, %152 : vector<8x128xf32>
    %154 = arith.addf %151, %153 : vector<8x128xf32>
    %155 = math.tanh %154 : vector<8x128xf32>
    %cst_84 = arith.constant 1.000000e+00 : f32
    %156 = vector.broadcast %cst_84 : f32 to vector<8x128xf32>
    %157 = arith.subf %156, %150 : vector<8x128xf32>
    %158 = arith.mulf %157, %155 : vector<8x128xf32>
    %159 = arith.mulf %150, %103 : vector<8x128xf32>
    %160 = arith.addf %158, %159 : vector<8x128xf32>
    %c0_85 = arith.constant 0 : index
    %c0_86 = arith.constant 0 : index
    %161 = vector.load %arg6[%c0_85, %c0_86] : memref<128x128xf32, #tpu.memory_space<vmem>>, vector<128x128xf32>
    %cst_87 = arith.constant dense<0.000000e+00> : vector<8x128xf32>
    %162 = tpu.matmul %160, %161, %cst_87 {dimension_numbers = #tpu.dot_dimension_numbers<[1], [0], [0], [1], [0, 0, 1, 1], [], []>} : vector<8x128xf32>, vector<128x128xf32>, vector<8x128xf32> -> vector<8x128xf32>
    %c0_88 = arith.constant 0 : index
    %c0_89 = arith.constant 0 : index
    %163 = vector.load %arg7[%c0_88, %c0_89] : memref<1x128xf32, #tpu.memory_space<vmem>>, vector<1x128xf32>
    %164 = vector.broadcast %163 : vector<1x128xf32> to vector<8x128xf32>
    %165 = arith.addf %162, %164 : vector<8x128xf32>
    %166 = math.tanh %165 : vector<8x128xf32>
    %c0_90 = arith.constant 0 : index
    %c0_91 = arith.constant 0 : index
    %167 = vector.load %arg8[%c0_90, %c0_91] : memref<128x128xf32, #tpu.memory_space<vmem>>, vector<128x128xf32>
    %cst_92 = arith.constant dense<0.000000e+00> : vector<8x128xf32>
    %168 = tpu.matmul %166, %167, %cst_92 {dimension_numbers = #tpu.dot_dimension_numbers<[1], [0], [0], [1], [0, 0, 1, 1], [], []>} : vector<8x128xf32>, vector<128x128xf32>, vector<8x128xf32> -> vector<8x128xf32>
    %c0_93 = arith.constant 0 : index
    %c0_94 = arith.constant 0 : index
    %169 = vector.load %arg9[%c0_93, %c0_94] : memref<1x128xf32, #tpu.memory_space<vmem>>, vector<1x128xf32>
    %170 = vector.broadcast %169 : vector<1x128xf32> to vector<8x128xf32>
    %171 = arith.addf %168, %170 : vector<8x128xf32>
    %c2_95 = arith.constant 2 : index
    %c0_96 = arith.constant 0 : index
    %c0_97 = arith.constant 0 : index
    %172 = vector.load %arg10[%c2_95, %c0_96, %c0_97] : memref<8x8x128xf32, #tpu.memory_space<vmem>>, vector<1x8x128xf32>
    %173 = vector.shape_cast %172 : vector<1x8x128xf32> to vector<8x128xf32>
    %174 = vector.shape_cast %160 : vector<8x128xf32> to vector<1x8x128xf32>
    tpu.vector_store %arg10[%c2_95, %c0_96, %c0_97], %174 {strides = array<i32>} : memref<8x8x128xf32, #tpu.memory_space<vmem>>, vector<1x8x128xf32>,
    %c2_98 = arith.constant 2 : index
    %c0_99 = arith.constant 0 : index
    %c0_100 = arith.constant 0 : index
    %175 = vector.load %arg11[%c2_98, %c0_99, %c0_100] : memref<8x8x128xf32, #tpu.memory_space<vmem>>, vector<1x8x128xf32>
    %176 = vector.shape_cast %175 : vector<1x8x128xf32> to vector<8x128xf32>
    %177 = vector.shape_cast %171 : vector<8x128xf32> to vector<1x8x128xf32>
    tpu.vector_store %arg11[%c2_98, %c0_99, %c0_100], %177 {strides = array<i32>} : memref<8x8x128xf32, #tpu.memory_space<vmem>>, vector<1x8x128xf32>,
    %c3 = arith.constant 3 : index
    %c0_101 = arith.constant 0 : index
    %178 = vector.load %arg2[%c3, %c0_101] : memref<8x384xf32, #tpu.memory_space<vmem>>, vector<1x384xf32>
    %c0_102 = arith.constant 0 : index
    %c0_103 = arith.constant 0 : index
    %179 = vector.load %arg3[%c0_102, %c0_103] : memref<128x384xf32, #tpu.memory_space<vmem>>, vector<128x384xf32>
    %cst_104 = arith.constant dense<0.000000e+00> : vector<8x384xf32>
    %180 = tpu.matmul %171, %179, %cst_104 {dimension_numbers = #tpu.dot_dimension_numbers<[1], [0], [0], [1], [0, 0, 1, 1], [], []>} : vector<8x128xf32>, vector<128x384xf32>, vector<8x384xf32> -> vector<8x384xf32>
    %181 = vector.broadcast %178 : vector<1x384xf32> to vector<8x384xf32>
    %182 = arith.addf %180, %181 : vector<8x384xf32>
    %c0_105 = arith.constant 0 : index
    %c0_106 = arith.constant 0 : index
    %183 = vector.load %arg4[%c0_105, %c0_106] : memref<128x384xf32, #tpu.memory_space<vmem>>, vector<128x384xf32>
    %cst_107 = arith.constant dense<0.000000e+00> : vector<8x384xf32>
    %184 = tpu.matmul %160, %183, %cst_107 {dimension_numbers = #tpu.dot_dimension_numbers<[1], [0], [0], [1], [0, 0, 1, 1], [], []>} : vector<8x128xf32>, vector<128x384xf32>, vector<8x384xf32> -> vector<8x384xf32>
    %c0_108 = arith.constant 0 : index
    %c0_109 = arith.constant 0 : index
    %185 = vector.load %arg5[%c0_108, %c0_109] : memref<1x384xf32, #tpu.memory_space<vmem>>, vector<1x384xf32>
    %186 = vector.broadcast %185 : vector<1x384xf32> to vector<8x384xf32>
    %187 = arith.addf %184, %186 : vector<8x384xf32>
    %188 = vector.extract_strided_slice %182 {offsets = [0, 0], sizes = [8, 128], strides = [1, 1]} : vector<8x384xf32> to vector<8x128xf32>
    %189 = vector.extract_strided_slice %187 {offsets = [0, 0], sizes = [8, 128], strides = [1, 1]} : vector<8x384xf32> to vector<8x128xf32>
    %190 = arith.addf %188, %189 : vector<8x128xf32>
    %cst_110 = arith.constant 5.000000e-01 : f32
    %191 = vector.broadcast %cst_110 : f32 to vector<8x128xf32>
    %192 = arith.mulf %191, %190 : vector<8x128xf32>
    %193 = math.tanh %192 : vector<8x128xf32>
    %cst_111 = arith.constant 1.000000e+00 : f32
    %194 = vector.broadcast %cst_111 : f32 to vector<8x128xf32>
    %195 = arith.addf %193, %194 : vector<8x128xf32>
    %cst_112 = arith.constant 5.000000e-01 : f32
    %196 = vector.broadcast %cst_112 : f32 to vector<8x128xf32>
    %197 = arith.mulf %196, %195 : vector<8x128xf32>
    %198 = vector.extract_strided_slice %182 {offsets = [0, 128], sizes = [8, 128], strides = [1, 1]} : vector<8x384xf32> to vector<8x128xf32>
    %199 = vector.extract_strided_slice %187 {offsets = [0, 128], sizes = [8, 128], strides = [1, 1]} : vector<8x384xf32> to vector<8x128xf32>
    %200 = arith.addf %198, %199 : vector<8x128xf32>
    %cst_113 = arith.constant 5.000000e-01 : f32
    %201 = vector.broadcast %cst_113 : f32 to vector<8x128xf32>
    %202 = arith.mulf %201, %200 : vector<8x128xf32>
    %203 = math.tanh %202 : vector<8x128xf32>
    %cst_114 = arith.constant 1.000000e+00 : f32
    %204 = vector.broadcast %cst_114 : f32 to vector<8x128xf32>
    %205 = arith.addf %203, %204 : vector<8x128xf32>
    %cst_115 = arith.constant 5.000000e-01 : f32
    %206 = vector.broadcast %cst_115 : f32 to vector<8x128xf32>
    %207 = arith.mulf %206, %205 : vector<8x128xf32>
    %208 = vector.extract_strided_slice %182 {offsets = [0, 256], sizes = [8, 128], strides = [1, 1]} : vector<8x384xf32> to vector<8x128xf32>
    %209 = vector.extract_strided_slice %187 {offsets = [0, 256], sizes = [8, 128], strides = [1, 1]} : vector<8x384xf32> to vector<8x128xf32>
    %210 = arith.mulf %197, %209 : vector<8x128xf32>
    %211 = arith.addf %208, %210 : vector<8x128xf32>
    %212 = math.tanh %211 : vector<8x128xf32>
    %cst_116 = arith.constant 1.000000e+00 : f32
    %213 = vector.broadcast %cst_116 : f32 to vector<8x128xf32>
    %214 = arith.subf %213, %207 : vector<8x128xf32>
    %215 = arith.mulf %214, %212 : vector<8x128xf32>
    %216 = arith.mulf %207, %160 : vector<8x128xf32>
    %217 = arith.addf %215, %216 : vector<8x128xf32>
    %c0_117 = arith.constant 0 : index
    %c0_118 = arith.constant 0 : index
    %218 = vector.load %arg6[%c0_117, %c0_118] : memref<128x128xf32, #tpu.memory_space<vmem>>, vector<128x128xf32>
    %cst_119 = arith.constant dense<0.000000e+00> : vector<8x128xf32>
    %219 = tpu.matmul %217, %218, %cst_119 {dimension_numbers = #tpu.dot_dimension_numbers<[1], [0], [0], [1], [0, 0, 1, 1], [], []>} : vector<8x128xf32>, vector<128x128xf32>, vector<8x128xf32> -> vector<8x128xf32>
    %c0_120 = arith.constant 0 : index
    %c0_121 = arith.constant 0 : index
    %220 = vector.load %arg7[%c0_120, %c0_121] : memref<1x128xf32, #tpu.memory_space<vmem>>, vector<1x128xf32>
    %221 = vector.broadcast %220 : vector<1x128xf32> to vector<8x128xf32>
    %222 = arith.addf %219, %221 : vector<8x128xf32>
    %223 = math.tanh %222 : vector<8x128xf32>
    %c0_122 = arith.constant 0 : index
    %c0_123 = arith.constant 0 : index
    %224 = vector.load %arg8[%c0_122, %c0_123] : memref<128x128xf32, #tpu.memory_space<vmem>>, vector<128x128xf32>
    %cst_124 = arith.constant dense<0.000000e+00> : vector<8x128xf32>
    %225 = tpu.matmul %223, %224, %cst_124 {dimension_numbers = #tpu.dot_dimension_numbers<[1], [0], [0], [1], [0, 0, 1, 1], [], []>} : vector<8x128xf32>, vector<128x128xf32>, vector<8x128xf32> -> vector<8x128xf32>
    %c0_125 = arith.constant 0 : index
    %c0_126 = arith.constant 0 : index
    %226 = vector.load %arg9[%c0_125, %c0_126] : memref<1x128xf32, #tpu.memory_space<vmem>>, vector<1x128xf32>
    %227 = vector.broadcast %226 : vector<1x128xf32> to vector<8x128xf32>
    %228 = arith.addf %225, %227 : vector<8x128xf32>
    %c3_127 = arith.constant 3 : index
    %c0_128 = arith.constant 0 : index
    %c0_129 = arith.constant 0 : index
    %229 = vector.load %arg10[%c3_127, %c0_128, %c0_129] : memref<8x8x128xf32, #tpu.memory_space<vmem>>, vector<1x8x128xf32>
    %230 = vector.shape_cast %229 : vector<1x8x128xf32> to vector<8x128xf32>
    %231 = vector.shape_cast %217 : vector<8x128xf32> to vector<1x8x128xf32>
    tpu.vector_store %arg10[%c3_127, %c0_128, %c0_129], %231 {strides = array<i32>} : memref<8x8x128xf32, #tpu.memory_space<vmem>>, vector<1x8x128xf32>,
    %c3_130 = arith.constant 3 : index
    %c0_131 = arith.constant 0 : index
    %c0_132 = arith.constant 0 : index
    %232 = vector.load %arg11[%c3_130, %c0_131, %c0_132] : memref<8x8x128xf32, #tpu.memory_space<vmem>>, vector<1x8x128xf32>
    %233 = vector.shape_cast %232 : vector<1x8x128xf32> to vector<8x128xf32>
    %234 = vector.shape_cast %228 : vector<8x128xf32> to vector<1x8x128xf32>
    tpu.vector_store %arg11[%c3_130, %c0_131, %c0_132], %234 {strides = array<i32>} : memref<8x8x128xf32, #tpu.memory_space<vmem>>, vector<1x8x128xf32>,
    %c4 = arith.constant 4 : index
    %c0_133 = arith.constant 0 : index
    %235 = vector.load %arg2[%c4, %c0_133] : memref<8x384xf32, #tpu.memory_space<vmem>>, vector<1x384xf32>
    %c0_134 = arith.constant 0 : index
    %c0_135 = arith.constant 0 : index
    %236 = vector.load %arg3[%c0_134, %c0_135] : memref<128x384xf32, #tpu.memory_space<vmem>>, vector<128x384xf32>
    %cst_136 = arith.constant dense<0.000000e+00> : vector<8x384xf32>
    %237 = tpu.matmul %228, %236, %cst_136 {dimension_numbers = #tpu.dot_dimension_numbers<[1], [0], [0], [1], [0, 0, 1, 1], [], []>} : vector<8x128xf32>, vector<128x384xf32>, vector<8x384xf32> -> vector<8x384xf32>
    %238 = vector.broadcast %235 : vector<1x384xf32> to vector<8x384xf32>
    %239 = arith.addf %237, %238 : vector<8x384xf32>
    %c0_137 = arith.constant 0 : index
    %c0_138 = arith.constant 0 : index
    %240 = vector.load %arg4[%c0_137, %c0_138] : memref<128x384xf32, #tpu.memory_space<vmem>>, vector<128x384xf32>
    %cst_139 = arith.constant dense<0.000000e+00> : vector<8x384xf32>
    %241 = tpu.matmul %217, %240, %cst_139 {dimension_numbers = #tpu.dot_dimension_numbers<[1], [0], [0], [1], [0, 0, 1, 1], [], []>} : vector<8x128xf32>, vector<128x384xf32>, vector<8x384xf32> -> vector<8x384xf32>
    %c0_140 = arith.constant 0 : index
    %c0_141 = arith.constant 0 : index
    %242 = vector.load %arg5[%c0_140, %c0_141] : memref<1x384xf32, #tpu.memory_space<vmem>>, vector<1x384xf32>
    %243 = vector.broadcast %242 : vector<1x384xf32> to vector<8x384xf32>
    %244 = arith.addf %241, %243 : vector<8x384xf32>
    %245 = vector.extract_strided_slice %239 {offsets = [0, 0], sizes = [8, 128], strides = [1, 1]} : vector<8x384xf32> to vector<8x128xf32>
    %246 = vector.extract_strided_slice %244 {offsets = [0, 0], sizes = [8, 128], strides = [1, 1]} : vector<8x384xf32> to vector<8x128xf32>
    %247 = arith.addf %245, %246 : vector<8x128xf32>
    %cst_142 = arith.constant 5.000000e-01 : f32
    %248 = vector.broadcast %cst_142 : f32 to vector<8x128xf32>
    %249 = arith.mulf %248, %247 : vector<8x128xf32>
    %250 = math.tanh %249 : vector<8x128xf32>
    %cst_143 = arith.constant 1.000000e+00 : f32
    %251 = vector.broadcast %cst_143 : f32 to vector<8x128xf32>
    %252 = arith.addf %250, %251 : vector<8x128xf32>
    %cst_144 = arith.constant 5.000000e-01 : f32
    %253 = vector.broadcast %cst_144 : f32 to vector<8x128xf32>
    %254 = arith.mulf %253, %252 : vector<8x128xf32>
    %255 = vector.extract_strided_slice %239 {offsets = [0, 128], sizes = [8, 128], strides = [1, 1]} : vector<8x384xf32> to vector<8x128xf32>
    %256 = vector.extract_strided_slice %244 {offsets = [0, 128], sizes = [8, 128], strides = [1, 1]} : vector<8x384xf32> to vector<8x128xf32>
    %257 = arith.addf %255, %256 : vector<8x128xf32>
    %cst_145 = arith.constant 5.000000e-01 : f32
    %258 = vector.broadcast %cst_145 : f32 to vector<8x128xf32>
    %259 = arith.mulf %258, %257 : vector<8x128xf32>
    %260 = math.tanh %259 : vector<8x128xf32>
    %cst_146 = arith.constant 1.000000e+00 : f32
    %261 = vector.broadcast %cst_146 : f32 to vector<8x128xf32>
    %262 = arith.addf %260, %261 : vector<8x128xf32>
    %cst_147 = arith.constant 5.000000e-01 : f32
    %263 = vector.broadcast %cst_147 : f32 to vector<8x128xf32>
    %264 = arith.mulf %263, %262 : vector<8x128xf32>
    %265 = vector.extract_strided_slice %239 {offsets = [0, 256], sizes = [8, 128], strides = [1, 1]} : vector<8x384xf32> to vector<8x128xf32>
    %266 = vector.extract_strided_slice %244 {offsets = [0, 256], sizes = [8, 128], strides = [1, 1]} : vector<8x384xf32> to vector<8x128xf32>
    %267 = arith.mulf %254, %266 : vector<8x128xf32>
    %268 = arith.addf %265, %267 : vector<8x128xf32>
    %269 = math.tanh %268 : vector<8x128xf32>
    %cst_148 = arith.constant 1.000000e+00 : f32
    %270 = vector.broadcast %cst_148 : f32 to vector<8x128xf32>
    %271 = arith.subf %270, %264 : vector<8x128xf32>
    %272 = arith.mulf %271, %269 : vector<8x128xf32>
    %273 = arith.mulf %264, %217 : vector<8x128xf32>
    %274 = arith.addf %272, %273 : vector<8x128xf32>
    %c0_149 = arith.constant 0 : index
    %c0_150 = arith.constant 0 : index
    %275 = vector.load %arg6[%c0_149, %c0_150] : memref<128x128xf32, #tpu.memory_space<vmem>>, vector<128x128xf32>
    %cst_151 = arith.constant dense<0.000000e+00> : vector<8x128xf32>
    %276 = tpu.matmul %274, %275, %cst_151 {dimension_numbers = #tpu.dot_dimension_numbers<[1], [0], [0], [1], [0, 0, 1, 1], [], []>} : vector<8x128xf32>, vector<128x128xf32>, vector<8x128xf32> -> vector<8x128xf32>
    %c0_152 = arith.constant 0 : index
    %c0_153 = arith.constant 0 : index
    %277 = vector.load %arg7[%c0_152, %c0_153] : memref<1x128xf32, #tpu.memory_space<vmem>>, vector<1x128xf32>
    %278 = vector.broadcast %277 : vector<1x128xf32> to vector<8x128xf32>
    %279 = arith.addf %276, %278 : vector<8x128xf32>
    %280 = math.tanh %279 : vector<8x128xf32>
    %c0_154 = arith.constant 0 : index
    %c0_155 = arith.constant 0 : index
    %281 = vector.load %arg8[%c0_154, %c0_155] : memref<128x128xf32, #tpu.memory_space<vmem>>, vector<128x128xf32>
    %cst_156 = arith.constant dense<0.000000e+00> : vector<8x128xf32>
    %282 = tpu.matmul %280, %281, %cst_156 {dimension_numbers = #tpu.dot_dimension_numbers<[1], [0], [0], [1], [0, 0, 1, 1], [], []>} : vector<8x128xf32>, vector<128x128xf32>, vector<8x128xf32> -> vector<8x128xf32>
    %c0_157 = arith.constant 0 : index
    %c0_158 = arith.constant 0 : index
    %283 = vector.load %arg9[%c0_157, %c0_158] : memref<1x128xf32, #tpu.memory_space<vmem>>, vector<1x128xf32>
    %284 = vector.broadcast %283 : vector<1x128xf32> to vector<8x128xf32>
    %285 = arith.addf %282, %284 : vector<8x128xf32>
    %c4_159 = arith.constant 4 : index
    %c0_160 = arith.constant 0 : index
    %c0_161 = arith.constant 0 : index
    %286 = vector.load %arg10[%c4_159, %c0_160, %c0_161] : memref<8x8x128xf32, #tpu.memory_space<vmem>>, vector<1x8x128xf32>
    %287 = vector.shape_cast %286 : vector<1x8x128xf32> to vector<8x128xf32>
    %288 = vector.shape_cast %274 : vector<8x128xf32> to vector<1x8x128xf32>
    tpu.vector_store %arg10[%c4_159, %c0_160, %c0_161], %288 {strides = array<i32>} : memref<8x8x128xf32, #tpu.memory_space<vmem>>, vector<1x8x128xf32>,
    %c4_162 = arith.constant 4 : index
    %c0_163 = arith.constant 0 : index
    %c0_164 = arith.constant 0 : index
    %289 = vector.load %arg11[%c4_162, %c0_163, %c0_164] : memref<8x8x128xf32, #tpu.memory_space<vmem>>, vector<1x8x128xf32>
    %290 = vector.shape_cast %289 : vector<1x8x128xf32> to vector<8x128xf32>
    %291 = vector.shape_cast %285 : vector<8x128xf32> to vector<1x8x128xf32>
    tpu.vector_store %arg11[%c4_162, %c0_163, %c0_164], %291 {strides = array<i32>} : memref<8x8x128xf32, #tpu.memory_space<vmem>>, vector<1x8x128xf32>,
    %c5 = arith.constant 5 : index
    %c0_165 = arith.constant 0 : index
    %292 = vector.load %arg2[%c5, %c0_165] : memref<8x384xf32, #tpu.memory_space<vmem>>, vector<1x384xf32>
    %c0_166 = arith.constant 0 : index
    %c0_167 = arith.constant 0 : index
    %293 = vector.load %arg3[%c0_166, %c0_167] : memref<128x384xf32, #tpu.memory_space<vmem>>, vector<128x384xf32>
    %cst_168 = arith.constant dense<0.000000e+00> : vector<8x384xf32>
    %294 = tpu.matmul %285, %293, %cst_168 {dimension_numbers = #tpu.dot_dimension_numbers<[1], [0], [0], [1], [0, 0, 1, 1], [], []>} : vector<8x128xf32>, vector<128x384xf32>, vector<8x384xf32> -> vector<8x384xf32>
    %295 = vector.broadcast %292 : vector<1x384xf32> to vector<8x384xf32>
    %296 = arith.addf %294, %295 : vector<8x384xf32>
    %c0_169 = arith.constant 0 : index
    %c0_170 = arith.constant 0 : index
    %297 = vector.load %arg4[%c0_169, %c0_170] : memref<128x384xf32, #tpu.memory_space<vmem>>, vector<128x384xf32>
    %cst_171 = arith.constant dense<0.000000e+00> : vector<8x384xf32>
    %298 = tpu.matmul %274, %297, %cst_171 {dimension_numbers = #tpu.dot_dimension_numbers<[1], [0], [0], [1], [0, 0, 1, 1], [], []>} : vector<8x128xf32>, vector<128x384xf32>, vector<8x384xf32> -> vector<8x384xf32>
    %c0_172 = arith.constant 0 : index
    %c0_173 = arith.constant 0 : index
    %299 = vector.load %arg5[%c0_172, %c0_173] : memref<1x384xf32, #tpu.memory_space<vmem>>, vector<1x384xf32>
    %300 = vector.broadcast %299 : vector<1x384xf32> to vector<8x384xf32>
    %301 = arith.addf %298, %300 : vector<8x384xf32>
    %302 = vector.extract_strided_slice %296 {offsets = [0, 0], sizes = [8, 128], strides = [1, 1]} : vector<8x384xf32> to vector<8x128xf32>
    %303 = vector.extract_strided_slice %301 {offsets = [0, 0], sizes = [8, 128], strides = [1, 1]} : vector<8x384xf32> to vector<8x128xf32>
    %304 = arith.addf %302, %303 : vector<8x128xf32>
    %cst_174 = arith.constant 5.000000e-01 : f32
    %305 = vector.broadcast %cst_174 : f32 to vector<8x128xf32>
    %306 = arith.mulf %305, %304 : vector<8x128xf32>
    %307 = math.tanh %306 : vector<8x128xf32>
    %cst_175 = arith.constant 1.000000e+00 : f32
    %308 = vector.broadcast %cst_175 : f32 to vector<8x128xf32>
    %309 = arith.addf %307, %308 : vector<8x128xf32>
    %cst_176 = arith.constant 5.000000e-01 : f32
    %310 = vector.broadcast %cst_176 : f32 to vector<8x128xf32>
    %311 = arith.mulf %310, %309 : vector<8x128xf32>
    %312 = vector.extract_strided_slice %296 {offsets = [0, 128], sizes = [8, 128], strides = [1, 1]} : vector<8x384xf32> to vector<8x128xf32>
    %313 = vector.extract_strided_slice %301 {offsets = [0, 128], sizes = [8, 128], strides = [1, 1]} : vector<8x384xf32> to vector<8x128xf32>
    %314 = arith.addf %312, %313 : vector<8x128xf32>
    %cst_177 = arith.constant 5.000000e-01 : f32
    %315 = vector.broadcast %cst_177 : f32 to vector<8x128xf32>
    %316 = arith.mulf %315, %314 : vector<8x128xf32>
    %317 = math.tanh %316 : vector<8x128xf32>
    %cst_178 = arith.constant 1.000000e+00 : f32
    %318 = vector.broadcast %cst_178 : f32 to vector<8x128xf32>
    %319 = arith.addf %317, %318 : vector<8x128xf32>
    %cst_179 = arith.constant 5.000000e-01 : f32
    %320 = vector.broadcast %cst_179 : f32 to vector<8x128xf32>
    %321 = arith.mulf %320, %319 : vector<8x128xf32>
    %322 = vector.extract_strided_slice %296 {offsets = [0, 256], sizes = [8, 128], strides = [1, 1]} : vector<8x384xf32> to vector<8x128xf32>
    %323 = vector.extract_strided_slice %301 {offsets = [0, 256], sizes = [8, 128], strides = [1, 1]} : vector<8x384xf32> to vector<8x128xf32>
    %324 = arith.mulf %311, %323 : vector<8x128xf32>
    %325 = arith.addf %322, %324 : vector<8x128xf32>
    %326 = math.tanh %325 : vector<8x128xf32>
    %cst_180 = arith.constant 1.000000e+00 : f32
    %327 = vector.broadcast %cst_180 : f32 to vector<8x128xf32>
    %328 = arith.subf %327, %321 : vector<8x128xf32>
    %329 = arith.mulf %328, %326 : vector<8x128xf32>
    %330 = arith.mulf %321, %274 : vector<8x128xf32>
    %331 = arith.addf %329, %330 : vector<8x128xf32>
    %c0_181 = arith.constant 0 : index
    %c0_182 = arith.constant 0 : index
    %332 = vector.load %arg6[%c0_181, %c0_182] : memref<128x128xf32, #tpu.memory_space<vmem>>, vector<128x128xf32>
    %cst_183 = arith.constant dense<0.000000e+00> : vector<8x128xf32>
    %333 = tpu.matmul %331, %332, %cst_183 {dimension_numbers = #tpu.dot_dimension_numbers<[1], [0], [0], [1], [0, 0, 1, 1], [], []>} : vector<8x128xf32>, vector<128x128xf32>, vector<8x128xf32> -> vector<8x128xf32>
    %c0_184 = arith.constant 0 : index
    %c0_185 = arith.constant 0 : index
    %334 = vector.load %arg7[%c0_184, %c0_185] : memref<1x128xf32, #tpu.memory_space<vmem>>, vector<1x128xf32>
    %335 = vector.broadcast %334 : vector<1x128xf32> to vector<8x128xf32>
    %336 = arith.addf %333, %335 : vector<8x128xf32>
    %337 = math.tanh %336 : vector<8x128xf32>
    %c0_186 = arith.constant 0 : index
    %c0_187 = arith.constant 0 : index
    %338 = vector.load %arg8[%c0_186, %c0_187] : memref<128x128xf32, #tpu.memory_space<vmem>>, vector<128x128xf32>
    %cst_188 = arith.constant dense<0.000000e+00> : vector<8x128xf32>
    %339 = tpu.matmul %337, %338, %cst_188 {dimension_numbers = #tpu.dot_dimension_numbers<[1], [0], [0], [1], [0, 0, 1, 1], [], []>} : vector<8x128xf32>, vector<128x128xf32>, vector<8x128xf32> -> vector<8x128xf32>
    %c0_189 = arith.constant 0 : index
    %c0_190 = arith.constant 0 : index
    %340 = vector.load %arg9[%c0_189, %c0_190] : memref<1x128xf32, #tpu.memory_space<vmem>>, vector<1x128xf32>
    %341 = vector.broadcast %340 : vector<1x128xf32> to vector<8x128xf32>
    %342 = arith.addf %339, %341 : vector<8x128xf32>
    %c5_191 = arith.constant 5 : index
    %c0_192 = arith.constant 0 : index
    %c0_193 = arith.constant 0 : index
    %343 = vector.load %arg10[%c5_191, %c0_192, %c0_193] : memref<8x8x128xf32, #tpu.memory_space<vmem>>, vector<1x8x128xf32>
    %344 = vector.shape_cast %343 : vector<1x8x128xf32> to vector<8x128xf32>
    %345 = vector.shape_cast %331 : vector<8x128xf32> to vector<1x8x128xf32>
    tpu.vector_store %arg10[%c5_191, %c0_192, %c0_193], %345 {strides = array<i32>} : memref<8x8x128xf32, #tpu.memory_space<vmem>>, vector<1x8x128xf32>,
    %c5_194 = arith.constant 5 : index
    %c0_195 = arith.constant 0 : index
    %c0_196 = arith.constant 0 : index
    %346 = vector.load %arg11[%c5_194, %c0_195, %c0_196] : memref<8x8x128xf32, #tpu.memory_space<vmem>>, vector<1x8x128xf32>
    %347 = vector.shape_cast %346 : vector<1x8x128xf32> to vector<8x128xf32>
    %348 = vector.shape_cast %342 : vector<8x128xf32> to vector<1x8x128xf32>
    tpu.vector_store %arg11[%c5_194, %c0_195, %c0_196], %348 {strides = array<i32>} : memref<8x8x128xf32, #tpu.memory_space<vmem>>, vector<1x8x128xf32>,
    %c6 = arith.constant 6 : index
    %c0_197 = arith.constant 0 : index
    %349 = vector.load %arg2[%c6, %c0_197] : memref<8x384xf32, #tpu.memory_space<vmem>>, vector<1x384xf32>
    %c0_198 = arith.constant 0 : index
    %c0_199 = arith.constant 0 : index
    %350 = vector.load %arg3[%c0_198, %c0_199] : memref<128x384xf32, #tpu.memory_space<vmem>>, vector<128x384xf32>
    %cst_200 = arith.constant dense<0.000000e+00> : vector<8x384xf32>
    %351 = tpu.matmul %342, %350, %cst_200 {dimension_numbers = #tpu.dot_dimension_numbers<[1], [0], [0], [1], [0, 0, 1, 1], [], []>} : vector<8x128xf32>, vector<128x384xf32>, vector<8x384xf32> -> vector<8x384xf32>
    %352 = vector.broadcast %349 : vector<1x384xf32> to vector<8x384xf32>
    %353 = arith.addf %351, %352 : vector<8x384xf32>
    %c0_201 = arith.constant 0 : index
    %c0_202 = arith.constant 0 : index
    %354 = vector.load %arg4[%c0_201, %c0_202] : memref<128x384xf32, #tpu.memory_space<vmem>>, vector<128x384xf32>
    %cst_203 = arith.constant dense<0.000000e+00> : vector<8x384xf32>
    %355 = tpu.matmul %331, %354, %cst_203 {dimension_numbers = #tpu.dot_dimension_numbers<[1], [0], [0], [1], [0, 0, 1, 1], [], []>} : vector<8x128xf32>, vector<128x384xf32>, vector<8x384xf32> -> vector<8x384xf32>
    %c0_204 = arith.constant 0 : index
    %c0_205 = arith.constant 0 : index
    %356 = vector.load %arg5[%c0_204, %c0_205] : memref<1x384xf32, #tpu.memory_space<vmem>>, vector<1x384xf32>
    %357 = vector.broadcast %356 : vector<1x384xf32> to vector<8x384xf32>
    %358 = arith.addf %355, %357 : vector<8x384xf32>
    %359 = vector.extract_strided_slice %353 {offsets = [0, 0], sizes = [8, 128], strides = [1, 1]} : vector<8x384xf32> to vector<8x128xf32>
    %360 = vector.extract_strided_slice %358 {offsets = [0, 0], sizes = [8, 128], strides = [1, 1]} : vector<8x384xf32> to vector<8x128xf32>
    %361 = arith.addf %359, %360 : vector<8x128xf32>
    %cst_206 = arith.constant 5.000000e-01 : f32
    %362 = vector.broadcast %cst_206 : f32 to vector<8x128xf32>
    %363 = arith.mulf %362, %361 : vector<8x128xf32>
    %364 = math.tanh %363 : vector<8x128xf32>
    %cst_207 = arith.constant 1.000000e+00 : f32
    %365 = vector.broadcast %cst_207 : f32 to vector<8x128xf32>
    %366 = arith.addf %364, %365 : vector<8x128xf32>
    %cst_208 = arith.constant 5.000000e-01 : f32
    %367 = vector.broadcast %cst_208 : f32 to vector<8x128xf32>
    %368 = arith.mulf %367, %366 : vector<8x128xf32>
    %369 = vector.extract_strided_slice %353 {offsets = [0, 128], sizes = [8, 128], strides = [1, 1]} : vector<8x384xf32> to vector<8x128xf32>
    %370 = vector.extract_strided_slice %358 {offsets = [0, 128], sizes = [8, 128], strides = [1, 1]} : vector<8x384xf32> to vector<8x128xf32>
    %371 = arith.addf %369, %370 : vector<8x128xf32>
    %cst_209 = arith.constant 5.000000e-01 : f32
    %372 = vector.broadcast %cst_209 : f32 to vector<8x128xf32>
    %373 = arith.mulf %372, %371 : vector<8x128xf32>
    %374 = math.tanh %373 : vector<8x128xf32>
    %cst_210 = arith.constant 1.000000e+00 : f32
    %375 = vector.broadcast %cst_210 : f32 to vector<8x128xf32>
    %376 = arith.addf %374, %375 : vector<8x128xf32>
    %cst_211 = arith.constant 5.000000e-01 : f32
    %377 = vector.broadcast %cst_211 : f32 to vector<8x128xf32>
    %378 = arith.mulf %377, %376 : vector<8x128xf32>
    %379 = vector.extract_strided_slice %353 {offsets = [0, 256], sizes = [8, 128], strides = [1, 1]} : vector<8x384xf32> to vector<8x128xf32>
    %380 = vector.extract_strided_slice %358 {offsets = [0, 256], sizes = [8, 128], strides = [1, 1]} : vector<8x384xf32> to vector<8x128xf32>
    %381 = arith.mulf %368, %380 : vector<8x128xf32>
    %382 = arith.addf %379, %381 : vector<8x128xf32>
    %383 = math.tanh %382 : vector<8x128xf32>
    %cst_212 = arith.constant 1.000000e+00 : f32
    %384 = vector.broadcast %cst_212 : f32 to vector<8x128xf32>
    %385 = arith.subf %384, %378 : vector<8x128xf32>
    %386 = arith.mulf %385, %383 : vector<8x128xf32>
    %387 = arith.mulf %378, %331 : vector<8x128xf32>
    %388 = arith.addf %386, %387 : vector<8x128xf32>
    %c0_213 = arith.constant 0 : index
    %c0_214 = arith.constant 0 : index
    %389 = vector.load %arg6[%c0_213, %c0_214] : memref<128x128xf32, #tpu.memory_space<vmem>>, vector<128x128xf32>
    %cst_215 = arith.constant dense<0.000000e+00> : vector<8x128xf32>
    %390 = tpu.matmul %388, %389, %cst_215 {dimension_numbers = #tpu.dot_dimension_numbers<[1], [0], [0], [1], [0, 0, 1, 1], [], []>} : vector<8x128xf32>, vector<128x128xf32>, vector<8x128xf32> -> vector<8x128xf32>
    %c0_216 = arith.constant 0 : index
    %c0_217 = arith.constant 0 : index
    %391 = vector.load %arg7[%c0_216, %c0_217] : memref<1x128xf32, #tpu.memory_space<vmem>>, vector<1x128xf32>
    %392 = vector.broadcast %391 : vector<1x128xf32> to vector<8x128xf32>
    %393 = arith.addf %390, %392 : vector<8x128xf32>
    %394 = math.tanh %393 : vector<8x128xf32>
    %c0_218 = arith.constant 0 : index
    %c0_219 = arith.constant 0 : index
    %395 = vector.load %arg8[%c0_218, %c0_219] : memref<128x128xf32, #tpu.memory_space<vmem>>, vector<128x128xf32>
    %cst_220 = arith.constant dense<0.000000e+00> : vector<8x128xf32>
    %396 = tpu.matmul %394, %395, %cst_220 {dimension_numbers = #tpu.dot_dimension_numbers<[1], [0], [0], [1], [0, 0, 1, 1], [], []>} : vector<8x128xf32>, vector<128x128xf32>, vector<8x128xf32> -> vector<8x128xf32>
    %c0_221 = arith.constant 0 : index
    %c0_222 = arith.constant 0 : index
    %397 = vector.load %arg9[%c0_221, %c0_222] : memref<1x128xf32, #tpu.memory_space<vmem>>, vector<1x128xf32>
    %398 = vector.broadcast %397 : vector<1x128xf32> to vector<8x128xf32>
    %399 = arith.addf %396, %398 : vector<8x128xf32>
    %c6_223 = arith.constant 6 : index
    %c0_224 = arith.constant 0 : index
    %c0_225 = arith.constant 0 : index
    %400 = vector.load %arg10[%c6_223, %c0_224, %c0_225] : memref<8x8x128xf32, #tpu.memory_space<vmem>>, vector<1x8x128xf32>
    %401 = vector.shape_cast %400 : vector<1x8x128xf32> to vector<8x128xf32>
    %402 = vector.shape_cast %388 : vector<8x128xf32> to vector<1x8x128xf32>
    tpu.vector_store %arg10[%c6_223, %c0_224, %c0_225], %402 {strides = array<i32>} : memref<8x8x128xf32, #tpu.memory_space<vmem>>, vector<1x8x128xf32>,
    %c6_226 = arith.constant 6 : index
    %c0_227 = arith.constant 0 : index
    %c0_228 = arith.constant 0 : index
    %403 = vector.load %arg11[%c6_226, %c0_227, %c0_228] : memref<8x8x128xf32, #tpu.memory_space<vmem>>, vector<1x8x128xf32>
    %404 = vector.shape_cast %403 : vector<1x8x128xf32> to vector<8x128xf32>
    %405 = vector.shape_cast %399 : vector<8x128xf32> to vector<1x8x128xf32>
    tpu.vector_store %arg11[%c6_226, %c0_227, %c0_228], %405 {strides = array<i32>} : memref<8x8x128xf32, #tpu.memory_space<vmem>>, vector<1x8x128xf32>,
    %c7 = arith.constant 7 : index
    %c0_229 = arith.constant 0 : index
    %406 = vector.load %arg2[%c7, %c0_229] : memref<8x384xf32, #tpu.memory_space<vmem>>, vector<1x384xf32>
    %c0_230 = arith.constant 0 : index
    %c0_231 = arith.constant 0 : index
    %407 = vector.load %arg3[%c0_230, %c0_231] : memref<128x384xf32, #tpu.memory_space<vmem>>, vector<128x384xf32>
    %cst_232 = arith.constant dense<0.000000e+00> : vector<8x384xf32>
    %408 = tpu.matmul %399, %407, %cst_232 {dimension_numbers = #tpu.dot_dimension_numbers<[1], [0], [0], [1], [0, 0, 1, 1], [], []>} : vector<8x128xf32>, vector<128x384xf32>, vector<8x384xf32> -> vector<8x384xf32>
    %409 = vector.broadcast %406 : vector<1x384xf32> to vector<8x384xf32>
    %410 = arith.addf %408, %409 : vector<8x384xf32>
    %c0_233 = arith.constant 0 : index
    %c0_234 = arith.constant 0 : index
    %411 = vector.load %arg4[%c0_233, %c0_234] : memref<128x384xf32, #tpu.memory_space<vmem>>, vector<128x384xf32>
    %cst_235 = arith.constant dense<0.000000e+00> : vector<8x384xf32>
    %412 = tpu.matmul %388, %411, %cst_235 {dimension_numbers = #tpu.dot_dimension_numbers<[1], [0], [0], [1], [0, 0, 1, 1], [], []>} : vector<8x128xf32>, vector<128x384xf32>, vector<8x384xf32> -> vector<8x384xf32>
    %c0_236 = arith.constant 0 : index
    %c0_237 = arith.constant 0 : index
    %413 = vector.load %arg5[%c0_236, %c0_237] : memref<1x384xf32, #tpu.memory_space<vmem>>, vector<1x384xf32>
    %414 = vector.broadcast %413 : vector<1x384xf32> to vector<8x384xf32>
    %415 = arith.addf %412, %414 : vector<8x384xf32>
    %416 = vector.extract_strided_slice %410 {offsets = [0, 0], sizes = [8, 128], strides = [1, 1]} : vector<8x384xf32> to vector<8x128xf32>
    %417 = vector.extract_strided_slice %415 {offsets = [0, 0], sizes = [8, 128], strides = [1, 1]} : vector<8x384xf32> to vector<8x128xf32>
    %418 = arith.addf %416, %417 : vector<8x128xf32>
    %cst_238 = arith.constant 5.000000e-01 : f32
    %419 = vector.broadcast %cst_238 : f32 to vector<8x128xf32>
    %420 = arith.mulf %419, %418 : vector<8x128xf32>
    %421 = math.tanh %420 : vector<8x128xf32>
    %cst_239 = arith.constant 1.000000e+00 : f32
    %422 = vector.broadcast %cst_239 : f32 to vector<8x128xf32>
    %423 = arith.addf %421, %422 : vector<8x128xf32>
    %cst_240 = arith.constant 5.000000e-01 : f32
    %424 = vector.broadcast %cst_240 : f32 to vector<8x128xf32>
    %425 = arith.mulf %424, %423 : vector<8x128xf32>
    %426 = vector.extract_strided_slice %410 {offsets = [0, 128], sizes = [8, 128], strides = [1, 1]} : vector<8x384xf32> to vector<8x128xf32>
    %427 = vector.extract_strided_slice %415 {offsets = [0, 128], sizes = [8, 128], strides = [1, 1]} : vector<8x384xf32> to vector<8x128xf32>
    %428 = arith.addf %426, %427 : vector<8x128xf32>
    %cst_241 = arith.constant 5.000000e-01 : f32
    %429 = vector.broadcast %cst_241 : f32 to vector<8x128xf32>
    %430 = arith.mulf %429, %428 : vector<8x128xf32>
    %431 = math.tanh %430 : vector<8x128xf32>
    %cst_242 = arith.constant 1.000000e+00 : f32
    %432 = vector.broadcast %cst_242 : f32 to vector<8x128xf32>
    %433 = arith.addf %431, %432 : vector<8x128xf32>
    %cst_243 = arith.constant 5.000000e-01 : f32
    %434 = vector.broadcast %cst_243 : f32 to vector<8x128xf32>
    %435 = arith.mulf %434, %433 : vector<8x128xf32>
    %436 = vector.extract_strided_slice %410 {offsets = [0, 256], sizes = [8, 128], strides = [1, 1]} : vector<8x384xf32> to vector<8x128xf32>
    %437 = vector.extract_strided_slice %415 {offsets = [0, 256], sizes = [8, 128], strides = [1, 1]} : vector<8x384xf32> to vector<8x128xf32>
    %438 = arith.mulf %425, %437 : vector<8x128xf32>
    %439 = arith.addf %436, %438 : vector<8x128xf32>
    %440 = math.tanh %439 : vector<8x128xf32>
    %cst_244 = arith.constant 1.000000e+00 : f32
    %441 = vector.broadcast %cst_244 : f32 to vector<8x128xf32>
    %442 = arith.subf %441, %435 : vector<8x128xf32>
    %443 = arith.mulf %442, %440 : vector<8x128xf32>
    %444 = arith.mulf %435, %388 : vector<8x128xf32>
    %445 = arith.addf %443, %444 : vector<8x128xf32>
    %c0_245 = arith.constant 0 : index
    %c0_246 = arith.constant 0 : index
    %446 = vector.load %arg6[%c0_245, %c0_246] : memref<128x128xf32, #tpu.memory_space<vmem>>, vector<128x128xf32>
    %cst_247 = arith.constant dense<0.000000e+00> : vector<8x128xf32>
    %447 = tpu.matmul %445, %446, %cst_247 {dimension_numbers = #tpu.dot_dimension_numbers<[1], [0], [0], [1], [0, 0, 1, 1], [], []>} : vector<8x128xf32>, vector<128x128xf32>, vector<8x128xf32> -> vector<8x128xf32>
    %c0_248 = arith.constant 0 : index
    %c0_249 = arith.constant 0 : index
    %448 = vector.load %arg7[%c0_248, %c0_249] : memref<1x128xf32, #tpu.memory_space<vmem>>, vector<1x128xf32>
    %449 = vector.broadcast %448 : vector<1x128xf32> to vector<8x128xf32>
    %450 = arith.addf %447, %449 : vector<8x128xf32>
    %451 = math.tanh %450 : vector<8x128xf32>
    %c0_250 = arith.constant 0 : index
    %c0_251 = arith.constant 0 : index
    %452 = vector.load %arg8[%c0_250, %c0_251] : memref<128x128xf32, #tpu.memory_space<vmem>>, vector<128x128xf32>
    %cst_252 = arith.constant dense<0.000000e+00> : vector<8x128xf32>
    %453 = tpu.matmul %451, %452, %cst_252 {dimension_numbers = #tpu.dot_dimension_numbers<[1], [0], [0], [1], [0, 0, 1, 1], [], []>} : vector<8x128xf32>, vector<128x128xf32>, vector<8x128xf32> -> vector<8x128xf32>
    %c0_253 = arith.constant 0 : index
    %c0_254 = arith.constant 0 : index
    %454 = vector.load %arg9[%c0_253, %c0_254] : memref<1x128xf32, #tpu.memory_space<vmem>>, vector<1x128xf32>
    %455 = vector.broadcast %454 : vector<1x128xf32> to vector<8x128xf32>
    %456 = arith.addf %453, %455 : vector<8x128xf32>
    %c7_255 = arith.constant 7 : index
    %c0_256 = arith.constant 0 : index
    %c0_257 = arith.constant 0 : index
    %457 = vector.load %arg10[%c7_255, %c0_256, %c0_257] : memref<8x8x128xf32, #tpu.memory_space<vmem>>, vector<1x8x128xf32>
    %458 = vector.shape_cast %457 : vector<1x8x128xf32> to vector<8x128xf32>
    %459 = vector.shape_cast %445 : vector<8x128xf32> to vector<1x8x128xf32>
    tpu.vector_store %arg10[%c7_255, %c0_256, %c0_257], %459 {strides = array<i32>} : memref<8x8x128xf32, #tpu.memory_space<vmem>>, vector<1x8x128xf32>,
    %c7_258 = arith.constant 7 : index
    %c0_259 = arith.constant 0 : index
    %c0_260 = arith.constant 0 : index
    %460 = vector.load %arg11[%c7_258, %c0_259, %c0_260] : memref<8x8x128xf32, #tpu.memory_space<vmem>>, vector<1x8x128xf32>
    %461 = vector.shape_cast %460 : vector<1x8x128xf32> to vector<8x128xf32>
    %462 = vector.shape_cast %456 : vector<8x128xf32> to vector<1x8x128xf32>
    tpu.vector_store %arg11[%c7_258, %c0_259, %c0_260], %462 {strides = array<i32>} : memref<8x8x128xf32, #tpu.memory_space<vmem>>, vector<1x8x128xf32>,
    %c0_261 = arith.constant 0 : index
    %c0_262 = arith.constant 0 : index
    %463 = vector.load %arg12[%c0_261, %c0_262] : memref<8x128xf32, #tpu.memory_space<vmem>>, vector<8x128xf32>
    tpu.vector_store %arg12[%c0_261, %c0_262], %445 {strides = array<i32>} : memref<8x128xf32, #tpu.memory_space<vmem>>, vector<8x128xf32>,
    %c0_263 = arith.constant 0 : index
    %c0_264 = arith.constant 0 : index
    %464 = vector.load %arg13[%c0_263, %c0_264] : memref<8x128xf32, #tpu.memory_space<vmem>>, vector<8x128xf32>
    tpu.vector_store %arg13[%c0_263, %c0_264], %456 {strides = array<i32>} : memref<8x128xf32, #tpu.memory_space<vmem>>, vector<8x128xf32>,
    return
  }
  func.func @transform_0(%arg0: i32) -> (i32, i32) {
    %c0_i32 = arith.constant 0 : i32
    %c0_i32_0 = arith.constant 0 : i32
    %c0_i32_1 = arith.constant 0 : i32
    return %c0_i32, %c0_i32_0 : i32, i32
  }
  func.func @transform_1(%arg0: i32) -> (i32, i32) {
    %c0_i32 = arith.constant 0 : i32
    %c0_i32_0 = arith.constant 0 : i32
    return %arg0, %c0_i32 : i32, i32
  }
  func.func @transform_2(%arg0: i32) -> (i32, i32) {
    %c0_i32 = arith.constant 0 : i32
    %c0_i32_0 = arith.constant 0 : i32
    %c0_i32_1 = arith.constant 0 : i32
    return %c0_i32, %c0_i32_0 : i32, i32
  }
  func.func @transform_3(%arg0: i32) -> (i32, i32) {
    %c0_i32 = arith.constant 0 : i32
    %c0_i32_0 = arith.constant 0 : i32
    %c0_i32_1 = arith.constant 0 : i32
    return %c0_i32, %c0_i32_0 : i32, i32
  }
  func.func @transform_4(%arg0: i32) -> (i32, i32) {
    %c0_i32 = arith.constant 0 : i32
    %c0_i32_0 = arith.constant 0 : i32
    %c0_i32_1 = arith.constant 0 : i32
    return %c0_i32, %c0_i32_0 : i32, i32
  }
  func.func @transform_5(%arg0: i32) -> (i32, i32) {
    %c0_i32 = arith.constant 0 : i32
    %c0_i32_0 = arith.constant 0 : i32
    %c0_i32_1 = arith.constant 0 : i32
    return %c0_i32, %c0_i32_0 : i32, i32
  }
  func.func @transform_6(%arg0: i32) -> (i32, i32) {
    %c0_i32 = arith.constant 0 : i32
    %c0_i32_0 = arith.constant 0 : i32
    %c0_i32_1 = arith.constant 0 : i32
    return %c0_i32, %c0_i32_0 : i32, i32
  }
  func.func @transform_7(%arg0: i32) -> (i32, i32) {
    %c0_i32 = arith.constant 0 : i32
    %c0_i32_0 = arith.constant 0 : i32
    %c0_i32_1 = arith.constant 0 : i32
    return %c0_i32, %c0_i32_0 : i32, i32
  }
  func.func @transform_8(%arg0: i32) -> (i32, i32) {
    %c0_i32 = arith.constant 0 : i32
    %c0_i32_0 = arith.constant 0 : i32
    %c0_i32_1 = arith.constant 0 : i32
    return %c0_i32, %c0_i32_0 : i32, i32
  }
  func.func @transform_9(%arg0: i32) -> (i32, i32, i32) {
    %c0_i32 = arith.constant 0 : i32
    %c0_i32_0 = arith.constant 0 : i32
    %c0_i32_1 = arith.constant 0 : i32
    return %arg0, %c0_i32, %c0_i32_0 : i32, i32, i32
  }
  func.func @transform_10(%arg0: i32) -> (i32, i32, i32) {
    %c0_i32 = arith.constant 0 : i32
    %c0_i32_0 = arith.constant 0 : i32
    %c0_i32_1 = arith.constant 0 : i32
    return %arg0, %c0_i32, %c0_i32_0 : i32, i32, i32
  }
}

</mosaic_0001>

<llo_original>
// kernel: tpu_custom_call.1
$region0: #{tpu_custom_call.1}
  #allocation0 [shape = 'u32[]', space=smem, size = 0x4, offset = 0x4, fixed_abs, tag = 'smem constant byte address 0x4 - core index']
  #allocation1 [shape = 'u32[72,128]{1,0:T(1,128)}', space=vmem, size = 0x9000, scoped, tag = 'internal scratch']
  #allocation2 [shape = 'f32[8,128]{1,0:T(8,128)}', space=vmem, size = 0x1000, scoped, tag = 'scratch operand']
  #allocation3 [shape = 'f32[8,128]{1,0:T(8,128)}', space=vmem, size = 0x1000, scoped, tag = 'scratch operand']
  %s0 = inlined_call_operand.hbm [shape: f32[8,128], index: 0, kind: input, shape index: {}]
  %s1 = inlined_call_operand.hbm [shape: f32[8,384], index: 1, kind: input, shape index: {}]
  %s2 = inlined_call_operand.hbm [shape: f32[128,384], index: 2, kind: input, shape index: {}]
  %s3 = inlined_call_operand.hbm [shape: f32[128,384], index: 3, kind: input, shape index: {}]
  %s4 = inlined_call_operand.vmem [shape: f32[1,384], index: 4, kind: input, shape index: {}]
  %s5 = inlined_call_operand.hbm [shape: f32[128,128], index: 5, kind: input, shape index: {}]
  %s6 = inlined_call_operand.vmem [shape: f32[1,128], index: 6, kind: input, shape index: {}]
  %s7 = inlined_call_operand.hbm [shape: f32[128,128], index: 7, kind: input, shape index: {}]
  %s8 = inlined_call_operand.vmem [shape: f32[1,128], index: 8, kind: input, shape index: {}]
  %s9 = inlined_call_operand.hbm [shape: f32[8,8,128], index: 9, kind: output, shape index: {0}]
  %s10 = inlined_call_operand.hbm [shape: f32[8,8,128], index: 10, kind: output, shape index: {1}]
  %11 = xla_tuple %s9, %s10
  %s12 = sld [smem:[#allocation0]]
  $region82: #{tpu_custom_call.1} parent=0
    _
  %s14 = ssub.s32 1, %s12
  %s15 = scalar_select 0, %s14, %s12
  $region1: #{tpu_custom_call.1} parent=0
    #allocation4 [shape = 'u8[4096]{0}', space=vmem, size = 0x1000, scoped, tag = 'input window, operand 0, single buffered']
    #allocation5 [shape = 's32[1]{0}', space=sflag, size = 0x4, scoped, tag = 'scoped memory for tpu_custom_call.1']
    #allocation6 [shape = 's32[1]{0}', space=sflag, size = 0x4, scoped, tag = 'scoped memory for tpu_custom_call.1']
    #allocation7 [shape = 'u8[12288]{0}', space=vmem, size = 0x3000, scoped, tag = 'input window, operand 1, single buffered']
    #allocation8 [shape = 's32[1]{0}', space=sflag, size = 0x4, scoped, tag = 'scoped memory for tpu_custom_call.1']
    #allocation9 [shape = 'u8[196608]{0}', space=vmem, size = 0x30000, scoped, tag = 'input window, operand 2, single buffered']
    #allocation10 [shape = 'u8[196608]{0}', space=vmem, size = 0x30000, scoped, tag = 'input window, operand 3, single buffered']
    #allocation11 [shape = 's32[1]{0}', space=sflag, size = 0x4, scoped, tag = 'scoped memory for tpu_custom_call.1']
    #allocation12 [shape = 'u8[65536]{0}', space=vmem, size = 0x10000, scoped, tag = 'input window, operand 5, single buffered']
    #allocation13 [shape = 'u8[65536]{0}', space=vmem, size = 0x10000, scoped, tag = 'input window, operand 7, single buffered']
    #allocation14 [shape = 's32[1]{0}', space=sflag, size = 0x4, scoped, tag = 'scoped memory for tpu_custom_call.1']
    #allocation15 [shape = 'u8[32768]{0}', space=vmem, size = 0x8000, scoped, tag = 'output window, operand 0, single buffered']
    #allocation16 [shape = 'u8[32768]{0}', space=vmem, size = 0x8000, scoped, tag = 'output window, operand 1, single buffered']
    #allocation17 [shape = 's32[1]{0}', space=sflag, size = 0x4, scoped, tag = 'scoped memory for tpu_custom_call.1']
    %16 = vsyncpa [#allocation5], 0
    %17 = vsyncpa [#allocation8], 0
    %18 = vsyncpa [#allocation11], 0
    %19 = vsyncpa [#allocation14], 0
    %20 = vsyncpa [#allocation6], 0
    %21 = vsyncpa [#allocation17], 0
    // Predicated region
    $region2: #{tpu_custom_call.1} parent=1 // pred_check
      _
    $region3: #{tpu_custom_call.1} parent=1 // pred_check_branch
      %23 = sbr.rel (0) target = $region5
    $region4: #{tpu_custom_call.1} parent=1 // pred_region
      %25 = vsyncadd [#allocation5], 0
      %s27 = sshll.u32 %s0, 4
      %s28 = int_to_ptr.hbm [resolvable:$true] %s27
      %s29 = sshll.u32 [#allocation4], 4
      %s30 = int_to_ptr.vmem [resolvable:$true] %s29
      %32 = dma.hbm_to_vmem [thread:$0]  %s28, 128, %s30, [#allocation5]
    $region5: #{tpu_custom_call.1} parent=1 // pred_fallthru
      _
    // Predicated region
    $region6: #{tpu_custom_call.1} parent=1 // pred_check
      _
    $region7: #{tpu_custom_call.1} parent=1 // pred_check_branch
      %34 = sbr.rel (0) target = $region9
    $region8: #{tpu_custom_call.1} parent=1 // pred_region
      %36 = vsyncadd [#allocation8], 0
      %s38 = sshll.u32 %s1, 4
      %s39 = int_to_ptr.hbm [resolvable:$true] %s38
      %s40 = sshll.u32 [#allocation7], 4
      %s41 = int_to_ptr.vmem [resolvable:$true] %s40
      %43 = dma.hbm_to_vmem [thread:$0]  %s39, 384, %s41, [#allocation8]
    $region9: #{tpu_custom_call.1} parent=1 // pred_fallthru
      _
    // Predicated region
    $region10: #{tpu_custom_call.1} parent=1 // pred_check
      _
    $region11: #{tpu_custom_call.1} parent=1 // pred_check_branch
      %45 = sbr.rel (0) target = $region13
    $region12: #{tpu_custom_call.1} parent=1 // pred_region
      %47 = vsyncadd [#allocation8], 0
      %s48 = sshll.u32 %s2, 4
      %s49 = int_to_ptr.hbm [resolvable:$true] %s48
      %s50 = sshll.u32 [#allocation9], 4
      %s51 = int_to_ptr.vmem [resolvable:$true] %s50
      %56 = dma.hbm_to_vmem [thread:$0]  %s49, 6144, %s51, [#allocation8], 384, 384, 24
    $region13: #{tpu_custom_call.1} parent=1 // pred_fallthru
      _
    // Predicated region
    $region14: #{tpu_custom_call.1} parent=1 // pred_check
      _
    $region15: #{tpu_custom_call.1} parent=1 // pred_check_branch
      %58 = sbr.rel (0) target = $region17
    $region16: #{tpu_custom_call.1} parent=1 // pred_region
      %60 = vsyncadd [#allocation11], 0
      %s61 = sshll.u32 %s3, 4
      %s62 = int_to_ptr.hbm [resolvable:$true] %s61
      %s63 = sshll.u32 [#allocation10], 4
      %s64 = int_to_ptr.vmem [resolvable:$true] %s63
      %69 = dma.hbm_to_vmem [thread:$0]  %s62, 6144, %s64, [#allocation11], 384, 384, 24
    $region17: #{tpu_custom_call.1} parent=1 // pred_fallthru
      _
    // Predicated region
    $region18: #{tpu_custom_call.1} parent=1 // pred_check
      _
    $region19: #{tpu_custom_call.1} parent=1 // pred_check_branch
      %71 = sbr.rel (0) target = $region21
    $region20: #{tpu_custom_call.1} parent=1 // pred_region
      _
    $region21: #{tpu_custom_call.1} parent=1 // pred_fallthru
      _
    // Predicated region
    $region22: #{tpu_custom_call.1} parent=1 // pred_check
      _
    $region23: #{tpu_custom_call.1} parent=1 // pred_check_branch
      %73 = sbr.rel (0) target = $region25
    $region24: #{tpu_custom_call.1} parent=1 // pred_region
      %75 = vsyncadd [#allocation11], 0
      %s76 = sshll.u32 %s5, 4
      %s77 = int_to_ptr.hbm [resolvable:$true] %s76
      %s78 = sshll.u32 [#allocation12], 4
      %s79 = int_to_ptr.vmem [resolvable:$true] %s78
      %84 = dma.hbm_to_vmem [thread:$0]  %s77, 2048, %s79, [#allocation11], 128, 128, 8
    $region25: #{tpu_custom_call.1} parent=1 // pred_fallthru
      _
    // Predicated region
    $region26: #{tpu_custom_call.1} parent=1 // pred_check
      _
    $region27: #{tpu_custom_call.1} parent=1 // pred_check_branch
      %86 = sbr.rel (0) target = $region29
    $region28: #{tpu_custom_call.1} parent=1 // pred_region
      _
    $region29: #{tpu_custom_call.1} parent=1 // pred_fallthru
      _
    // Predicated region
    $region30: #{tpu_custom_call.1} parent=1 // pred_check
      _
    $region31: #{tpu_custom_call.1} parent=1 // pred_check_branch
      %88 = sbr.rel (0) target = $region33
    $region32: #{tpu_custom_call.1} parent=1 // pred_region
      %90 = vsyncadd [#allocation14], 0
      %s91 = sshll.u32 %s7, 4
      %s92 = int_to_ptr.hbm [resolvable:$true] %s91
      %s93 = sshll.u32 [#allocation13], 4
      %s94 = int_to_ptr.vmem [resolvable:$true] %s93
      %99 = dma.hbm_to_vmem [thread:$0]  %s92, 2048, %s94, [#allocation14], 128, 128, 8
    $region33: #{tpu_custom_call.1} parent=1 // pred_fallthru
      _
    // Predicated region
    $region34: #{tpu_custom_call.1} parent=1 // pred_check
      _
    $region35: #{tpu_custom_call.1} parent=1 // pred_check_branch
      %101 = sbr.rel (0) target = $region37
    $region36: #{tpu_custom_call.1} parent=1 // pred_region
      _
    $region37: #{tpu_custom_call.1} parent=1 // pred_fallthru
      _
    // Predicated region
    $region38: #{tpu_custom_call.1} parent=1 // pred_check
      _
    $region39: #{tpu_custom_call.1} parent=1 // pred_check_branch
      %103 = sbr.rel (0) target = $region41
    $region40: #{tpu_custom_call.1} parent=1 // pred_region
      %105 = dma.done [#allocation5], 128
    $region41: #{tpu_custom_call.1} parent=1 // pred_fallthru
      _
    // Predicated region
    $region42: #{tpu_custom_call.1} parent=1 // pred_check
      _
    $region43: #{tpu_custom_call.1} parent=1 // pred_check_branch
      %107 = sbr.rel (0) target = $region45
    $region44: #{tpu_custom_call.1} parent=1 // pred_region
      %109 = dma.done [#allocation8], 384
    $region45: #{tpu_custom_call.1} parent=1 // pred_fallthru
      _
    // Predicated region
    $region46: #{tpu_custom_call.1} parent=1 // pred_check
      _
    $region47: #{tpu_custom_call.1} parent=1 // pred_check_branch
      %111 = sbr.rel (0) target = $region49
    $region48: #{tpu_custom_call.1} parent=1 // pred_region
      %113 = dma.done [#allocation8], 6144
    $region49: #{tpu_custom_call.1} parent=1 // pred_fallthru
      _
    // Predicated region
    $region50: #{tpu_custom_call.1} parent=1 // pred_check
      _
    $region51: #{tpu_custom_call.1} parent=1 // pred_check_branch
      %115 = sbr.rel (0) target = $region53
    $region52: #{tpu_custom_call.1} parent=1 // pred_region
      %117 = dma.done [#allocation11], 6144
    $region53: #{tpu_custom_call.1} parent=1 // pred_fallthru
      _
    // Predicated region
    $region54: #{tpu_custom_call.1} parent=1 // pred_check
      _
    $region55: #{tpu_custom_call.1} parent=1 // pred_check_branch
      %119 = sbr.rel (0) target = $region57
    $region56: #{tpu_custom_call.1} parent=1 // pred_region
      %121 = dma.done [#allocation11], 2048
    $region57: #{tpu_custom_call.1} parent=1 // pred_fallthru
      _
    // Predicated region
    $region58: #{tpu_custom_call.1} parent=1 // pred_check
      _
    $region59: #{tpu_custom_call.1} parent=1 // pred_check_branch
      %123 = sbr.rel (0) target = $region61
    $region60: #{tpu_custom_call.1} parent=1 // pred_region
      %125 = dma.done [#allocation14], 2048
    $region61: #{tpu_custom_call.1} parent=1 // pred_fallthru
      _
    %p126 = scmp.eq.s32.totalorder 0, 0
    // Predicated region
    $region62: #{tpu_custom_call.1} parent=1 // pred_check
      %p127 = pneg %p126
    $region63: #{tpu_custom_call.1} parent=1 // pred_check_branch
      %129 = sbr.rel (%p127) target = $region65
    $region64: #{tpu_custom_call.1} parent=1 // pred_region
      %v130 = vld [vmem:[#allocation4] sm:$0xff]
      %131 = vst [vmem:[#allocation2] sm:$0xff] %v130
      %132 = vst [vmem:[#allocation3] sm:$0xff] 0.0
    $region65: #{tpu_custom_call.1} parent=1 // pred_fallthru
      _
    %v133 = vld [vmem:[#allocation2] sm:$0xff]
    %v134 = vld [vmem:[#allocation3] sm:$0xff]
    %v135 = vld [vmem:[#allocation7] ss:$8 sm:$0x7]
    %v136 = vld [vmem:[#allocation9] sm:$0xff]
    %v137 = vld [vmem:[#allocation9 + $0x8] sm:$0xff]
    %v138 = vld [vmem:[#allocation9 + $0x10] sm:$0xff]
    %v139 = vld [vmem:[#allocation9 + $0x18] sm:$0xff]
    %v140 = vld [vmem:[#allocation9 + $0x20] sm:$0xff]
    %v141 = vld [vmem:[#allocation9 + $0x28] sm:$0xff]
    %v142 = vld [vmem:[#allocation9 + $0x30] sm:$0xff]
    %v143 = vld [vmem:[#allocation9 + $0x38] sm:$0xff]
    %v144 = vld [vmem:[#allocation9 + $0x40] sm:$0xff]
    %v145 = vld [vmem:[#allocation9 + $0x48] sm:$0xff]
    %v146 = vld [vmem:[#allocation9 + $0x50] sm:$0xff]
    %v147 = vld [vmem:[#allocation9 + $0x58] sm:$0xff]
    %v148 = vld [vmem:[#allocation9 + $0x60] sm:$0xff]
    %v149 = vld [vmem:[#allocation9 + $0x68] sm:$0xff]
    %v150 = vld [vmem:[#allocation9 + $0x70] sm:$0xff]
    %v151 = vld [vmem:[#allocation9 + $0x78] sm:$0xff]
    %v152 = vld [vmem:[#allocation9 + $0x80] sm:$0xff]
    %v153 = vld [vmem:[#allocation9 + $0x88] sm:$0xff]
    %v154 = vld [vmem:[#allocation9 + $0x90] sm:$0xff]
    %v155 = vld [vmem:[#allocation9 + $0x98] sm:$0xff]
    %v156 = vld [vmem:[#allocation9 + $0xa0] sm:$0xff]
    %v157 = vld [vmem:[#allocation9 + $0xa8] sm:$0xff]
    %v158 = vld [vmem:[#allocation9 + $0xb0] sm:$0xff]
    %v159 = vld [vmem:[#allocation9 + $0xb8] sm:$0xff]
    %v160 = vld [vmem:[#allocation9 + $0xc0] sm:$0xff]
    %v161 = vld [vmem:[#allocation9 + $0xc8] sm:$0xff]
    %v162 = vld [vmem:[#allocation9 + $0xd0] sm:$0xff]
    %v163 = vld [vmem:[#allocation9 + $0xd8] sm:$0xff]
    %v164 = vld [vmem:[#allocation9 + $0xe0] sm:$0xff]
    %v165 = vld [vmem:[#allocation9 + $0xe8] sm:$0xff]
    %v166 = vld [vmem:[#allocation9 + $0xf0] sm:$0xff]
    %v167 = vld [vmem:[#allocation9 + $0xf8] sm:$0xff]
    %v168 = vld [vmem:[#allocation9 + $0x100] sm:$0xff]
    %v169 = vld [vmem:[#allocation9 + $0x108] sm:$0xff]
    %v170 = vld [vmem:[#allocation9 + $0x110] sm:$0xff]
    %v171 = vld [vmem:[#allocation9 + $0x118] sm:$0xff]
    %v172 = vld [vmem:[#allocation9 + $0x120] sm:$0xff]
    %v173 = vld [vmem:[#allocation9 + $0x128] sm:$0xff]
    %v174 = vld [vmem:[#allocation9 + $0x130] sm:$0xff]
    %v175 = vld [vmem:[#allocation9 + $0x138] sm:$0xff]
    %v176 = vld [vmem:[#allocation9 + $0x140] sm:$0xff]
    %v177 = vld [vmem:[#allocation9 + $0x148] sm:$0xff]
    %v178 = vld [vmem:[#allocation9 + $0x150] sm:$0xff]
    %v179 = vld [vmem:[#allocation9 + $0x158] sm:$0xff]
    %v180 = vld [vmem:[#allocation9 + $0x160] sm:$0xff]
    %v181 = vld [vmem:[#allocation9 + $0x168] sm:$0xff]
    %v182 = vld [vmem:[#allocation9 + $0x170] sm:$0xff]
    %v183 = vld [vmem:[#allocation9 + $0x178] sm:$0xff]
    %v185 = vperm.slane %v135, 0
    %v186 = vperm.slane %v135, 1
    %v187 = vperm.slane %v135, 2
    %191 = vmatpush.msra.mxu0 %v181
    %192 = vmatpush.msra.mxu0 %v178
    %193 = vmatpush.msra.mxu0 %v175
    %194 = vmatpush.msra.mxu0 %v172
    %195 = vmatpush.msra.mxu0 %v169
    %196 = vmatpush.msra.mxu0 %v166
    %197 = vmatpush.msra.mxu0 %v163
    %198 = vmatpush.msra.mxu0 %v160
    %199 = vmatpush.msra.mxu0 %v157
    %200 = vmatpush.msra.mxu0 %v154
    %201 = vmatpush.msra.mxu0 %v151
    %202 = vmatpush.msra.mxu0 %v148
    %203 = vmatpush.msra.mxu0 %v145
    %204 = vmatpush.msra.mxu0 %v142
    %205 = vmatpush.msra.mxu0 %v139
    %206 = vmatpush.msra.mxu0 %v136
    %207 = vmatmul.f32.gmra.mxu0 %v134
    %v208 = vpop.f32.mrf.mxu0
    %v209 = vadd.f32 %v185, %v208
    %210 = vdwg.mxu0
    %211 = vmatpush.msra.mxu0 %v182
    %212 = vmatpush.msra.mxu0 %v179
    %213 = vmatpush.msra.mxu0 %v176
    %214 = vmatpush.msra.mxu0 %v173
    %215 = vmatpush.msra.mxu0 %v170
    %216 = vmatpush.msra.mxu0 %v167
    %217 = vmatpush.msra.mxu0 %v164
    %218 = vmatpush.msra.mxu0 %v161
    %219 = vmatpush.msra.mxu0 %v158
    %220 = vmatpush.msra.mxu0 %v155
    %221 = vmatpush.msra.mxu0 %v152
    %222 = vmatpush.msra.mxu0 %v149
    %223 = vmatpush.msra.mxu0 %v146
    %224 = vmatpush.msra.mxu0 %v143
    %225 = vmatpush.msra.mxu0 %v140
    %226 = vmatpush.msra.mxu0 %v137
    %227 = vmatmul.f32.gmra.mxu0 %v134
    %v228 = vpop.f32.mrf.mxu0
    %v229 = vadd.f32 %v186, %v228
    %230 = vdwg.mxu0
    %231 = vmatpush.msra.mxu0 %v183
    %232 = vmatpush.msra.mxu0 %v180
    %233 = vmatpush.msra.mxu0 %v177
    %234 = vmatpush.msra.mxu0 %v174
    %235 = vmatpush.msra.mxu0 %v171
    %236 = vmatpush.msra.mxu0 %v168
    %237 = vmatpush.msra.mxu0 %v165
    %238 = vmatpush.msra.mxu0 %v162
    %239 = vmatpush.msra.mxu0 %v159
    %240 = vmatpush.msra.mxu0 %v156
    %241 = vmatpush.msra.mxu0 %v153
    %242 = vmatpush.msra.mxu0 %v150
    %243 = vmatpush.msra.mxu0 %v147
    %244 = vmatpush.msra.mxu0 %v144
    %245 = vmatpush.msra.mxu0 %v141
    %246 = vmatpush.msra.mxu0 %v138
    %247 = vmatmul.f32.gmra.mxu0 %v134
    %v248 = vpop.f32.mrf.mxu0
    %v249 = vadd.f32 %v187, %v248
    %250 = vdwg.mxu0
    %v251 = vld [vmem:[#allocation10] sm:$0xff]
    %v252 = vld [vmem:[#allocation10 + $0x8] sm:$0xff]
    %v253 = vld [vmem:[#allocation10 + $0x10] sm:$0xff]
    %v254 = vld [vmem:[#allocation10 + $0x18] sm:$0xff]
    %v255 = vld [vmem:[#allocation10 + $0x20] sm:$0xff]
    %v256 = vld [vmem:[#allocation10 + $0x28] sm:$0xff]
    %v257 = vld [vmem:[#allocation10 + $0x30] sm:$0xff]
    %v258 = vld [vmem:[#allocation10 + $0x38] sm:$0xff]
    %v259 = vld [vmem:[#allocation10 + $0x40] sm:$0xff]
    %v260 = vld [vmem:[#allocation10 + $0x48] sm:$0xff]
    %v261 = vld [vmem:[#allocation10 + $0x50] sm:$0xff]
    %v262 = vld [vmem:[#allocation10 + $0x58] sm:$0xff]
    %v263 = vld [vmem:[#allocation10 + $0x60] sm:$0xff]
    %v264 = vld [vmem:[#allocation10 + $0x68] sm:$0xff]
    %v265 = vld [vmem:[#allocation10 + $0x70] sm:$0xff]
    %v266 = vld [vmem:[#allocation10 + $0x78] sm:$0xff]
    %v267 = vld [vmem:[#allocation10 + $0x80] sm:$0xff]
    %v268 = vld [vmem:[#allocation10 + $0x88] sm:$0xff]
    %v269 = vld [vmem:[#allocation10 + $0x90] sm:$0xff]
    %v270 = vld [vmem:[#allocation10 + $0x98] sm:$0xff]
    %v271 = vld [vmem:[#allocation10 + $0xa0] sm:$0xff]
    %v272 = vld [vmem:[#allocation10 + $0xa8] sm:$0xff]
    %v273 = vld [vmem:[#allocation10 + $0xb0] sm:$0xff]
    %v274 = vld [vmem:[#allocation10 + $0xb8] sm:$0xff]
    %v275 = vld [vmem:[#allocation10 + $0xc0] sm:$0xff]
    %v276 = vld [vmem:[#allocation10 + $0xc8] sm:$0xff]
    %v277 = vld [vmem:[#allocation10 + $0xd0] sm:$0xff]
    %v278 = vld [vmem:[#allocation10 + $0xd8] sm:$0xff]
    %v279 = vld [vmem:[#allocation10 + $0xe0] sm:$0xff]
    %v280 = vld [vmem:[#allocation10 + $0xe8] sm:$0xff]
    %v281 = vld [vmem:[#allocation10 + $0xf0] sm:$0xff]
    %v282 = vld [vmem:[#allocation10 + $0xf8] sm:$0xff]
    %v283 = vld [vmem:[#allocation10 + $0x100] sm:$0xff]
    %v284 = vld [vmem:[#allocation10 + $0x108] sm:$0xff]
    %v285 = vld [vmem:[#allocation10 + $0x110] sm:$0xff]
    %v286 = vld [vmem:[#allocation10 + $0x118] sm:$0xff]
    %v287 = vld [vmem:[#allocation10 + $0x120] sm:$0xff]
    %v288 = vld [vmem:[#allocation10 + $0x128] sm:$0xff]
    %v289 = vld [vmem:[#allocation10 + $0x130] sm:$0xff]
    %v290 = vld [vmem:[#allocation10 + $0x138] sm:$0xff]
    %v291 = vld [vmem:[#allocation10 + $0x140] sm:$0xff]
    %v292 = vld [vmem:[#allocation10 + $0x148] sm:$0xff]
    %v293 = vld [vmem:[#allocation10 + $0x150] sm:$0xff]
    %v294 = vld [vmem:[#allocation10 + $0x158] sm:$0xff]
    %v295 = vld [vmem:[#allocation10 + $0x160] sm:$0xff]
    %v296 = vld [vmem:[#allocation10 + $0x168] sm:$0xff]
    %v297 = vld [vmem:[#allocation10 + $0x170] sm:$0xff]
    %v298 = vld [vmem:[#allocation10 + $0x178] sm:$0xff]
    %v299 = vld [vmem:[%s4] sm:$0x7]
    %v301 = vperm.slane %v299, 0
    %v302 = vperm.slane %v299, 1
    %v303 = vperm.slane %v299, 2
    %307 = vmatpush.msra.mxu0 %v296
    %308 = vmatpush.msra.mxu0 %v293
    %309 = vmatpush.msra.mxu0 %v290
    %310 = vmatpush.msra.mxu0 %v287
    %311 = vmatpush.msra.mxu0 %v284
    %312 = vmatpush.msra.mxu0 %v281
    %313 = vmatpush.msra.mxu0 %v278
    %314 = vmatpush.msra.mxu0 %v275
    %315 = vmatpush.msra.mxu0 %v272
    %316 = vmatpush.msra.mxu0 %v269
    %317 = vmatpush.msra.mxu0 %v266
    %318 = vmatpush.msra.mxu0 %v263
    %319 = vmatpush.msra.mxu0 %v260
    %320 = vmatpush.msra.mxu0 %v257
    %321 = vmatpush.msra.mxu0 %v254
    %322 = vmatpush.msra.mxu0 %v251
    %323 = vmatmul.f32.gmra.mxu0 %v133
    %v324 = vpop.f32.mrf.mxu0
    %v325 = vadd.f32 %v301, %v324
    %326 = vdwg.mxu0
    %327 = vmatpush.msra.mxu0 %v297
    %328 = vmatpush.msra.mxu0 %v294
    %329 = vmatpush.msra.mxu0 %v291
    %330 = vmatpush.msra.mxu0 %v288
    %331 = vmatpush.msra.mxu0 %v285
    %332 = vmatpush.msra.mxu0 %v282
    %333 = vmatpush.msra.mxu0 %v279
    %334 = vmatpush.msra.mxu0 %v276
    %335 = vmatpush.msra.mxu0 %v273
    %336 = vmatpush.msra.mxu0 %v270
    %337 = vmatpush.msra.mxu0 %v267
    %338 = vmatpush.msra.mxu0 %v264
    %339 = vmatpush.msra.mxu0 %v261
    %340 = vmatpush.msra.mxu0 %v258
    %341 = vmatpush.msra.mxu0 %v255
    %342 = vmatpush.msra.mxu0 %v252
    %343 = vmatmul.f32.gmra.mxu0 %v133
    %v344 = vpop.f32.mrf.mxu0
    %v345 = vadd.f32 %v302, %v344
    %346 = vdwg.mxu0
    %347 = vmatpush.msra.mxu0 %v298
    %348 = vmatpush.msra.mxu0 %v295
    %349 = vmatpush.msra.mxu0 %v292
    %350 = vmatpush.msra.mxu0 %v289
    %351 = vmatpush.msra.mxu0 %v286
    %352 = vmatpush.msra.mxu0 %v283
    %353 = vmatpush.msra.mxu0 %v280
    %354 = vmatpush.msra.mxu0 %v277
    %355 = vmatpush.msra.mxu0 %v274
    %356 = vmatpush.msra.mxu0 %v271
    %357 = vmatpush.msra.mxu0 %v268
    %358 = vmatpush.msra.mxu0 %v265
    %359 = vmatpush.msra.mxu0 %v262
    %360 = vmatpush.msra.mxu0 %v259
    %361 = vmatpush.msra.mxu0 %v256
    %362 = vmatpush.msra.mxu0 %v253
    %363 = vmatmul.f32.gmra.mxu0 %v133
    %v364 = vpop.f32.mrf.mxu0
    %v365 = vadd.f32 %v303, %v364
    %366 = vdwg.mxu0
    %v367 = vadd.f32 %v209, %v325
    %v368 = vmul.f32 %v367, 0.5
    %v369 = vtanh.pop %v368
    %v370 = vadd.f32 %v369, 1.0
    %v371 = vmul.f32 %v370, 0.5
    %v372 = vadd.f32 %v229, %v345
    %v373 = vmul.f32 %v372, 0.5
    %v374 = vtanh.pop %v373
    %v375 = vadd.f32 %v374, 1.0
    %v376 = vmul.f32 %v375, 0.5
    %v377 = vmul.f32 %v371, %v365
    %v378 = vadd.f32 %v249, %v377
    %v379 = vtanh.pop %v378
    %v380 = vsub.f32 1.0, %v376
    %v381 = vmul.f32 %v380, %v379
    %v382 = vmul.f32 %v376, %v133
    %v383 = vadd.f32 %v381, %v382
    %p384 = scmp.gt.s32.totalorder 0, 0
    %s385 = scalar_select %p384, 1, 0
    %v386 = vstv %s385
    %vm387 = vcmp.eq.s32.totalorder %v386, 1
    %v388 = vsel %vm387, %v383, %v133
    %v389 = vld [vmem:[#allocation12] sm:$0xff]
    %v390 = vld [vmem:[#allocation12 + $0x8] sm:$0xff]
    %v391 = vld [vmem:[#allocation12 + $0x10] sm:$0xff]
    %v392 = vld [vmem:[#allocation12 + $0x18] sm:$0xff]
    %v393 = vld [vmem:[#allocation12 + $0x20] sm:$0xff]
    %v394 = vld [vmem:[#allocation12 + $0x28] sm:$0xff]
    %v395 = vld [vmem:[#allocation12 + $0x30] sm:$0xff]
    %v396 = vld [vmem:[#allocation12 + $0x38] sm:$0xff]
    %v397 = vld [vmem:[#allocation12 + $0x40] sm:$0xff]
    %v398 = vld [vmem:[#allocation12 + $0x48] sm:$0xff]
    %v399 = vld [vmem:[#allocation12 + $0x50] sm:$0xff]
    %v400 = vld [vmem:[#allocation12 + $0x58] sm:$0xff]
    %v401 = vld [vmem:[#allocation12 + $0x60] sm:$0xff]
    %v402 = vld [vmem:[#allocation12 + $0x68] sm:$0xff]
    %v403 = vld [vmem:[#allocation12 + $0x70] sm:$0xff]
    %v404 = vld [vmem:[#allocation12 + $0x78] sm:$0xff]
    %v405 = vld [vmem:[%s6] sm:$0x1]
    %v407 = vperm.slane %v405, 0
    %409 = vmatpush.msra.mxu0 %v404
    %410 = vmatpush.msra.mxu0 %v403
    %411 = vmatpush.msra.mxu0 %v402
    %412 = vmatpush.msra.mxu0 %v401
    %413 = vmatpush.msra.mxu0 %v400
    %414 = vmatpush.msra.mxu0 %v399
    %415 = vmatpush.msra.mxu0 %v398
    %416 = vmatpush.msra.mxu0 %v397
    %417 = vmatpush.msra.mxu0 %v396
    %418 = vmatpush.msra.mxu0 %v395
    %419 = vmatpush.msra.mxu0 %v394
    %420 = vmatpush.msra.mxu0 %v393
    %421 = vmatpush.msra.mxu0 %v392
    %422 = vmatpush.msra.mxu0 %v391
    %423 = vmatpush.msra.mxu0 %v390
    %424 = vmatpush.msra.mxu0 %v389
    %425 = vmatmul.f32.gmra.mxu0 %v388
    %v426 = vpop.f32.mrf.mxu0
    %v427 = vadd.f32 %v407, %v426
    %428 = vdwg.mxu0
    %v429 = vtanh.pop %v427
    %v430 = vld [vmem:[#allocation13] sm:$0xff]
    %v431 = vld [vmem:[#allocation13 + $0x8] sm:$0xff]
    %v432 = vld [vmem:[#allocation13 + $0x10] sm:$0xff]
    %v433 = vld [vmem:[#allocation13 + $0x18] sm:$0xff]
    %v434 = vld [vmem:[#allocation13 + $0x20] sm:$0xff]
    %v435 = vld [vmem:[#allocation13 + $0x28] sm:$0xff]
    %v436 = vld [vmem:[#allocation13 + $0x30] sm:$0xff]
    %v437 = vld [vmem:[#allocation13 + $0x38] sm:$0xff]
    %v438 = vld [vmem:[#allocation13 + $0x40] sm:$0xff]
    %v439 = vld [vmem:[#allocation13 + $0x48] sm:$0xff]
    %v440 = vld [vmem:[#allocation13 + $0x50] sm:$0xff]
    %v441 = vld [vmem:[#allocation13 + $0x58] sm:$0xff]
    %v442 = vld [vmem:[#allocation13 + $0x60] sm:$0xff]
    %v443 = vld [vmem:[#allocation13 + $0x68] sm:$0xff]
    %v444 = vld [vmem:[#allocation13 + $0x70] sm:$0xff]
    %v445 = vld [vmem:[#allocation13 + $0x78] sm:$0xff]
    %v446 = vld [vmem:[%s8] sm:$0x1]
    %v448 = vperm.slane %v446, 0
    %450 = vmatpush.msra.mxu0 %v445
    %451 = vmatpush.msra.mxu0 %v444
    %452 = vmatpush.msra.mxu0 %v443
    %453 = vmatpush.msra.mxu0 %v442
    %454 = vmatpush.msra.mxu0 %v441
    %455 = vmatpush.msra.mxu0 %v440
    %456 = vmatpush.msra.mxu0 %v439
    %457 = vmatpush.msra.mxu0 %v438
    %458 = vmatpush.msra.mxu0 %v437
    %459 = vmatpush.msra.mxu0 %v436
    %460 = vmatpush.msra.mxu0 %v435
    %461 = vmatpush.msra.mxu0 %v434
    %462 = vmatpush.msra.mxu0 %v433
    %463 = vmatpush.msra.mxu0 %v432
    %464 = vmatpush.msra.mxu0 %v431
    %465 = vmatpush.msra.mxu0 %v430
    %466 = vmatmul.f32.gmra.mxu0 %v429
    %v467 = vpop.f32.mrf.mxu0
    %v468 = vadd.f32 %v448, %v467
    %469 = vdwg.mxu0
    %470 = vst [vmem:[#allocation15] sm:$0xff] %v388
    %471 = vst [vmem:[#allocation16] sm:$0xff] %v468
    %s472 = scalar_lea.vmem [#allocation7], 1
    %v473 = vld [vmem:[%s472] ss:$8 sm:$0x7]
    %v474 = vld [vmem:[#allocation9] sm:$0xff]
    %v475 = vld [vmem:[#allocation9 + $0x8] sm:$0xff]
    %v476 = vld [vmem:[#allocation9 + $0x10] sm:$0xff]
    %v477 = vld [vmem:[#allocation9 + $0x18] sm:$0xff]
    %v478 = vld [vmem:[#allocation9 + $0x20] sm:$0xff]
    %v479 = vld [vmem:[#allocation9 + $0x28] sm:$0xff]
    %v480 = vld [vmem:[#allocation9 + $0x30] sm:$0xff]
    %v481 = vld [vmem:[#allocation9 + $0x38] sm:$0xff]
    %v482 = vld [vmem:[#allocation9 + $0x40] sm:$0xff]
    %v483 = vld [vmem:[#allocation9 + $0x48] sm:$0xff]
    %v484 = vld [vmem:[#allocation9 + $0x50] sm:$0xff]
    %v485 = vld [vmem:[#allocation9 + $0x58] sm:$0xff]
    %v486 = vld [vmem:[#allocation9 + $0x60] sm:$0xff]
    %v487 = vld [vmem:[#allocation9 + $0x68] sm:$0xff]
    %v488 = vld [vmem:[#allocation9 + $0x70] sm:$0xff]
    %v489 = vld [vmem:[#allocation9 + $0x78] sm:$0xff]
    %v490 = vld [vmem:[#allocation9 + $0x80] sm:$0xff]
    %v491 = vld [vmem:[#allocation9 + $0x88] sm:$0xff]
    %v492 = vld [vmem:[#allocation9 + $0x90] sm:$0xff]
    %v493 = vld [vmem:[#allocation9 + $0x98] sm:$0xff]
    %v494 = vld [vmem:[#allocation9 + $0xa0] sm:$0xff]
    %v495 = vld [vmem:[#allocation9 + $0xa8] sm:$0xff]
    %v496 = vld [vmem:[#allocation9 + $0xb0] sm:$0xff]
    %v497 = vld [vmem:[#allocation9 + $0xb8] sm:$0xff]
    %v498 = vld [vmem:[#allocation9 + $0xc0] sm:$0xff]
    %v499 = vld [vmem:[#allocation9 + $0xc8] sm:$0xff]
    %v500 = vld [vmem:[#allocation9 + $0xd0] sm:$0xff]
    %v501 = vld [vmem:[#allocation9 + $0xd8] sm:$0xff]
    %v502 = vld [vmem:[#allocation9 + $0xe0] sm:$0xff]
    %v503 = vld [vmem:[#allocation9 + $0xe8] sm:$0xff]
    %v504 = vld [vmem:[#allocation9 + $0xf0] sm:$0xff]
    %v505 = vld [vmem:[#allocation9 + $0xf8] sm:$0xff]
    %v506 = vld [vmem:[#allocation9 + $0x100] sm:$0xff]
    %v507 = vld [vmem:[#allocation9 + $0x108] sm:$0xff]
    %v508 = vld [vmem:[#allocation9 + $0x110] sm:$0xff]
    %v509 = vld [vmem:[#allocation9 + $0x118] sm:$0xff]
    %v510 = vld [vmem:[#allocation9 + $0x120] sm:$0xff]
    %v511 = vld [vmem:[#allocation9 + $0x128] sm:$0xff]
    %v512 = vld [vmem:[#allocation9 + $0x130] sm:$0xff]
    %v513 = vld [vmem:[#allocation9 + $0x138] sm:$0xff]
    %v514 = vld [vmem:[#allocation9 + $0x140] sm:$0xff]
    %v515 = vld [vmem:[#allocation9 + $0x148] sm:$0xff]
    %v516 = vld [vmem:[#allocation9 + $0x150] sm:$0xff]
    %v517 = vld [vmem:[#allocation9 + $0x158] sm:$0xff]
    %v518 = vld [vmem:[#allocation9 + $0x160] sm:$0xff]
    %v519 = vld [vmem:[#allocation9 + $0x168] sm:$0xff]
    %v520 = vld [vmem:[#allocation9 + $0x170] sm:$0xff]
    %v521 = vld [vmem:[#allocation9 + $0x178] sm:$0xff]
    %v523 = vperm.slane %v473, 0
    %v524 = vperm.slane %v473, 1
    %v525 = vperm.slane %v473, 2
    %529 = vmatpush.msra.mxu0 %v519
    %530 = vmatpush.msra.mxu0 %v516
    %531 = vmatpush.msra.mxu0 %v513
    %532 = vmatpush.msra.mxu0 %v510
    %533 = vmatpush.msra.mxu0 %v507
    %534 = vmatpush.msra.mxu0 %v504
    %535 = vmatpush.msra.mxu0 %v501
    %536 = vmatpush.msra.mxu0 %v498
    %537 = vmatpush.msra.mxu0 %v495
    %538 = vmatpush.msra.mxu0 %v492
    %539 = vmatpush.msra.mxu0 %v489
    %540 = vmatpush.msra.mxu0 %v486
    %541 = vmatpush.msra.mxu0 %v483
    %542 = vmatpush.msra.mxu0 %v480
    %543 = vmatpush.msra.mxu0 %v477
    %544 = vmatpush.msra.mxu0 %v474
    %545 = vmatmul.f32.gmra.mxu0 %v468
    %v546 = vpop.f32.mrf.mxu0
    %v547 = vadd.f32 %v523, %v546
    %548 = vdwg.mxu0
    %549 = vmatpush.msra.mxu0 %v520
    %550 = vmatpush.msra.mxu0 %v517
    %551 = vmatpush.msra.mxu0 %v514
    %552 = vmatpush.msra.mxu0 %v511
    %553 = vmatpush.msra.mxu0 %v508
    %554 = vmatpush.msra.mxu0 %v505
    %555 = vmatpush.msra.mxu0 %v502
    %556 = vmatpush.msra.mxu0 %v499
    %557 = vmatpush.msra.mxu0 %v496
    %558 = vmatpush.msra.mxu0 %v493
    %559 = vmatpush.msra.mxu0 %v490
    %560 = vmatpush.msra.mxu0 %v487
    %561 = vmatpush.msra.mxu0 %v484
    %562 = vmatpush.msra.mxu0 %v481
    %563 = vmatpush.msra.mxu0 %v478
    %564 = vmatpush.msra.mxu0 %v475
    %565 = vmatmul.f32.gmra.mxu0 %v468
    %v566 = vpop.f32.mrf.mxu0
    %v567 = vadd.f32 %v524, %v566
    %568 = vdwg.mxu0
    %569 = vmatpush.msra.mxu0 %v521
    %570 = vmatpush.msra.mxu0 %v518
    %571 = vmatpush.msra.mxu0 %v515
    %572 = vmatpush.msra.mxu0 %v512
    %573 = vmatpush.msra.mxu0 %v509
    %574 = vmatpush.msra.mxu0 %v506
    %575 = vmatpush.msra.mxu0 %v503
    %576 = vmatpush.msra.mxu0 %v500
    %577 = vmatpush.msra.mxu0 %v497
    %578 = vmatpush.msra.mxu0 %v494
    %579 = vmatpush.msra.mxu0 %v491
    %580 = vmatpush.msra.mxu0 %v488
    %581 = vmatpush.msra.mxu0 %v485
    %582 = vmatpush.msra.mxu0 %v482
    %583 = vmatpush.msra.mxu0 %v479
    %584 = vmatpush.msra.mxu0 %v476
    %585 = vmatmul.f32.gmra.mxu0 %v468
    %v586 = vpop.f32.mrf.mxu0
    %v587 = vadd.f32 %v525, %v586
    %588 = vdwg.mxu0
    %v589 = vld [vmem:[#allocation10] sm:$0xff]
    %v590 = vld [vmem:[#allocation10 + $0x8] sm:$0xff]
    %v591 = vld [vmem:[#allocation10 + $0x10] sm:$0xff]
    %v592 = vld [vmem:[#allocation10 + $0x18] sm:$0xff]
    %v593 = vld [vmem:[#allocation10 + $0x20] sm:$0xff]
    %v594 = vld [vmem:[#allocation10 + $0x28] sm:$0xff]
    %v595 = vld [vmem:[#allocation10 + $0x30] sm:$0xff]
    %v596 = vld [vmem:[#allocation10 + $0x38] sm:$0xff]
    %v597 = vld [vmem:[#allocation10 + $0x40] sm:$0xff]
    %v598 = vld [vmem:[#allocation10 + $0x48] sm:$0xff]
    %v599 = vld [vmem:[#allocation10 + $0x50] sm:$0xff]
    %v600 = vld [vmem:[#allocation10 + $0x58] sm:$0xff]
    %v601 = vld [vmem:[#allocation10 + $0x60] sm:$0xff]
    %v602 = vld [vmem:[#allocation10 + $0x68] sm:$0xff]
    %v603 = vld [vmem:[#allocation10 + $0x70] sm:$0xff]
    %v604 = vld [vmem:[#allocation10 + $0x78] sm:$0xff]
    %v605 = vld [vmem:[#allocation10 + $0x80] sm:$0xff]
    %v606 = vld [vmem:[#allocation10 + $0x88] sm:$0xff]
    %v607 = vld [vmem:[#allocation10 + $0x90] sm:$0xff]
    %v608 = vld [vmem:[#allocation10 + $0x98] sm:$0xff]
    %v609 = vld [vmem:[#allocation10 + $0xa0] sm:$0xff]
    %v610 = vld [vmem:[#allocation10 + $0xa8] sm:$0xff]
    %v611 = vld [vmem:[#allocation10 + $0xb0] sm:$0xff]
    %v612 = vld [vmem:[#allocation10 + $0xb8] sm:$0xff]
    %v613 = vld [vmem:[#allocation10 + $0xc0] sm:$0xff]
    %v614 = vld [vmem:[#allocation10 + $0xc8] sm:$0xff]
    %v615 = vld [vmem:[#allocation10 + $0xd0] sm:$0xff]
    %v616 = vld [vmem:[#allocation10 + $0xd8] sm:$0xff]
    %v617 = vld [vmem:[#allocation10 + $0xe0] sm:$0xff]
    %v618 = vld [vmem:[#allocation10 + $0xe8] sm:$0xff]
    %v619 = vld [vmem:[#allocation10 + $0xf0] sm:$0xff]
    %v620 = vld [vmem:[#allocation10 + $0xf8] sm:$0xff]
    %v621 = vld [vmem:[#allocation10 + $0x100] sm:$0xff]
    %v622 = vld [vmem:[#allocation10 + $0x108] sm:$0xff]
    %v623 = vld [vmem:[#allocation10 + $0x110] sm:$0xff]
    %v624 = vld [vmem:[#allocation10 + $0x118] sm:$0xff]
    %v625 = vld [vmem:[#allocation10 + $0x120] sm:$0xff]
    %v626 = vld [vmem:[#allocation10 + $0x128] sm:$0xff]
    %v627 = vld [vmem:[#allocation10 + $0x130] sm:$0xff]
    %v628 = vld [vmem:[#allocation10 + $0x138] sm:$0xff]
    %v629 = vld [vmem:[#allocation10 + $0x140] sm:$0xff]
    %v630 = vld [vmem:[#allocation10 + $0x148] sm:$0xff]
    %v631 = vld [vmem:[#allocation10 + $0x150] sm:$0xff]
    %v632 = vld [vmem:[#allocation10 + $0x158] sm:$0xff]
    %v633 = vld [vmem:[#allocation10 + $0x160] sm:$0xff]
    %v634 = vld [vmem:[#allocation10 + $0x168] sm:$0xff]
    %v635 = vld [vmem:[#allocation10 + $0x170] sm:$0xff]
    %v636 = vld [vmem:[#allocation10 + $0x178] sm:$0xff]
    %v637 = vld [vmem:[%s4] sm:$0x7]
    %v639 = vperm.slane %v637, 0
    %v640 = vperm.slane %v637, 1
    %v641 = vperm.slane %v637, 2
    %645 = vmatpush.msra.mxu0 %v634
    %646 = vmatpush.msra.mxu0 %v631
    %647 = vmatpush.msra.mxu0 %v628
    %648 = vmatpush.msra.mxu0 %v625
    %649 = vmatpush.msra.mxu0 %v622
    %650 = vmatpush.msra.mxu0 %v619
    %651 = vmatpush.msra.mxu0 %v616
    %652 = vmatpush.msra.mxu0 %v613
    %653 = vmatpush.msra.mxu0 %v610
    %654 = vmatpush.msra.mxu0 %v607
    %655 = vmatpush.msra.mxu0 %v604
    %656 = vmatpush.msra.mxu0 %v601
    %657 = vmatpush.msra.mxu0 %v598
    %658 = vmatpush.msra.mxu0 %v595
    %659 = vmatpush.msra.mxu0 %v592
    %660 = vmatpush.msra.mxu0 %v589
    %661 = vmatmul.f32.gmra.mxu0 %v388
    %v662 = vpop.f32.mrf.mxu0
    %v663 = vadd.f32 %v639, %v662
    %664 = vdwg.mxu0
    %665 = vmatpush.msra.mxu0 %v635
    %666 = vmatpush.msra.mxu0 %v632
    %667 = vmatpush.msra.mxu0 %v629
    %668 = vmatpush.msra.mxu0 %v626
    %669 = vmatpush.msra.mxu0 %v623
    %670 = vmatpush.msra.mxu0 %v620
    %671 = vmatpush.msra.mxu0 %v617
    %672 = vmatpush.msra.mxu0 %v614
    %673 = vmatpush.msra.mxu0 %v611
    %674 = vmatpush.msra.mxu0 %v608
    %675 = vmatpush.msra.mxu0 %v605
    %676 = vmatpush.msra.mxu0 %v602
    %677 = vmatpush.msra.mxu0 %v599
    %678 = vmatpush.msra.mxu0 %v596
    %679 = vmatpush.msra.mxu0 %v593
    %680 = vmatpush.msra.mxu0 %v590
    %681 = vmatmul.f32.gmra.mxu0 %v388
    %v682 = vpop.f32.mrf.mxu0
    %v683 = vadd.f32 %v640, %v682
    %684 = vdwg.mxu0
    %685 = vmatpush.msra.mxu0 %v636
    %686 = vmatpush.msra.mxu0 %v633
    %687 = vmatpush.msra.mxu0 %v630
    %688 = vmatpush.msra.mxu0 %v627
    %689 = vmatpush.msra.mxu0 %v624
    %690 = vmatpush.msra.mxu0 %v621
    %691 = vmatpush.msra.mxu0 %v618
    %692 = vmatpush.msra.mxu0 %v615
    %693 = vmatpush.msra.mxu0 %v612
    %694 = vmatpush.msra.mxu0 %v609
    %695 = vmatpush.msra.mxu0 %v606
    %696 = vmatpush.msra.mxu0 %v603
    %697 = vmatpush.msra.mxu0 %v600
    %698 = vmatpush.msra.mxu0 %v597
    %699 = vmatpush.msra.mxu0 %v594
    %700 = vmatpush.msra.mxu0 %v591
    %701 = vmatmul.f32.gmra.mxu0 %v388
    %v702 = vpop.f32.mrf.mxu0
    %v703 = vadd.f32 %v641, %v702
    %704 = vdwg.mxu0
    %v705 = vadd.f32 %v547, %v663
    %v706 = vmul.f32 %v705, 0.5
    %v707 = vtanh.pop %v706
    %v708 = vadd.f32 %v707, 1.0
    %v709 = vmul.f32 %v708, 0.5
    %v710 = vadd.f32 %v567, %v683
    %v711 = vmul.f32 %v710, 0.5
    %v712 = vtanh.pop %v711
    %v713 = vadd.f32 %v712, 1.0
    %v714 = vmul.f32 %v713, 0.5
    %v715 = vmul.f32 %v709, %v703
    %v716 = vadd.f32 %v587, %v715
    %v717 = vtanh.pop %v716
    %v718 = vsub.f32 1.0, %v714
    %v719 = vmul.f32 %v718, %v717
    %v720 = vmul.f32 %v714, %v388
    %v721 = vadd.f32 %v719, %v720
    %v722 = vld [vmem:[#allocation12] sm:$0xff]
    %v723 = vld [vmem:[#allocation12 + $0x8] sm:$0xff]
    %v724 = vld [vmem:[#allocation12 + $0x10] sm:$0xff]
    %v725 = vld [vmem:[#allocation12 + $0x18] sm:$0xff]
    %v726 = vld [vmem:[#allocation12 + $0x20] sm:$0xff]
    %v727 = vld [vmem:[#allocation12 + $0x28] sm:$0xff]
    %v728 = vld [vmem:[#allocation12 + $0x30] sm:$0xff]
    %v729 = vld [vmem:[#allocation12 + $0x38] sm:$0xff]
    %v730 = vld [vmem:[#allocation12 + $0x40] sm:$0xff]
    %v731 = vld [vmem:[#allocation12 + $0x48] sm:$0xff]
    %v732 = vld [vmem:[#allocation12 + $0x50] sm:$0xff]
    %v733 = vld [vmem:[#allocation12 + $0x58] sm:$0xff]
    %v734 = vld [vmem:[#allocation12 + $0x60] sm:$0xff]
    %v735 = vld [vmem:[#allocation12 + $0x68] sm:$0xff]
    %v736 = vld [vmem:[#allocation12 + $0x70] sm:$0xff]
    %v737 = vld [vmem:[#allocation12 + $0x78] sm:$0xff]
    %v738 = vld [vmem:[%s6] sm:$0x1]
    %v740 = vperm.slane %v738, 0
    %742 = vmatpush.msra.mxu0 %v737
    %743 = vmatpush.msra.mxu0 %v736
    %744 = vmatpush.msra.mxu0 %v735
    %745 = vmatpush.msra.mxu0 %v734
    %746 = vmatpush.msra.mxu0 %v733
    %747 = vmatpush.msra.mxu0 %v732
    %748 = vmatpush.msra.mxu0 %v731
    %749 = vmatpush.msra.mxu0 %v730
    %750 = vmatpush.msra.mxu0 %v729
    %751 = vmatpush.msra.mxu0 %v728
    %752 = vmatpush.msra.mxu0 %v727
    %753 = vmatpush.msra.mxu0 %v726
    %754 = vmatpush.msra.mxu0 %v725
    %755 = vmatpush.msra.mxu0 %v724
    %756 = vmatpush.msra.mxu0 %v723
    %757 = vmatpush.msra.mxu0 %v722
    %758 = vmatmul.f32.gmra.mxu0 %v721
    %v759 = vpop.f32.mrf.mxu0
    %v760 = vadd.f32 %v740, %v759
    %761 = vdwg.mxu0
    %v762 = vtanh.pop %v760
    %v763 = vld [vmem:[#allocation13] sm:$0xff]
    %v764 = vld [vmem:[#allocation13 + $0x8] sm:$0xff]
    %v765 = vld [vmem:[#allocation13 + $0x10] sm:$0xff]
    %v766 = vld [vmem:[#allocation13 + $0x18] sm:$0xff]
    %v767 = vld [vmem:[#allocation13 + $0x20] sm:$0xff]
    %v768 = vld [vmem:[#allocation13 + $0x28] sm:$0xff]
    %v769 = vld [vmem:[#allocation13 + $0x30] sm:$0xff]
    %v770 = vld [vmem:[#allocation13 + $0x38] sm:$0xff]
    %v771 = vld [vmem:[#allocation13 + $0x40] sm:$0xff]
    %v772 = vld [vmem:[#allocation13 + $0x48] sm:$0xff]
    %v773 = vld [vmem:[#allocation13 + $0x50] sm:$0xff]
    %v774 = vld [vmem:[#allocation13 + $0x58] sm:$0xff]
    %v775 = vld [vmem:[#allocation13 + $0x60] sm:$0xff]
    %v776 = vld [vmem:[#allocation13 + $0x68] sm:$0xff]
    %v777 = vld [vmem:[#allocation13 + $0x70] sm:$0xff]
    %v778 = vld [vmem:[#allocation13 + $0x78] sm:$0xff]
    %v779 = vld [vmem:[%s8] sm:$0x1]
    %v781 = vperm.slane %v779, 0
    %783 = vmatpush.msra.mxu0 %v778
    %784 = vmatpush.msra.mxu0 %v777
    %785 = vmatpush.msra.mxu0 %v776
    %786 = vmatpush.msra.mxu0 %v775
    %787 = vmatpush.msra.mxu0 %v774
    %788 = vmatpush.msra.mxu0 %v773
    %789 = vmatpush.msra.mxu0 %v772
    %790 = vmatpush.msra.mxu0 %v771
    %791 = vmatpush.msra.mxu0 %v770
    %792 = vmatpush.msra.mxu0 %v769
    %793 = vmatpush.msra.mxu0 %v768
    %794 = vmatpush.msra.mxu0 %v767
    %795 = vmatpush.msra.mxu0 %v766
    %796 = vmatpush.msra.mxu0 %v765
    %797 = vmatpush.msra.mxu0 %v764
    %798 = vmatpush.msra.mxu0 %v763
    %799 = vmatmul.f32.gmra.mxu0 %v762
    %v800 = vpop.f32.mrf.mxu0
    %v801 = vadd.f32 %v781, %v800
    %802 = vdwg.mxu0
    %s803 = scalar_lea.vmem [#allocation15], 8
    %804 = vst [vmem:[%s803] sm:$0xff] %v721
    %s805 = scalar_lea.vmem [#allocation16], 8
    %806 = vst [vmem:[%s805] sm:$0xff] %v801
    %s807 = scalar_lea.vmem [#allocation7], 2
    %v808 = vld [vmem:[%s807] ss:$8 sm:$0x7]
    %v809 = vld [vmem:[#allocation9] sm:$0xff]
    %v810 = vld [vmem:[#allocation9 + $0x8] sm:$0xff]
    %v811 = vld [vmem:[#allocation9 + $0x10] sm:$0xff]
    %v812 = vld [vmem:[#allocation9 + $0x18] sm:$0xff]
    %v813 = vld [vmem:[#allocation9 + $0x20] sm:$0xff]
    %v814 = vld [vmem:[#allocation9 + $0x28] sm:$0xff]
    %v815 = vld [vmem:[#allocation9 + $0x30] sm:$0xff]
    %v816 = vld [vmem:[#allocation9 + $0x38] sm:$0xff]
    %v817 = vld [vmem:[#allocation9 + $0x40] sm:$0xff]
    %v818 = vld [vmem:[#allocation9 + $0x48] sm:$0xff]
    %v819 = vld [vmem:[#allocation9 + $0x50] sm:$0xff]
    %v820 = vld [vmem:[#allocation9 + $0x58] sm:$0xff]
    %v821 = vld [vmem:[#allocation9 + $0x60] sm:$0xff]
    %v822 = vld [vmem:[#allocation9 + $0x68] sm:$0xff]
    %v823 = vld [vmem:[#allocation9 + $0x70] sm:$0xff]
    %v824 = vld [vmem:[#allocation9 + $0x78] sm:$0xff]
    %v825 = vld [vmem:[#allocation9 + $0x80] sm:$0xff]
    %v826 = vld [vmem:[#allocation9 + $0x88] sm:$0xff]
    %v827 = vld [vmem:[#allocation9 + $0x90] sm:$0xff]
    %v828 = vld [vmem:[#allocation9 + $0x98] sm:$0xff]
    %v829 = vld [vmem:[#allocation9 + $0xa0] sm:$0xff]
    %v830 = vld [vmem:[#allocation9 + $0xa8] sm:$0xff]
    %v831 = vld [vmem:[#allocation9 + $0xb0] sm:$0xff]
    %v832 = vld [vmem:[#allocation9 + $0xb8] sm:$0xff]
    %v833 = vld [vmem:[#allocation9 + $0xc0] sm:$0xff]
    %v834 = vld [vmem:[#allocation9 + $0xc8] sm:$0xff]
    %v835 = vld [vmem:[#allocation9 + $0xd0] sm:$0xff]
    %v836 = vld [vmem:[#allocation9 + $0xd8] sm:$0xff]
    %v837 = vld [vmem:[#allocation9 + $0xe0] sm:$0xff]
    %v838 = vld [vmem:[#allocation9 + $0xe8] sm:$0xff]
    %v839 = vld [vmem:[#allocation9 + $0xf0] sm:$0xff]
    %v840 = vld [vmem:[#allocation9 + $0xf8] sm:$0xff]
    %v841 = vld [vmem:[#allocation9 + $0x100] sm:$0xff]
    %v842 = vld [vmem:[#allocation9 + $0x108] sm:$0xff]
    %v843 = vld [vmem:[#allocation9 + $0x110] sm:$0xff]
    %v844 = vld [vmem:[#allocation9 + $0x118] sm:$0xff]
    %v845 = vld [vmem:[#allocation9 + $0x120] sm:$0xff]
    %v846 = vld [vmem:[#allocation9 + $0x128] sm:$0xff]
    %v847 = vld [vmem:[#allocation9 + $0x130] sm:$0xff]
    %v848 = vld [vmem:[#allocation9 + $0x138] sm:$0xff]
    %v849 = vld [vmem:[#allocation9 + $0x140] sm:$0xff]
    %v850 = vld [vmem:[#allocation9 + $0x148] sm:$0xff]
    %v851 = vld [vmem:[#allocation9 + $0x150] sm:$0xff]
    %v852 = vld [vmem:[#allocation9 + $0x158] sm:$0xff]
    %v853 = vld [vmem:[#allocation9 + $0x160] sm:$0xff]
    %v854 = vld [vmem:[#allocation9 + $0x168] sm:$0xff]
    %v855 = vld [vmem:[#allocation9 + $0x170] sm:$0xff]
    %v856 = vld [vmem:[#allocation9 + $0x178] sm:$0xff]
    %v858 = vperm.slane %v808, 0
    %v859 = vperm.slane %v808, 1
    %v860 = vperm.slane %v808, 2
    %864 = vmatpush.msra.mxu0 %v854
    %865 = vmatpush.msra.mxu0 %v851
    %866 = vmatpush.msra.mxu0 %v848
    %867 = vmatpush.msra.mxu0 %v845
    %868 = vmatpush.msra.mxu0 %v842
    %869 = vmatpush.msra.mxu0 %v839
    %870 = vmatpush.msra.mxu0 %v836
    %871 = vmatpush.msra.mxu0 %v833
    %872 = vmatpush.msra.mxu0 %v830
    %873 = vmatpush.msra.mxu0 %v827
    %874 = vmatpush.msra.mxu0 %v824
    %875 = vmatpush.msra.mxu0 %v821
    %876 = vmatpush.msra.mxu0 %v818
    %877 = vmatpush.msra.mxu0 %v815
    %878 = vmatpush.msra.mxu0 %v812
    %879 = vmatpush.msra.mxu0 %v809
    %880 = vmatmul.f32.gmra.mxu0 %v801
    %v881 = vpop.f32.mrf.mxu0
    %v882 = vadd.f32 %v858, %v881
    %883 = vdwg.mxu0
    %884 = vmatpush.msra.mxu0 %v855
    %885 = vmatpush.msra.mxu0 %v852
    %886 = vmatpush.msra.mxu0 %v849
    %887 = vmatpush.msra.mxu0 %v846
    %888 = vmatpush.msra.mxu0 %v843
    %889 = vmatpush.msra.mxu0 %v840
    %890 = vmatpush.msra.mxu0 %v837
    %891 = vmatpush.msra.mxu0 %v834
    %892 = vmatpush.msra.mxu0 %v831
    %893 = vmatpush.msra.mxu0 %v828
    %894 = vmatpush.msra.mxu0 %v825
    %895 = vmatpush.msra.mxu0 %v822
    %896 = vmatpush.msra.mxu0 %v819
    %897 = vmatpush.msra.mxu0 %v816
    %898 = vmatpush.msra.mxu0 %v813
    %899 = vmatpush.msra.mxu0 %v810
    %900 = vmatmul.f32.gmra.mxu0 %v801
    %v901 = vpop.f32.mrf.mxu0
    %v902 = vadd.f32 %v859, %v901
    %903 = vdwg.mxu0
    %904 = vmatpush.msra.mxu0 %v856
    %905 = vmatpush.msra.mxu0 %v853
    %906 = vmatpush.msra.mxu0 %v850
    %907 = vmatpush.msra.mxu0 %v847
    %908 = vmatpush.msra.mxu0 %v844
    %909 = vmatpush.msra.mxu0 %v841
    %910 = vmatpush.msra.mxu0 %v838
    %911 = vmatpush.msra.mxu0 %v835
    %912 = vmatpush.msra.mxu0 %v832
    %913 = vmatpush.msra.mxu0 %v829
    %914 = vmatpush.msra.mxu0 %v826
    %915 = vmatpush.msra.mxu0 %v823
    %916 = vmatpush.msra.mxu0 %v820
    %917 = vmatpush.msra.mxu0 %v817
    %918 = vmatpush.msra.mxu0 %v814
    %919 = vmatpush.msra.mxu0 %v811
    %920 = vmatmul.f32.gmra.mxu0 %v801
    %v921 = vpop.f32.mrf.mxu0
    %v922 = vadd.f32 %v860, %v921
    %923 = vdwg.mxu0
    %v924 = vld [vmem:[#allocation10] sm:$0xff]
    %v925 = vld [vmem:[#allocation10 + $0x8] sm:$0xff]
    %v926 = vld [vmem:[#allocation10 + $0x10] sm:$0xff]
    %v927 = vld [vmem:[#allocation10 + $0x18] sm:$0xff]
    %v928 = vld [vmem:[#allocation10 + $0x20] sm:$0xff]
    %v929 = vld [vmem:[#allocation10 + $0x28] sm:$0xff]
    %v930 = vld [vmem:[#allocation10 + $0x30] sm:$0xff]
    %v931 = vld [vmem:[#allocation10 + $0x38] sm:$0xff]
    %v932 = vld [vmem:[#allocation10 + $0x40] sm:$0xff]
    %v933 = vld [vmem:[#allocation10 + $0x48] sm:$0xff]
    %v934 = vld [vmem:[#allocation10 + $0x50] sm:$0xff]
    %v935 = vld [vmem:[#allocation10 + $0x58] sm:$0xff]
    %v936 = vld [vmem:[#allocation10 + $0x60] sm:$0xff]
    %v937 = vld [vmem:[#allocation10 + $0x68] sm:$0xff]
    %v938 = vld [vmem:[#allocation10 + $0x70] sm:$0xff]
    %v939 = vld [vmem:[#allocation10 + $0x78] sm:$0xff]
    %v940 = vld [vmem:[#allocation10 + $0x80] sm:$0xff]
    %v941 = vld [vmem:[#allocation10 + $0x88] sm:$0xff]
    %v942 = vld [vmem:[#allocation10 + $0x90] sm:$0xff]
    %v943 = vld [vmem:[#allocation10 + $0x98] sm:$0xff]
    %v944 = vld [vmem:[#allocation10 + $0xa0] sm:$0xff]
    %v945 = vld [vmem:[#allocation10 + $0xa8] sm:$0xff]
    %v946 = vld [vmem:[#allocation10 + $0xb0] sm:$0xff]
    %v947 = vld [vmem:[#allocation10 + $0xb8] sm:$0xff]
    %v948 = vld [vmem:[#allocation10 + $0xc0] sm:$0xff]
    %v949 = vld [vmem:[#allocation10 + $0xc8] sm:$0xff]
    %v950 = vld [vmem:[#allocation10 + $0xd0] sm:$0xff]
    %v951 = vld [vmem:[#allocation10 + $0xd8] sm:$0xff]
    %v952 = vld [vmem:[#allocation10 + $0xe0] sm:$0xff]
    %v953 = vld [vmem:[#allocation10 + $0xe8] sm:$0xff]
    %v954 = vld [vmem:[#allocation10 + $0xf0] sm:$0xff]
    %v955 = vld [vmem:[#allocation10 + $0xf8] sm:$0xff]
    %v956 = vld [vmem:[#allocation10 + $0x100] sm:$0xff]
    %v957 = vld [vmem:[#allocation10 + $0x108] sm:$0xff]
    %v958 = vld [vmem:[#allocation10 + $0x110] sm:$0xff]
    %v959 = vld [vmem:[#allocation10 + $0x118] sm:$0xff]
    %v960 = vld [vmem:[#allocation10 + $0x120] sm:$0xff]
    %v961 = vld [vmem:[#allocation10 + $0x128] sm:$0xff]
    %v962 = vld [vmem:[#allocation10 + $0x130] sm:$0xff]
    %v963 = vld [vmem:[#allocation10 + $0x138] sm:$0xff]
    %v964 = vld [vmem:[#allocation10 + $0x140] sm:$0xff]
    %v965 = vld [vmem:[#allocation10 + $0x148] sm:$0xff]
    %v966 = vld [vmem:[#allocation10 + $0x150] sm:$0xff]
    %v967 = vld [vmem:[#allocation10 + $0x158] sm:$0xff]
    %v968 = vld [vmem:[#allocation10 + $0x160] sm:$0xff]
    %v969 = vld [vmem:[#allocation10 + $0x168] sm:$0xff]
    %v970 = vld [vmem:[#allocation10 + $0x170] sm:$0xff]
    %v971 = vld [vmem:[#allocation10 + $0x178] sm:$0xff]
    %v972 = vld [vmem:[%s4] sm:$0x7]
    %v974 = vperm.slane %v972, 0
    %v975 = vperm.slane %v972, 1
    %v976 = vperm.slane %v972, 2
    %980 = vmatpush.msra.mxu0 %v969
    %981 = vmatpush.msra.mxu0 %v966
    %982 = vmatpush.msra.mxu0 %v963
    %983 = vmatpush.msra.mxu0 %v960
    %984 = vmatpush.msra.mxu0 %v957
    %985 = vmatpush.msra.mxu0 %v954
    %986 = vmatpush.msra.mxu0 %v951
    %987 = vmatpush.msra.mxu0 %v948
    %988 = vmatpush.msra.mxu0 %v945
    %989 = vmatpush.msra.mxu0 %v942
    %990 = vmatpush.msra.mxu0 %v939
    %991 = vmatpush.msra.mxu0 %v936
    %992 = vmatpush.msra.mxu0 %v933
    %993 = vmatpush.msra.mxu0 %v930
    %994 = vmatpush.msra.mxu0 %v927
    %995 = vmatpush.msra.mxu0 %v924
    %996 = vmatmul.f32.gmra.mxu0 %v721
    %v997 = vpop.f32.mrf.mxu0
    %v998 = vadd.f32 %v974, %v997
    %999 = vdwg.mxu0
    %1000 = vmatpush.msra.mxu0 %v970
    %1001 = vmatpush.msra.mxu0 %v967
    %1002 = vmatpush.msra.mxu0 %v964
    %1003 = vmatpush.msra.mxu0 %v961
    %1004 = vmatpush.msra.mxu0 %v958
    %1005 = vmatpush.msra.mxu0 %v955
    %1006 = vmatpush.msra.mxu0 %v952
    %1007 = vmatpush.msra.mxu0 %v949
    %1008 = vmatpush.msra.mxu0 %v946
    %1009 = vmatpush.msra.mxu0 %v943
    %1010 = vmatpush.msra.mxu0 %v940
    %1011 = vmatpush.msra.mxu0 %v937
    %1012 = vmatpush.msra.mxu0 %v934
    %1013 = vmatpush.msra.mxu0 %v931
    %1014 = vmatpush.msra.mxu0 %v928
    %1015 = vmatpush.msra.mxu0 %v925
    %1016 = vmatmul.f32.gmra.mxu0 %v721
    %v1017 = vpop.f32.mrf.mxu0
    %v1018 = vadd.f32 %v975, %v1017
    %1019 = vdwg.mxu0
    %1020 = vmatpush.msra.mxu0 %v971
    %1021 = vmatpush.msra.mxu0 %v968
    %1022 = vmatpush.msra.mxu0 %v965
    %1023 = vmatpush.msra.mxu0 %v962
    %1024 = vmatpush.msra.mxu0 %v959
    %1025 = vmatpush.msra.mxu0 %v956
    %1026 = vmatpush.msra.mxu0 %v953
    %1027 = vmatpush.msra.mxu0 %v950
    %1028 = vmatpush.msra.mxu0 %v947
    %1029 = vmatpush.msra.mxu0 %v944
    %1030 = vmatpush.msra.mxu0 %v941
    %1031 = vmatpush.msra.mxu0 %v938
    %1032 = vmatpush.msra.mxu0 %v935
    %1033 = vmatpush.msra.mxu0 %v932
    %1034 = vmatpush.msra.mxu0 %v929
    %1035 = vmatpush.msra.mxu0 %v926
    %1036 = vmatmul.f32.gmra.mxu0 %v721
    %v1037 = vpop.f32.mrf.mxu0
    %v1038 = vadd.f32 %v976, %v1037
    %1039 = vdwg.mxu0
    %v1040 = vadd.f32 %v882, %v998
    %v1041 = vmul.f32 %v1040, 0.5
    %v1042 = vtanh.pop %v1041
    %v1043 = vadd.f32 %v1042, 1.0
    %v1044 = vmul.f32 %v1043, 0.5
    %v1045 = vadd.f32 %v902, %v1018
    %v1046 = vmul.f32 %v1045, 0.5
    %v1047 = vtanh.pop %v1046
    %v1048 = vadd.f32 %v1047, 1.0
    %v1049 = vmul.f32 %v1048, 0.5
    %v1050 = vmul.f32 %v1044, %v1038
    %v1051 = vadd.f32 %v922, %v1050
    %v1052 = vtanh.pop %v1051
    %v1053 = vsub.f32 1.0, %v1049
    %v1054 = vmul.f32 %v1053, %v1052
    %v1055 = vmul.f32 %v1049, %v721
    %v1056 = vadd.f32 %v1054, %v1055
    %v1057 = vld [vmem:[#allocation12] sm:$0xff]
    %v1058 = vld [vmem:[#allocation12 + $0x8] sm:$0xff]
    %v1059 = vld [vmem:[#allocation12 + $0x10] sm:$0xff]
    %v1060 = vld [vmem:[#allocation12 + $0x18] sm:$0xff]
    %v1061 = vld [vmem:[#allocation12 + $0x20] sm:$0xff]
    %v1062 = vld [vmem:[#allocation12 + $0x28] sm:$0xff]
    %v1063 = vld [vmem:[#allocation12 + $0x30] sm:$0xff]
    %v1064 = vld [vmem:[#allocation12 + $0x38] sm:$0xff]
    %v1065 = vld [vmem:[#allocation12 + $0x40] sm:$0xff]
    %v1066 = vld [vmem:[#allocation12 + $0x48] sm:$0xff]
    %v1067 = vld [vmem:[#allocation12 + $0x50] sm:$0xff]
    %v1068 = vld [vmem:[#allocation12 + $0x58] sm:$0xff]
    %v1069 = vld [vmem:[#allocation12 + $0x60] sm:$0xff]
    %v1070 = vld [vmem:[#allocation12 + $0x68] sm:$0xff]
    %v1071 = vld [vmem:[#allocation12 + $0x70] sm:$0xff]
    %v1072 = vld [vmem:[#allocation12 + $0x78] sm:$0xff]
    %v1073 = vld [vmem:[%s6] sm:$0x1]
    %v1075 = vperm.slane %v1073, 0
    %1077 = vmatpush.msra.mxu0 %v1072
    %1078 = vmatpush.msra.mxu0 %v1071
    %1079 = vmatpush.msra.mxu0 %v1070
    %1080 = vmatpush.msra.mxu0 %v1069
    %1081 = vmatpush.msra.mxu0 %v1068
    %1082 = vmatpush.msra.mxu0 %v1067
    %1083 = vmatpush.msra.mxu0 %v1066
    %1084 = vmatpush.msra.mxu0 %v1065
    %1085 = vmatpush.msra.mxu0 %v1064
    %1086 = vmatpush.msra.mxu0 %v1063
    %1087 = vmatpush.msra.mxu0 %v1062
    %1088 = vmatpush.msra.mxu0 %v1061
    %1089 = vmatpush.msra.mxu0 %v1060
    %1090 = vmatpush.msra.mxu0 %v1059
    %1091 = vmatpush.msra.mxu0 %v1058
    %1092 = vmatpush.msra.mxu0 %v1057
    %1093 = vmatmul.f32.gmra.mxu0 %v1056
    %v1094 = vpop.f32.mrf.mxu0
    %v1095 = vadd.f32 %v1075, %v1094
    %1096 = vdwg.mxu0
    %v1097 = vtanh.pop %v1095
    %v1098 = vld [vmem:[#allocation13] sm:$0xff]
    %v1099 = vld [vmem:[#allocation13 + $0x8] sm:$0xff]
    %v1100 = vld [vmem:[#allocation13 + $0x10] sm:$0xff]
    %v1101 = vld [vmem:[#allocation13 + $0x18] sm:$0xff]
    %v1102 = vld [vmem:[#allocation13 + $0x20] sm:$0xff]
    %v1103 = vld [vmem:[#allocation13 + $0x28] sm:$0xff]
    %v1104 = vld [vmem:[#allocation13 + $0x30] sm:$0xff]
    %v1105 = vld [vmem:[#allocation13 + $0x38] sm:$0xff]
    %v1106 = vld [vmem:[#allocation13 + $0x40] sm:$0xff]
    %v1107 = vld [vmem:[#allocation13 + $0x48] sm:$0xff]
    %v1108 = vld [vmem:[#allocation13 + $0x50] sm:$0xff]
    %v1109 = vld [vmem:[#allocation13 + $0x58] sm:$0xff]
    %v1110 = vld [vmem:[#allocation13 + $0x60] sm:$0xff]
    %v1111 = vld [vmem:[#allocation13 + $0x68] sm:$0xff]
    %v1112 = vld [vmem:[#allocation13 + $0x70] sm:$0xff]
    %v1113 = vld [vmem:[#allocation13 + $0x78] sm:$0xff]
    %v1114 = vld [vmem:[%s8] sm:$0x1]
    %v1116 = vperm.slane %v1114, 0
    %1118 = vmatpush.msra.mxu0 %v1113
    %1119 = vmatpush.msra.mxu0 %v1112
    %1120 = vmatpush.msra.mxu0 %v1111
    %1121 = vmatpush.msra.mxu0 %v1110
    %1122 = vmatpush.msra.mxu0 %v1109
    %1123 = vmatpush.msra.mxu0 %v1108
    %1124 = vmatpush.msra.mxu0 %v1107
    %1125 = vmatpush.msra.mxu0 %v1106
    %1126 = vmatpush.msra.mxu0 %v1105
    %1127 = vmatpush.msra.mxu0 %v1104
    %1128 = vmatpush.msra.mxu0 %v1103
    %1129 = vmatpush.msra.mxu0 %v1102
    %1130 = vmatpush.msra.mxu0 %v1101
    %1131 = vmatpush.msra.mxu0 %v1100
    %1132 = vmatpush.msra.mxu0 %v1099
    %1133 = vmatpush.msra.mxu0 %v1098
    %1134 = vmatmul.f32.gmra.mxu0 %v1097
    %v1135 = vpop.f32.mrf.mxu0
    %v1136 = vadd.f32 %v1116, %v1135
    %1137 = vdwg.mxu0
    %s1138 = scalar_lea.vmem [#allocation15], 16
    %1139 = vst [vmem:[%s1138] sm:$0xff] %v1056
    %s1140 = scalar_lea.vmem [#allocation16], 16
    %1141 = vst [vmem:[%s1140] sm:$0xff] %v1136
    %s1142 = scalar_lea.vmem [#allocation7], 3
    %v1143 = vld [vmem:[%s1142] ss:$8 sm:$0x7]
    %v1144 = vld [vmem:[#allocation9] sm:$0xff]
    %v1145 = vld [vmem:[#allocation9 + $0x8] sm:$0xff]
    %v1146 = vld [vmem:[#allocation9 + $0x10] sm:$0xff]
    %v1147 = vld [vmem:[#allocation9 + $0x18] sm:$0xff]
    %v1148 = vld [vmem:[#allocation9 + $0x20] sm:$0xff]
    %v1149 = vld [vmem:[#allocation9 + $0x28] sm:$0xff]
    %v1150 = vld [vmem:[#allocation9 + $0x30] sm:$0xff]
    %v1151 = vld [vmem:[#allocation9 + $0x38] sm:$0xff]
    %v1152 = vld [vmem:[#allocation9 + $0x40] sm:$0xff]
    %v1153 = vld [vmem:[#allocation9 + $0x48] sm:$0xff]
    %v1154 = vld [vmem:[#allocation9 + $0x50] sm:$0xff]
    %v1155 = vld [vmem:[#allocation9 + $0x58] sm:$0xff]
    %v1156 = vld [vmem:[#allocation9 + $0x60] sm:$0xff]
    %v1157 = vld [vmem:[#allocation9 + $0x68] sm:$0xff]
    %v1158 = vld [vmem:[#allocation9 + $0x70] sm:$0xff]
    %v1159 = vld [vmem:[#allocation9 + $0x78] sm:$0xff]
    %v1160 = vld [vmem:[#allocation9 + $0x80] sm:$0xff]
    %v1161 = vld [vmem:[#allocation9 + $0x88] sm:$0xff]
    %v1162 = vld [vmem:[#allocation9 + $0x90] sm:$0xff]
    %v1163 = vld [vmem:[#allocation9 + $0x98] sm:$0xff]
    %v1164 = vld [vmem:[#allocation9 + $0xa0] sm:$0xff]
    %v1165 = vld [vmem:[#allocation9 + $0xa8] sm:$0xff]
    %v1166 = vld [vmem:[#allocation9 + $0xb0] sm:$0xff]
    %v1167 = vld [vmem:[#allocation9 + $0xb8] sm:$0xff]
    %v1168 = vld [vmem:[#allocation9 + $0xc0] sm:$0xff]
    %v1169 = vld [vmem:[#allocation9 + $0xc8] sm:$0xff]
    %v1170 = vld [vmem:[#allocation9 + $0xd0] sm:$0xff]
    %v1171 = vld [vmem:[#allocation9 + $0xd8] sm:$0xff]
    %v1172 = vld [vmem:[#allocation9 + $0xe0] sm:$0xff]
    %v1173 = vld [vmem:[#allocation9 + $0xe8] sm:$0xff]
    %v1174 = vld [vmem:[#allocation9 + $0xf0] sm:$0xff]
    %v1175 = vld [vmem:[#allocation9 + $0xf8] sm:$0xff]
    %v1176 = vld [vmem:[#allocation9 + $0x100] sm:$0xff]
    %v1177 = vld [vmem:[#allocation9 + $0x108] sm:$0xff]
    %v1178 = vld [vmem:[#allocation9 + $0x110] sm:$0xff]
    %v1179 = vld [vmem:[#allocation9 + $0x118] sm:$0xff]
    %v1180 = vld [vmem:[#allocation9 + $0x120] sm:$0xff]
    %v1181 = vld [vmem:[#allocation9 + $0x128] sm:$0xff]
    %v1182 = vld [vmem:[#allocation9 + $0x130] sm:$0xff]
    %v1183 = vld [vmem:[#allocation9 + $0x138] sm:$0xff]
    %v1184 = vld [vmem:[#allocation9 + $0x140] sm:$0xff]
    %v1185 = vld [vmem:[#allocation9 + $0x148] sm:$0xff]
    %v1186 = vld [vmem:[#allocation9 + $0x150] sm:$0xff]
    %v1187 = vld [vmem:[#allocation9 + $0x158] sm:$0xff]
    %v1188 = vld [vmem:[#allocation9 + $0x160] sm:$0xff]
    %v1189 = vld [vmem:[#allocation9 + $0x168] sm:$0xff]
    %v1190 = vld [vmem:[#allocation9 + $0x170] sm:$0xff]
    %v1191 = vld [vmem:[#allocation9 + $0x178] sm:$0xff]
    %v1193 = vperm.slane %v1143, 0
    %v1194 = vperm.slane %v1143, 1
    %v1195 = vperm.slane %v1143, 2
    %1199 = vmatpush.msra.mxu0 %v1189
    %1200 = vmatpush.msra.mxu0 %v1186
    %1201 = vmatpush.msra.mxu0 %v1183
    %1202 = vmatpush.msra.mxu0 %v1180
    %1203 = vmatpush.msra.mxu0 %v1177
    %1204 = vmatpush.msra.mxu0 %v1174
    %1205 = vmatpush.msra.mxu0 %v1171
    %1206 = vmatpush.msra.mxu0 %v1168
    %1207 = vmatpush.msra.mxu0 %v1165
    %1208 = vmatpush.msra.mxu0 %v1162
    %1209 = vmatpush.msra.mxu0 %v1159
    %1210 = vmatpush.msra.mxu0 %v1156
    %1211 = vmatpush.msra.mxu0 %v1153
    %1212 = vmatpush.msra.mxu0 %v1150
    %1213 = vmatpush.msra.mxu0 %v1147
    %1214 = vmatpush.msra.mxu0 %v1144
    %1215 = vmatmul.f32.gmra.mxu0 %v1136
    %v1216 = vpop.f32.mrf.mxu0
    %v1217 = vadd.f32 %v1193, %v1216
    %1218 = vdwg.mxu0
    %1219 = vmatpush.msra.mxu0 %v1190
    %1220 = vmatpush.msra.mxu0 %v1187
    %1221 = vmatpush.msra.mxu0 %v1184
    %1222 = vmatpush.msra.mxu0 %v1181
    %1223 = vmatpush.msra.mxu0 %v1178
    %1224 = vmatpush.msra.mxu0 %v1175
    %1225 = vmatpush.msra.mxu0 %v1172
    %1226 = vmatpush.msra.mxu0 %v1169
    %1227 = vmatpush.msra.mxu0 %v1166
    %1228 = vmatpush.msra.mxu0 %v1163
    %1229 = vmatpush.msra.mxu0 %v1160
    %1230 = vmatpush.msra.mxu0 %v1157
    %1231 = vmatpush.msra.mxu0 %v1154
    %1232 = vmatpush.msra.mxu0 %v1151
    %1233 = vmatpush.msra.mxu0 %v1148
    %1234 = vmatpush.msra.mxu0 %v1145
    %1235 = vmatmul.f32.gmra.mxu0 %v1136
    %v1236 = vpop.f32.mrf.mxu0
    %v1237 = vadd.f32 %v1194, %v1236
    %1238 = vdwg.mxu0
    %1239 = vmatpush.msra.mxu0 %v1191
    %1240 = vmatpush.msra.mxu0 %v1188
    %1241 = vmatpush.msra.mxu0 %v1185
    %1242 = vmatpush.msra.mxu0 %v1182
    %1243 = vmatpush.msra.mxu0 %v1179
    %1244 = vmatpush.msra.mxu0 %v1176
    %1245 = vmatpush.msra.mxu0 %v1173
    %1246 = vmatpush.msra.mxu0 %v1170
    %1247 = vmatpush.msra.mxu0 %v1167
    %1248 = vmatpush.msra.mxu0 %v1164
    %1249 = vmatpush.msra.mxu0 %v1161
    %1250 = vmatpush.msra.mxu0 %v1158
    %1251 = vmatpush.msra.mxu0 %v1155
    %1252 = vmatpush.msra.mxu0 %v1152
    %1253 = vmatpush.msra.mxu0 %v1149
    %1254 = vmatpush.msra.mxu0 %v1146
    %1255 = vmatmul.f32.gmra.mxu0 %v1136
    %v1256 = vpop.f32.mrf.mxu0
    %v1257 = vadd.f32 %v1195, %v1256
    %1258 = vdwg.mxu0
    %v1259 = vld [vmem:[#allocation10] sm:$0xff]
    %v1260 = vld [vmem:[#allocation10 + $0x8] sm:$0xff]
    %v1261 = vld [vmem:[#allocation10 + $0x10] sm:$0xff]
    %v1262 = vld [vmem:[#allocation10 + $0x18] sm:$0xff]
    %v1263 = vld [vmem:[#allocation10 + $0x20] sm:$0xff]
    %v1264 = vld [vmem:[#allocation10 + $0x28] sm:$0xff]
    %v1265 = vld [vmem:[#allocation10 + $0x30] sm:$0xff]
    %v1266 = vld [vmem:[#allocation10 + $0x38] sm:$0xff]
    %v1267 = vld [vmem:[#allocation10 + $0x40] sm:$0xff]
    %v1268 = vld [vmem:[#allocation10 + $0x48] sm:$0xff]
    %v1269 = vld [vmem:[#allocation10 + $0x50] sm:$0xff]
    %v1270 = vld [vmem:[#allocation10 + $0x58] sm:$0xff]
    %v1271 = vld [vmem:[#allocation10 + $0x60] sm:$0xff]
    %v1272 = vld [vmem:[#allocation10 + $0x68] sm:$0xff]
    %v1273 = vld [vmem:[#allocation10 + $0x70] sm:$0xff]
    %v1274 = vld [vmem:[#allocation10 + $0x78] sm:$0xff]
    %v1275 = vld [vmem:[#allocation10 + $0x80] sm:$0xff]
    %v1276 = vld [vmem:[#allocation10 + $0x88] sm:$0xff]
    %v1277 = vld [vmem:[#allocation10 + $0x90] sm:$0xff]
    %v1278 = vld [vmem:[#allocation10 + $0x98] sm:$0xff]
    %v1279 = vld [vmem:[#allocation10 + $0xa0] sm:$0xff]
    %v1280 = vld [vmem:[#allocation10 + $0xa8] sm:$0xff]
    %v1281 = vld [vmem:[#allocation10 + $0xb0] sm:$0xff]
    %v1282 = vld [vmem:[#allocation10 + $0xb8] sm:$0xff]
    %v1283 = vld [vmem:[#allocation10 + $0xc0] sm:$0xff]
    %v1284 = vld [vmem:[#allocation10 + $0xc8] sm:$0xff]
    %v1285 = vld [vmem:[#allocation10 + $0xd0] sm:$0xff]
    %v1286 = vld [vmem:[#allocation10 + $0xd8] sm:$0xff]
    %v1287 = vld [vmem:[#allocation10 + $0xe0] sm:$0xff]
    %v1288 = vld [vmem:[#allocation10 + $0xe8] sm:$0xff]
    %v1289 = vld [vmem:[#allocation10 + $0xf0] sm:$0xff]
    %v1290 = vld [vmem:[#allocation10 + $0xf8] sm:$0xff]
    %v1291 = vld [vmem:[#allocation10 + $0x100] sm:$0xff]
    %v1292 = vld [vmem:[#allocation10 + $0x108] sm:$0xff]
    %v1293 = vld [vmem:[#allocation10 + $0x110] sm:$0xff]
    %v1294 = vld [vmem:[#allocation10 + $0x118] sm:$0xff]
    %v1295 = vld [vmem:[#allocation10 + $0x120] sm:$0xff]
    %v1296 = vld [vmem:[#allocation10 + $0x128] sm:$0xff]
    %v1297 = vld [vmem:[#allocation10 + $0x130] sm:$0xff]
    %v1298 = vld [vmem:[#allocation10 + $0x138] sm:$0xff]
    %v1299 = vld [vmem:[#allocation10 + $0x140] sm:$0xff]
    %v1300 = vld [vmem:[#allocation10 + $0x148] sm:$0xff]
    %v1301 = vld [vmem:[#allocation10 + $0x150] sm:$0xff]
    %v1302 = vld [vmem:[#allocation10 + $0x158] sm:$0xff]
    %v1303 = vld [vmem:[#allocation10 + $0x160] sm:$0xff]
    %v1304 = vld [vmem:[#allocation10 + $0x168] sm:$0xff]
    %v1305 = vld [vmem:[#allocation10 + $0x170] sm:$0xff]
    %v1306 = vld [vmem:[#allocation10 + $0x178] sm:$0xff]
    %v1307 = vld [vmem:[%s4] sm:$0x7]
    %v1309 = vperm.slane %v1307, 0
    %v1310 = vperm.slane %v1307, 1
    %v1311 = vperm.slane %v1307, 2
    %1315 = vmatpush.msra.mxu0 %v1304
    %1316 = vmatpush.msra.mxu0 %v1301
    %1317 = vmatpush.msra.mxu0 %v1298
    %1318 = vmatpush.msra.mxu0 %v1295
    %1319 = vmatpush.msra.mxu0 %v1292
    %1320 = vmatpush.msra.mxu0 %v1289
    %1321 = vmatpush.msra.mxu0 %v1286
    %1322 = vmatpush.msra.mxu0 %v1283
    %1323 = vmatpush.msra.mxu0 %v1280
    %1324 = vmatpush.msra.mxu0 %v1277
    %1325 = vmatpush.msra.mxu0 %v1274
    %1326 = vmatpush.msra.mxu0 %v1271
    %1327 = vmatpush.msra.mxu0 %v1268
    %1328 = vmatpush.msra.mxu0 %v1265
    %1329 = vmatpush.msra.mxu0 %v1262
    %1330 = vmatpush.msra.mxu0 %v1259
    %1331 = vmatmul.f32.gmra.mxu0 %v1056
    %v1332 = vpop.f32.mrf.mxu0
    %v1333 = vadd.f32 %v1309, %v1332
    %1334 = vdwg.mxu0
    %1335 = vmatpush.msra.mxu0 %v1305
    %1336 = vmatpush.msra.mxu0 %v1302
    %1337 = vmatpush.msra.mxu0 %v1299
    %1338 = vmatpush.msra.mxu0 %v1296
    %1339 = vmatpush.msra.mxu0 %v1293
    %1340 = vmatpush.msra.mxu0 %v1290
    %1341 = vmatpush.msra.mxu0 %v1287
    %1342 = vmatpush.msra.mxu0 %v1284
    %1343 = vmatpush.msra.mxu0 %v1281
    %1344 = vmatpush.msra.mxu0 %v1278
    %1345 = vmatpush.msra.mxu0 %v1275
    %1346 = vmatpush.msra.mxu0 %v1272
    %1347 = vmatpush.msra.mxu0 %v1269
    %1348 = vmatpush.msra.mxu0 %v1266
    %1349 = vmatpush.msra.mxu0 %v1263
    %1350 = vmatpush.msra.mxu0 %v1260
    %1351 = vmatmul.f32.gmra.mxu0 %v1056
    %v1352 = vpop.f32.mrf.mxu0
    %v1353 = vadd.f32 %v1310, %v1352
    %1354 = vdwg.mxu0
    %1355 = vmatpush.msra.mxu0 %v1306
    %1356 = vmatpush.msra.mxu0 %v1303
    %1357 = vmatpush.msra.mxu0 %v1300
    %1358 = vmatpush.msra.mxu0 %v1297
    %1359 = vmatpush.msra.mxu0 %v1294
    %1360 = vmatpush.msra.mxu0 %v1291
    %1361 = vmatpush.msra.mxu0 %v1288
    %1362 = vmatpush.msra.mxu0 %v1285
    %1363 = vmatpush.msra.mxu0 %v1282
    %1364 = vmatpush.msra.mxu0 %v1279
    %1365 = vmatpush.msra.mxu0 %v1276
    %1366 = vmatpush.msra.mxu0 %v1273
    %1367 = vmatpush.msra.mxu0 %v1270
    %1368 = vmatpush.msra.mxu0 %v1267
    %1369 = vmatpush.msra.mxu0 %v1264
    %1370 = vmatpush.msra.mxu0 %v1261
    %1371 = vmatmul.f32.gmra.mxu0 %v1056
    %v1372 = vpop.f32.mrf.mxu0
    %v1373 = vadd.f32 %v1311, %v1372
    %1374 = vdwg.mxu0
    %v1375 = vadd.f32 %v1217, %v1333
    %v1376 = vmul.f32 %v1375, 0.5
    %v1377 = vtanh.pop %v1376
    %v1378 = vadd.f32 %v1377, 1.0
    %v1379 = vmul.f32 %v1378, 0.5
    %v1380 = vadd.f32 %v1237, %v1353
    %v1381 = vmul.f32 %v1380, 0.5
    %v1382 = vtanh.pop %v1381
    %v1383 = vadd.f32 %v1382, 1.0
    %v1384 = vmul.f32 %v1383, 0.5
    %v1385 = vmul.f32 %v1379, %v1373
    %v1386 = vadd.f32 %v1257, %v1385
    %v1387 = vtanh.pop %v1386
    %v1388 = vsub.f32 1.0, %v1384
    %v1389 = vmul.f32 %v1388, %v1387
    %v1390 = vmul.f32 %v1384, %v1056
    %v1391 = vadd.f32 %v1389, %v1390
    %v1392 = vld [vmem:[#allocation12] sm:$0xff]
    %v1393 = vld [vmem:[#allocation12 + $0x8] sm:$0xff]
    %v1394 = vld [vmem:[#allocation12 + $0x10] sm:$0xff]
    %v1395 = vld [vmem:[#allocation12 + $0x18] sm:$0xff]
    %v1396 = vld [vmem:[#allocation12 + $0x20] sm:$0xff]
    %v1397 = vld [vmem:[#allocation12 + $0x28] sm:$0xff]
    %v1398 = vld [vmem:[#allocation12 + $0x30] sm:$0xff]
    %v1399 = vld [vmem:[#allocation12 + $0x38] sm:$0xff]
    %v1400 = vld [vmem:[#allocation12 + $0x40] sm:$0xff]
    %v1401 = vld [vmem:[#allocation12 + $0x48] sm:$0xff]
    %v1402 = vld [vmem:[#allocation12 + $0x50] sm:$0xff]
    %v1403 = vld [vmem:[#allocation12 + $0x58] sm:$0xff]
    %v1404 = vld [vmem:[#allocation12 + $0x60] sm:$0xff]
    %v1405 = vld [vmem:[#allocation12 + $0x68] sm:$0xff]
    %v1406 = vld [vmem:[#allocation12 + $0x70] sm:$0xff]
    %v1407 = vld [vmem:[#allocation12 + $0x78] sm:$0xff]
    %v1408 = vld [vmem:[%s6] sm:$0x1]
    %v1410 = vperm.slane %v1408, 0
    %1412 = vmatpush.msra.mxu0 %v1407
    %1413 = vmatpush.msra.mxu0 %v1406
    %1414 = vmatpush.msra.mxu0 %v1405
    %1415 = vmatpush.msra.mxu0 %v1404
    %1416 = vmatpush.msra.mxu0 %v1403
    %1417 = vmatpush.msra.mxu0 %v1402
    %1418 = vmatpush.msra.mxu0 %v1401
    %1419 = vmatpush.msra.mxu0 %v1400
    %1420 = vmatpush.msra.mxu0 %v1399
    %1421 = vmatpush.msra.mxu0 %v1398
    %1422 = vmatpush.msra.mxu0 %v1397
    %1423 = vmatpush.msra.mxu0 %v1396
    %1424 = vmatpush.msra.mxu0 %v1395
    %1425 = vmatpush.msra.mxu0 %v1394
    %1426 = vmatpush.msra.mxu0 %v1393
    %1427 = vmatpush.msra.mxu0 %v1392
    %1428 = vmatmul.f32.gmra.mxu0 %v1391
    %v1429 = vpop.f32.mrf.mxu0
    %v1430 = vadd.f32 %v1410, %v1429
    %1431 = vdwg.mxu0
    %v1432 = vtanh.pop %v1430
    %v1433 = vld [vmem:[#allocation13] sm:$0xff]
    %v1434 = vld [vmem:[#allocation13 + $0x8] sm:$0xff]
    %v1435 = vld [vmem:[#allocation13 + $0x10] sm:$0xff]
    %v1436 = vld [vmem:[#allocation13 + $0x18] sm:$0xff]
    %v1437 = vld [vmem:[#allocation13 + $0x20] sm:$0xff]
    %v1438 = vld [vmem:[#allocation13 + $0x28] sm:$0xff]
    %v1439 = vld [vmem:[#allocation13 + $0x30] sm:$0xff]
    %v1440 = vld [vmem:[#allocation13 + $0x38] sm:$0xff]
    %v1441 = vld [vmem:[#allocation13 + $0x40] sm:$0xff]
    %v1442 = vld [vmem:[#allocation13 + $0x48] sm:$0xff]
    %v1443 = vld [vmem:[#allocation13 + $0x50] sm:$0xff]
    %v1444 = vld [vmem:[#allocation13 + $0x58] sm:$0xff]
    %v1445 = vld [vmem:[#allocation13 + $0x60] sm:$0xff]
    %v1446 = vld [vmem:[#allocation13 + $0x68] sm:$0xff]
    %v1447 = vld [vmem:[#allocation13 + $0x70] sm:$0xff]
    %v1448 = vld [vmem:[#allocation13 + $0x78] sm:$0xff]
    %v1449 = vld [vmem:[%s8] sm:$0x1]
    %v1451 = vperm.slane %v1449, 0
    %1453 = vmatpush.msra.mxu0 %v1448
    %1454 = vmatpush.msra.mxu0 %v1447
    %1455 = vmatpush.msra.mxu0 %v1446
    %1456 = vmatpush.msra.mxu0 %v1445
    %1457 = vmatpush.msra.mxu0 %v1444
    %1458 = vmatpush.msra.mxu0 %v1443
    %1459 = vmatpush.msra.mxu0 %v1442
    %1460 = vmatpush.msra.mxu0 %v1441
    %1461 = vmatpush.msra.mxu0 %v1440
    %1462 = vmatpush.msra.mxu0 %v1439
    %1463 = vmatpush.msra.mxu0 %v1438
    %1464 = vmatpush.msra.mxu0 %v1437
    %1465 = vmatpush.msra.mxu0 %v1436
    %1466 = vmatpush.msra.mxu0 %v1435
    %1467 = vmatpush.msra.mxu0 %v1434
    %1468 = vmatpush.msra.mxu0 %v1433
    %1469 = vmatmul.f32.gmra.mxu0 %v1432
    %v1470 = vpop.f32.mrf.mxu0
    %v1471 = vadd.f32 %v1451, %v1470
    %1472 = vdwg.mxu0
    %s1473 = scalar_lea.vmem [#allocation15], 24
    %1474 = vst [vmem:[%s1473] sm:$0xff] %v1391
    %s1475 = scalar_lea.vmem [#allocation16], 24
    %1476 = vst [vmem:[%s1475] sm:$0xff] %v1471
    %s1477 = scalar_lea.vmem [#allocation7], 4
    %v1478 = vld [vmem:[%s1477] ss:$8 sm:$0x7]
    %v1479 = vld [vmem:[#allocation9] sm:$0xff]
    %v1480 = vld [vmem:[#allocation9 + $0x8] sm:$0xff]
    %v1481 = vld [vmem:[#allocation9 + $0x10] sm:$0xff]
    %v1482 = vld [vmem:[#allocation9 + $0x18] sm:$0xff]
    %v1483 = vld [vmem:[#allocation9 + $0x20] sm:$0xff]
    %v1484 = vld [vmem:[#allocation9 + $0x28] sm:$0xff]
    %v1485 = vld [vmem:[#allocation9 + $0x30] sm:$0xff]
    %v1486 = vld [vmem:[#allocation9 + $0x38] sm:$0xff]
    %v1487 = vld [vmem:[#allocation9 + $0x40] sm:$0xff]
    %v1488 = vld [vmem:[#allocation9 + $0x48] sm:$0xff]
    %v1489 = vld [vmem:[#allocation9 + $0x50] sm:$0xff]
    %v1490 = vld [vmem:[#allocation9 + $0x58] sm:$0xff]
    %v1491 = vld [vmem:[#allocation9 + $0x60] sm:$0xff]
    %v1492 = vld [vmem:[#allocation9 + $0x68] sm:$0xff]
    %v1493 = vld [vmem:[#allocation9 + $0x70] sm:$0xff]
    %v1494 = vld [vmem:[#allocation9 + $0x78] sm:$0xff]
    %v1495 = vld [vmem:[#allocation9 + $0x80] sm:$0xff]
    %v1496 = vld [vmem:[#allocation9 + $0x88] sm:$0xff]
    %v1497 = vld [vmem:[#allocation9 + $0x90] sm:$0xff]
    %v1498 = vld [vmem:[#allocation9 + $0x98] sm:$0xff]
    %v1499 = vld [vmem:[#allocation9 + $0xa0] sm:$0xff]
    %v1500 = vld [vmem:[#allocation9 + $0xa8] sm:$0xff]
    %v1501 = vld [vmem:[#allocation9 + $0xb0] sm:$0xff]
    %v1502 = vld [vmem:[#allocation9 + $0xb8] sm:$0xff]
    %v1503 = vld [vmem:[#allocation9 + $0xc0] sm:$0xff]
    %v1504 = vld [vmem:[#allocation9 + $0xc8] sm:$0xff]
    %v1505 = vld [vmem:[#allocation9 + $0xd0] sm:$0xff]
    %v1506 = vld [vmem:[#allocation9 + $0xd8] sm:$0xff]
    %v1507 = vld [vmem:[#allocation9 + $0xe0] sm:$0xff]
    %v1508 = vld [vmem:[#allocation9 + $0xe8] sm:$0xff]
    %v1509 = vld [vmem:[#allocation9 + $0xf0] sm:$0xff]
    %v1510 = vld [vmem:[#allocation9 + $0xf8] sm:$0xff]
    %v1511 = vld [vmem:[#allocation9 + $0x100] sm:$0xff]
    %v1512 = vld [vmem:[#allocation9 + $0x108] sm:$0xff]
    %v1513 = vld [vmem:[#allocation9 + $0x110] sm:$0xff]
    %v1514 = vld [vmem:[#allocation9 + $0x118] sm:$0xff]
    %v1515 = vld [vmem:[#allocation9 + $0x120] sm:$0xff]
    %v1516 = vld [vmem:[#allocation9 + $0x128] sm:$0xff]
    %v1517 = vld [vmem:[#allocation9 + $0x130] sm:$0xff]
    %v1518 = vld [vmem:[#allocation9 + $0x138] sm:$0xff]
    %v1519 = vld [vmem:[#allocation9 + $0x140] sm:$0xff]
    %v1520 = vld [vmem:[#allocation9 + $0x148] sm:$0xff]
    %v1521 = vld [vmem:[#allocation9 + $0x150] sm:$0xff]
    %v1522 = vld [vmem:[#allocation9 + $0x158] sm:$0xff]
    %v1523 = vld [vmem:[#allocation9 + $0x160] sm:$0xff]
    %v1524 = vld [vmem:[#allocation9 + $0x168] sm:$0xff]
    %v1525 = vld [vmem:[#allocation9 + $0x170] sm:$0xff]
    %v1526 = vld [vmem:[#allocation9 + $0x178] sm:$0xff]
    %v1528 = vperm.slane %v1478, 0
    %v1529 = vperm.slane %v1478, 1
    %v1530 = vperm.slane %v1478, 2
    %1534 = vmatpush.msra.mxu0 %v1524
    %1535 = vmatpush.msra.mxu0 %v1521
    %1536 = vmatpush.msra.mxu0 %v1518
    %1537 = vmatpush.msra.mxu0 %v1515
    %1538 = vmatpush.msra.mxu0 %v1512
    %1539 = vmatpush.msra.mxu0 %v1509
    %1540 = vmatpush.msra.mxu0 %v1506
    %1541 = vmatpush.msra.mxu0 %v1503
    %1542 = vmatpush.msra.mxu0 %v1500
    %1543 = vmatpush.msra.mxu0 %v1497
    %1544 = vmatpush.msra.mxu0 %v1494
    %1545 = vmatpush.msra.mxu0 %v1491
    %1546 = vmatpush.msra.mxu0 %v1488
    %1547 = vmatpush.msra.mxu0 %v1485
    %1548 = vmatpush.msra.mxu0 %v1482
    %1549 = vmatpush.msra.mxu0 %v1479
    %1550 = vmatmul.f32.gmra.mxu0 %v1471
    %v1551 = vpop.f32.mrf.mxu0
    %v1552 = vadd.f32 %v1528, %v1551
    %1553 = vdwg.mxu0
    %1554 = vmatpush.msra.mxu0 %v1525
    %1555 = vmatpush.msra.mxu0 %v1522
    %1556 = vmatpush.msra.mxu0 %v1519
    %1557 = vmatpush.msra.mxu0 %v1516
    %1558 = vmatpush.msra.mxu0 %v1513
    %1559 = vmatpush.msra.mxu0 %v1510
    %1560 = vmatpush.msra.mxu0 %v1507
    %1561 = vmatpush.msra.mxu0 %v1504
    %1562 = vmatpush.msra.mxu0 %v1501
    %1563 = vmatpush.msra.mxu0 %v1498
    %1564 = vmatpush.msra.mxu0 %v1495
    %1565 = vmatpush.msra.mxu0 %v1492
    %1566 = vmatpush.msra.mxu0 %v1489
    %1567 = vmatpush.msra.mxu0 %v1486
    %1568 = vmatpush.msra.mxu0 %v1483
    %1569 = vmatpush.msra.mxu0 %v1480
    %1570 = vmatmul.f32.gmra.mxu0 %v1471
    %v1571 = vpop.f32.mrf.mxu0
    %v1572 = vadd.f32 %v1529, %v1571
    %1573 = vdwg.mxu0
    %1574 = vmatpush.msra.mxu0 %v1526
    %1575 = vmatpush.msra.mxu0 %v1523
    %1576 = vmatpush.msra.mxu0 %v1520
    %1577 = vmatpush.msra.mxu0 %v1517
    %1578 = vmatpush.msra.mxu0 %v1514
    %1579 = vmatpush.msra.mxu0 %v1511
    %1580 = vmatpush.msra.mxu0 %v1508
    %1581 = vmatpush.msra.mxu0 %v1505
    %1582 = vmatpush.msra.mxu0 %v1502
    %1583 = vmatpush.msra.mxu0 %v1499
    %1584 = vmatpush.msra.mxu0 %v1496
    %1585 = vmatpush.msra.mxu0 %v1493
    %1586 = vmatpush.msra.mxu0 %v1490
    %1587 = vmatpush.msra.mxu0 %v1487
    %1588 = vmatpush.msra.mxu0 %v1484
    %1589 = vmatpush.msra.mxu0 %v1481
    %1590 = vmatmul.f32.gmra.mxu0 %v1471
    %v1591 = vpop.f32.mrf.mxu0
    %v1592 = vadd.f32 %v1530, %v1591
    %1593 = vdwg.mxu0
    %v1594 = vld [vmem:[#allocation10] sm:$0xff]
    %v1595 = vld [vmem:[#allocation10 + $0x8] sm:$0xff]
    %v1596 = vld [vmem:[#allocation10 + $0x10] sm:$0xff]
    %v1597 = vld [vmem:[#allocation10 + $0x18] sm:$0xff]
    %v1598 = vld [vmem:[#allocation10 + $0x20] sm:$0xff]
    %v1599 = vld [vmem:[#allocation10 + $0x28] sm:$0xff]
    %v1600 = vld [vmem:[#allocation10 + $0x30] sm:$0xff]
    %v1601 = vld [vmem:[#allocation10 + $0x38] sm:$0xff]
    %v1602 = vld [vmem:[#allocation10 + $0x40] sm:$0xff]
    %v1603 = vld [vmem:[#allocation10 + $0x48] sm:$0xff]
    %v1604 = vld [vmem:[#allocation10 + $0x50] sm:$0xff]
    %v1605 = vld [vmem:[#allocation10 + $0x58] sm:$0xff]
    %v1606 = vld [vmem:[#allocation10 + $0x60] sm:$0xff]
    %v1607 = vld [vmem:[#allocation10 + $0x68] sm:$0xff]
    %v1608 = vld [vmem:[#allocation10 + $0x70] sm:$0xff]
    %v1609 = vld [vmem:[#allocation10 + $0x78] sm:$0xff]
    %v1610 = vld [vmem:[#allocation10 + $0x80] sm:$0xff]
    %v1611 = vld [vmem:[#allocation10 + $0x88] sm:$0xff]
    %v1612 = vld [vmem:[#allocation10 + $0x90] sm:$0xff]
    %v1613 = vld [vmem:[#allocation10 + $0x98] sm:$0xff]
    %v1614 = vld [vmem:[#allocation10 + $0xa0] sm:$0xff]
    %v1615 = vld [vmem:[#allocation10 + $0xa8] sm:$0xff]
    %v1616 = vld [vmem:[#allocation10 + $0xb0] sm:$0xff]
    %v1617 = vld [vmem:[#allocation10 + $0xb8] sm:$0xff]
    %v1618 = vld [vmem:[#allocation10 + $0xc0] sm:$0xff]
    %v1619 = vld [vmem:[#allocation10 + $0xc8] sm:$0xff]
    %v1620 = vld [vmem:[#allocation10 + $0xd0] sm:$0xff]
    %v1621 = vld [vmem:[#allocation10 + $0xd8] sm:$0xff]
    %v1622 = vld [vmem:[#allocation10 + $0xe0] sm:$0xff]
    %v1623 = vld [vmem:[#allocation10 + $0xe8] sm:$0xff]
    %v1624 = vld [vmem:[#allocation10 + $0xf0] sm:$0xff]
    %v1625 = vld [vmem:[#allocation10 + $0xf8] sm:$0xff]
    %v1626 = vld [vmem:[#allocation10 + $0x100] sm:$0xff]
    %v1627 = vld [vmem:[#allocation10 + $0x108] sm:$0xff]
    %v1628 = vld [vmem:[#allocation10 + $0x110] sm:$0xff]
    %v1629 = vld [vmem:[#allocation10 + $0x118] sm:$0xff]
    %v1630 = vld [vmem:[#allocation10 + $0x120] sm:$0xff]
    %v1631 = vld [vmem:[#allocation10 + $0x128] sm:$0xff]
    %v1632 = vld [vmem:[#allocation10 + $0x130] sm:$0xff]
    %v1633 = vld [vmem:[#allocation10 + $0x138] sm:$0xff]
    %v1634 = vld [vmem:[#allocation10 + $0x140] sm:$0xff]
    %v1635 = vld [vmem:[#allocation10 + $0x148] sm:$0xff]
    %v1636 = vld [vmem:[#allocation10 + $0x150] sm:$0xff]
    %v1637 = vld [vmem:[#allocation10 + $0x158] sm:$0xff]
    %v1638 = vld [vmem:[#allocation10 + $0x160] sm:$0xff]
    %v1639 = vld [vmem:[#allocation10 + $0x168] sm:$0xff]
    %v1640 = vld [vmem:[#allocation10 + $0x170] sm:$0xff]
    %v1641 = vld [vmem:[#allocation10 + $0x178] sm:$0xff]
    %v1642 = vld [vmem:[%s4] sm:$0x7]
    %v1644 = vperm.slane %v1642, 0
    %v1645 = vperm.slane %v1642, 1
    %v1646 = vperm.slane %v1642, 2
    %1650 = vmatpush.msra.mxu0 %v1639
    %1651 = vmatpush.msra.mxu0 %v1636
    %1652 = vmatpush.msra.mxu0 %v1633
    %1653 = vmatpush.msra.mxu0 %v1630
    %1654 = vmatpush.msra.mxu0 %v1627
    %1655 = vmatpush.msra.mxu0 %v1624
    %1656 = vmatpush.msra.mxu0 %v1621
    %1657 = vmatpush.msra.mxu0 %v1618
    %1658 = vmatpush.msra.mxu0 %v1615
    %1659 = vmatpush.msra.mxu0 %v1612
    %1660 = vmatpush.msra.mxu0 %v1609
    %1661 = vmatpush.msra.mxu0 %v1606
    %1662 = vmatpush.msra.mxu0 %v1603
    %1663 = vmatpush.msra.mxu0 %v1600
    %1664 = vmatpush.msra.mxu0 %v1597
    %1665 = vmatpush.msra.mxu0 %v1594
    %1666 = vmatmul.f32.gmra.mxu0 %v1391
    %v1667 = vpop.f32.mrf.mxu0
    %v1668 = vadd.f32 %v1644, %v1667
    %1669 = vdwg.mxu0
    %1670 = vmatpush.msra.mxu0 %v1640
    %1671 = vmatpush.msra.mxu0 %v1637
    %1672 = vmatpush.msra.mxu0 %v1634
    %1673 = vmatpush.msra.mxu0 %v1631
    %1674 = vmatpush.msra.mxu0 %v1628
    %1675 = vmatpush.msra.mxu0 %v1625
    %1676 = vmatpush.msra.mxu0 %v1622
    %1677 = vmatpush.msra.mxu0 %v1619
    %1678 = vmatpush.msra.mxu0 %v1616
    %1679 = vmatpush.msra.mxu0 %v1613
    %1680 = vmatpush.msra.mxu0 %v1610
    %1681 = vmatpush.msra.mxu0 %v1607
    %1682 = vmatpush.msra.mxu0 %v1604
    %1683 = vmatpush.msra.mxu0 %v1601
    %1684 = vmatpush.msra.mxu0 %v1598
    %1685 = vmatpush.msra.mxu0 %v1595
    %1686 = vmatmul.f32.gmra.mxu0 %v1391
    %v1687 = vpop.f32.mrf.mxu0
    %v1688 = vadd.f32 %v1645, %v1687
    %1689 = vdwg.mxu0
    %1690 = vmatpush.msra.mxu0 %v1641
    %1691 = vmatpush.msra.mxu0 %v1638
    %1692 = vmatpush.msra.mxu0 %v1635
    %1693 = vmatpush.msra.mxu0 %v1632
    %1694 = vmatpush.msra.mxu0 %v1629
    %1695 = vmatpush.msra.mxu0 %v1626
    %1696 = vmatpush.msra.mxu0 %v1623
    %1697 = vmatpush.msra.mxu0 %v1620
    %1698 = vmatpush.msra.mxu0 %v1617
    %1699 = vmatpush.msra.mxu0 %v1614
    %1700 = vmatpush.msra.mxu0 %v1611
    %1701 = vmatpush.msra.mxu0 %v1608
    %1702 = vmatpush.msra.mxu0 %v1605
    %1703 = vmatpush.msra.mxu0 %v1602
    %1704 = vmatpush.msra.mxu0 %v1599
    %1705 = vmatpush.msra.mxu0 %v1596
    %1706 = vmatmul.f32.gmra.mxu0 %v1391
    %v1707 = vpop.f32.mrf.mxu0
    %v1708 = vadd.f32 %v1646, %v1707
    %1709 = vdwg.mxu0
    %v1710 = vadd.f32 %v1552, %v1668
    %v1711 = vmul.f32 %v1710, 0.5
    %v1712 = vtanh.pop %v1711
    %v1713 = vadd.f32 %v1712, 1.0
    %v1714 = vmul.f32 %v1713, 0.5
    %v1715 = vadd.f32 %v1572, %v1688
    %v1716 = vmul.f32 %v1715, 0.5
    %v1717 = vtanh.pop %v1716
    %v1718 = vadd.f32 %v1717, 1.0
    %v1719 = vmul.f32 %v1718, 0.5
    %v1720 = vmul.f32 %v1714, %v1708
    %v1721 = vadd.f32 %v1592, %v1720
    %v1722 = vtanh.pop %v1721
    %v1723 = vsub.f32 1.0, %v1719
    %v1724 = vmul.f32 %v1723, %v1722
    %v1725 = vmul.f32 %v1719, %v1391
    %v1726 = vadd.f32 %v1724, %v1725
    %v1727 = vld [vmem:[#allocation12] sm:$0xff]
    %v1728 = vld [vmem:[#allocation12 + $0x8] sm:$0xff]
    %v1729 = vld [vmem:[#allocation12 + $0x10] sm:$0xff]
    %v1730 = vld [vmem:[#allocation12 + $0x18] sm:$0xff]
    %v1731 = vld [vmem:[#allocation12 + $0x20] sm:$0xff]
    %v1732 = vld [vmem:[#allocation12 + $0x28] sm:$0xff]
    %v1733 = vld [vmem:[#allocation12 + $0x30] sm:$0xff]
    %v1734 = vld [vmem:[#allocation12 + $0x38] sm:$0xff]
    %v1735 = vld [vmem:[#allocation12 + $0x40] sm:$0xff]
    %v1736 = vld [vmem:[#allocation12 + $0x48] sm:$0xff]
    %v1737 = vld [vmem:[#allocation12 + $0x50] sm:$0xff]
    %v1738 = vld [vmem:[#allocation12 + $0x58] sm:$0xff]
    %v1739 = vld [vmem:[#allocation12 + $0x60] sm:$0xff]
    %v1740 = vld [vmem:[#allocation12 + $0x68] sm:$0xff]
    %v1741 = vld [vmem:[#allocation12 + $0x70] sm:$0xff]
    %v1742 = vld [vmem:[#allocation12 + $0x78] sm:$0xff]
    %v1743 = vld [vmem:[%s6] sm:$0x1]
    %v1745 = vperm.slane %v1743, 0
    %1747 = vmatpush.msra.mxu0 %v1742
    %1748 = vmatpush.msra.mxu0 %v1741
    %1749 = vmatpush.msra.mxu0 %v1740
    %1750 = vmatpush.msra.mxu0 %v1739
    %1751 = vmatpush.msra.mxu0 %v1738
    %1752 = vmatpush.msra.mxu0 %v1737
    %1753 = vmatpush.msra.mxu0 %v1736
    %1754 = vmatpush.msra.mxu0 %v1735
    %1755 = vmatpush.msra.mxu0 %v1734
    %1756 = vmatpush.msra.mxu0 %v1733
    %1757 = vmatpush.msra.mxu0 %v1732
    %1758 = vmatpush.msra.mxu0 %v1731
    %1759 = vmatpush.msra.mxu0 %v1730
    %1760 = vmatpush.msra.mxu0 %v1729
    %1761 = vmatpush.msra.mxu0 %v1728
    %1762 = vmatpush.msra.mxu0 %v1727
    %1763 = vmatmul.f32.gmra.mxu0 %v1726
    %v1764 = vpop.f32.mrf.mxu0
    %v1765 = vadd.f32 %v1745, %v1764
    %1766 = vdwg.mxu0
    %v1767 = vtanh.pop %v1765
    %v1768 = vld [vmem:[#allocation13] sm:$0xff]
    %v1769 = vld [vmem:[#allocation13 + $0x8] sm:$0xff]
    %v1770 = vld [vmem:[#allocation13 + $0x10] sm:$0xff]
    %v1771 = vld [vmem:[#allocation13 + $0x18] sm:$0xff]
    %v1772 = vld [vmem:[#allocation13 + $0x20] sm:$0xff]
    %v1773 = vld [vmem:[#allocation13 + $0x28] sm:$0xff]
    %v1774 = vld [vmem:[#allocation13 + $0x30] sm:$0xff]
    %v1775 = vld [vmem:[#allocation13 + $0x38] sm:$0xff]
    %v1776 = vld [vmem:[#allocation13 + $0x40] sm:$0xff]
    %v1777 = vld [vmem:[#allocation13 + $0x48] sm:$0xff]
    %v1778 = vld [vmem:[#allocation13 + $0x50] sm:$0xff]
    %v1779 = vld [vmem:[#allocation13 + $0x58] sm:$0xff]
    %v1780 = vld [vmem:[#allocation13 + $0x60] sm:$0xff]
    %v1781 = vld [vmem:[#allocation13 + $0x68] sm:$0xff]
    %v1782 = vld [vmem:[#allocation13 + $0x70] sm:$0xff]
    %v1783 = vld [vmem:[#allocation13 + $0x78] sm:$0xff]
    %v1784 = vld [vmem:[%s8] sm:$0x1]
    %v1786 = vperm.slane %v1784, 0
    %1788 = vmatpush.msra.mxu0 %v1783
    %1789 = vmatpush.msra.mxu0 %v1782
    %1790 = vmatpush.msra.mxu0 %v1781
    %1791 = vmatpush.msra.mxu0 %v1780
    %1792 = vmatpush.msra.mxu0 %v1779
    %1793 = vmatpush.msra.mxu0 %v1778
    %1794 = vmatpush.msra.mxu0 %v1777
    %1795 = vmatpush.msra.mxu0 %v1776
    %1796 = vmatpush.msra.mxu0 %v1775
    %1797 = vmatpush.msra.mxu0 %v1774
    %1798 = vmatpush.msra.mxu0 %v1773
    %1799 = vmatpush.msra.mxu0 %v1772
    %1800 = vmatpush.msra.mxu0 %v1771
    %1801 = vmatpush.msra.mxu0 %v1770
    %1802 = vmatpush.msra.mxu0 %v1769
    %1803 = vmatpush.msra.mxu0 %v1768
    %1804 = vmatmul.f32.gmra.mxu0 %v1767
    %v1805 = vpop.f32.mrf.mxu0
    %v1806 = vadd.f32 %v1786, %v1805
    %1807 = vdwg.mxu0
    %s1808 = scalar_lea.vmem [#allocation15], 32
    %1809 = vst [vmem:[%s1808] sm:$0xff] %v1726
    %s1810 = scalar_lea.vmem [#allocation16], 32
    %1811 = vst [vmem:[%s1810] sm:$0xff] %v1806
    %s1812 = scalar_lea.vmem [#allocation7], 5
    %v1813 = vld [vmem:[%s1812] ss:$8 sm:$0x7]
    %v1814 = vld [vmem:[#allocation9] sm:$0xff]
    %v1815 = vld [vmem:[#allocation9 + $0x8] sm:$0xff]
    %v1816 = vld [vmem:[#allocation9 + $0x10] sm:$0xff]
    %v1817 = vld [vmem:[#allocation9 + $0x18] sm:$0xff]
    %v1818 = vld [vmem:[#allocation9 + $0x20] sm:$0xff]
    %v1819 = vld [vmem:[#allocation9 + $0x28] sm:$0xff]
    %v1820 = vld [vmem:[#allocation9 + $0x30] sm:$0xff]
    %v1821 = vld [vmem:[#allocation9 + $0x38] sm:$0xff]
    %v1822 = vld [vmem:[#allocation9 + $0x40] sm:$0xff]
    %v1823 = vld [vmem:[#allocation9 + $0x48] sm:$0xff]
    %v1824 = vld [vmem:[#allocation9 + $0x50] sm:$0xff]
    %v1825 = vld [vmem:[#allocation9 + $0x58] sm:$0xff]
    %v1826 = vld [vmem:[#allocation9 + $0x60] sm:$0xff]
    %v1827 = vld [vmem:[#allocation9 + $0x68] sm:$0xff]
    %v1828 = vld [vmem:[#allocation9 + $0x70] sm:$0xff]
    %v1829 = vld [vmem:[#allocation9 + $0x78] sm:$0xff]
    %v1830 = vld [vmem:[#allocation9 + $0x80] sm:$0xff]
    %v1831 = vld [vmem:[#allocation9 + $0x88] sm:$0xff]
    %v1832 = vld [vmem:[#allocation9 + $0x90] sm:$0xff]
    %v1833 = vld [vmem:[#allocation9 + $0x98] sm:$0xff]
    %v1834 = vld [vmem:[#allocation9 + $0xa0] sm:$0xff]
    %v1835 = vld [vmem:[#allocation9 + $0xa8] sm:$0xff]
    %v1836 = vld [vmem:[#allocation9 + $0xb0] sm:$0xff]
    %v1837 = vld [vmem:[#allocation9 + $0xb8] sm:$0xff]
    %v1838 = vld [vmem:[#allocation9 + $0xc0] sm:$0xff]
    %v1839 = vld [vmem:[#allocation9 + $0xc8] sm:$0xff]
    %v1840 = vld [vmem:[#allocation9 + $0xd0] sm:$0xff]
    %v1841 = vld [vmem:[#allocation9 + $0xd8] sm:$0xff]
    %v1842 = vld [vmem:[#allocation9 + $0xe0] sm:$0xff]
    %v1843 = vld [vmem:[#allocation9 + $0xe8] sm:$0xff]
    %v1844 = vld [vmem:[#allocation9 + $0xf0] sm:$0xff]
    %v1845 = vld [vmem:[#allocation9 + $0xf8] sm:$0xff]
    %v1846 = vld [vmem:[#allocation9 + $0x100] sm:$0xff]
    %v1847 = vld [vmem:[#allocation9 + $0x108] sm:$0xff]
    %v1848 = vld [vmem:[#allocation9 + $0x110] sm:$0xff]
    %v1849 = vld [vmem:[#allocation9 + $0x118] sm:$0xff]
    %v1850 = vld [vmem:[#allocation9 + $0x120] sm:$0xff]
    %v1851 = vld [vmem:[#allocation9 + $0x128] sm:$0xff]
    %v1852 = vld [vmem:[#allocation9 + $0x130] sm:$0xff]
    %v1853 = vld [vmem:[#allocation9 + $0x138] sm:$0xff]
    %v1854 = vld [vmem:[#allocation9 + $0x140] sm:$0xff]
    %v1855 = vld [vmem:[#allocation9 + $0x148] sm:$0xff]
    %v1856 = vld [vmem:[#allocation9 + $0x150] sm:$0xff]
    %v1857 = vld [vmem:[#allocation9 + $0x158] sm:$0xff]
    %v1858 = vld [vmem:[#allocation9 + $0x160] sm:$0xff]
    %v1859 = vld [vmem:[#allocation9 + $0x168] sm:$0xff]
    %v1860 = vld [vmem:[#allocation9 + $0x170] sm:$0xff]
    %v1861 = vld [vmem:[#allocation9 + $0x178] sm:$0xff]
    %v1863 = vperm.slane %v1813, 0
    %v1864 = vperm.slane %v1813, 1
    %v1865 = vperm.slane %v1813, 2
    %1869 = vmatpush.msra.mxu0 %v1859
    %1870 = vmatpush.msra.mxu0 %v1856
    %1871 = vmatpush.msra.mxu0 %v1853
    %1872 = vmatpush.msra.mxu0 %v1850
    %1873 = vmatpush.msra.mxu0 %v1847
    %1874 = vmatpush.msra.mxu0 %v1844
    %1875 = vmatpush.msra.mxu0 %v1841
    %1876 = vmatpush.msra.mxu0 %v1838
    %1877 = vmatpush.msra.mxu0 %v1835
    %1878 = vmatpush.msra.mxu0 %v1832
    %1879 = vmatpush.msra.mxu0 %v1829
    %1880 = vmatpush.msra.mxu0 %v1826
    %1881 = vmatpush.msra.mxu0 %v1823
    %1882 = vmatpush.msra.mxu0 %v1820
    %1883 = vmatpush.msra.mxu0 %v1817
    %1884 = vmatpush.msra.mxu0 %v1814
    %1885 = vmatmul.f32.gmra.mxu0 %v1806
    %v1886 = vpop.f32.mrf.mxu0
    %v1887 = vadd.f32 %v1863, %v1886
    %1888 = vdwg.mxu0
    %1889 = vmatpush.msra.mxu0 %v1860
    %1890 = vmatpush.msra.mxu0 %v1857
    %1891 = vmatpush.msra.mxu0 %v1854
    %1892 = vmatpush.msra.mxu0 %v1851
    %1893 = vmatpush.msra.mxu0 %v1848
    %1894 = vmatpush.msra.mxu0 %v1845
    %1895 = vmatpush.msra.mxu0 %v1842
    %1896 = vmatpush.msra.mxu0 %v1839
    %1897 = vmatpush.msra.mxu0 %v1836
    %1898 = vmatpush.msra.mxu0 %v1833
    %1899 = vmatpush.msra.mxu0 %v1830
    %1900 = vmatpush.msra.mxu0 %v1827
    %1901 = vmatpush.msra.mxu0 %v1824
    %1902 = vmatpush.msra.mxu0 %v1821
    %1903 = vmatpush.msra.mxu0 %v1818
    %1904 = vmatpush.msra.mxu0 %v1815
    %1905 = vmatmul.f32.gmra.mxu0 %v1806
    %v1906 = vpop.f32.mrf.mxu0
    %v1907 = vadd.f32 %v1864, %v1906
    %1908 = vdwg.mxu0
    %1909 = vmatpush.msra.mxu0 %v1861
    %1910 = vmatpush.msra.mxu0 %v1858
    %1911 = vmatpush.msra.mxu0 %v1855
    %1912 = vmatpush.msra.mxu0 %v1852
    %1913 = vmatpush.msra.mxu0 %v1849
    %1914 = vmatpush.msra.mxu0 %v1846
    %1915 = vmatpush.msra.mxu0 %v1843
    %1916 = vmatpush.msra.mxu0 %v1840
    %1917 = vmatpush.msra.mxu0 %v1837
    %1918 = vmatpush.msra.mxu0 %v1834
    %1919 = vmatpush.msra.mxu0 %v1831
    %1920 = vmatpush.msra.mxu0 %v1828
    %1921 = vmatpush.msra.mxu0 %v1825
    %1922 = vmatpush.msra.mxu0 %v1822
    %1923 = vmatpush.msra.mxu0 %v1819
    %1924 = vmatpush.msra.mxu0 %v1816
    %1925 = vmatmul.f32.gmra.mxu0 %v1806
    %v1926 = vpop.f32.mrf.mxu0
    %v1927 = vadd.f32 %v1865, %v1926
    %1928 = vdwg.mxu0
    %v1929 = vld [vmem:[#allocation10] sm:$0xff]
    %v1930 = vld [vmem:[#allocation10 + $0x8] sm:$0xff]
    %v1931 = vld [vmem:[#allocation10 + $0x10] sm:$0xff]
    %v1932 = vld [vmem:[#allocation10 + $0x18] sm:$0xff]
    %v1933 = vld [vmem:[#allocation10 + $0x20] sm:$0xff]
    %v1934 = vld [vmem:[#allocation10 + $0x28] sm:$0xff]
    %v1935 = vld [vmem:[#allocation10 + $0x30] sm:$0xff]
    %v1936 = vld [vmem:[#allocation10 + $0x38] sm:$0xff]
    %v1937 = vld [vmem:[#allocation10 + $0x40] sm:$0xff]
    %v1938 = vld [vmem:[#allocation10 + $0x48] sm:$0xff]
    %v1939 = vld [vmem:[#allocation10 + $0x50] sm:$0xff]
    %v1940 = vld [vmem:[#allocation10 + $0x58] sm:$0xff]
    %v1941 = vld [vmem:[#allocation10 + $0x60] sm:$0xff]
    %v1942 = vld [vmem:[#allocation10 + $0x68] sm:$0xff]
    %v1943 = vld [vmem:[#allocation10 + $0x70] sm:$0xff]
    %v1944 = vld [vmem:[#allocation10 + $0x78] sm:$0xff]
    %v1945 = vld [vmem:[#allocation10 + $0x80] sm:$0xff]
    %v1946 = vld [vmem:[#allocation10 + $0x88] sm:$0xff]
    %v1947 = vld [vmem:[#allocation10 + $0x90] sm:$0xff]
    %v1948 = vld [vmem:[#allocation10 + $0x98] sm:$0xff]
    %v1949 = vld [vmem:[#allocation10 + $0xa0] sm:$0xff]
    %v1950 = vld [vmem:[#allocation10 + $0xa8] sm:$0xff]
    %v1951 = vld [vmem:[#allocation10 + $0xb0] sm:$0xff]
    %v1952 = vld [vmem:[#allocation10 + $0xb8] sm:$0xff]
    %v1953 = vld [vmem:[#allocation10 + $0xc0] sm:$0xff]
    %v1954 = vld [vmem:[#allocation10 + $0xc8] sm:$0xff]
    %v1955 = vld [vmem:[#allocation10 + $0xd0] sm:$0xff]
    %v1956 = vld [vmem:[#allocation10 + $0xd8] sm:$0xff]
    %v1957 = vld [vmem:[#allocation10 + $0xe0] sm:$0xff]
    %v1958 = vld [vmem:[#allocation10 + $0xe8] sm:$0xff]
    %v1959 = vld [vmem:[#allocation10 + $0xf0] sm:$0xff]
    %v1960 = vld [vmem:[#allocation10 + $0xf8] sm:$0xff]
    %v1961 = vld [vmem:[#allocation10 + $0x100] sm:$0xff]
    %v1962 = vld [vmem:[#allocation10 + $0x108] sm:$0xff]
    %v1963 = vld [vmem:[#allocation10 + $0x110] sm:$0xff]
    %v1964 = vld [vmem:[#allocation10 + $0x118] sm:$0xff]
    %v1965 = vld [vmem:[#allocation10 + $0x120] sm:$0xff]
    %v1966 = vld [vmem:[#allocation10 + $0x128] sm:$0xff]
    %v1967 = vld [vmem:[#allocation10 + $0x130] sm:$0xff]
    %v1968 = vld [vmem:[#allocation10 + $0x138] sm:$0xff]
    %v1969 = vld [vmem:[#allocation10 + $0x140] sm:$0xff]
    %v1970 = vld [vmem:[#allocation10 + $0x148] sm:$0xff]
    %v1971 = vld [vmem:[#allocation10 + $0x150] sm:$0xff]
    %v1972 = vld [vmem:[#allocation10 + $0x158] sm:$0xff]
    %v1973 = vld [vmem:[#allocation10 + $0x160] sm:$0xff]
    %v1974 = vld [vmem:[#allocation10 + $0x168] sm:$0xff]
    %v1975 = vld [vmem:[#allocation10 + $0x170] sm:$0xff]
    %v1976 = vld [vmem:[#allocation10 + $0x178] sm:$0xff]
    %v1977 = vld [vmem:[%s4] sm:$0x7]
    %v1979 = vperm.slane %v1977, 0
    %v1980 = vperm.slane %v1977, 1
    %v1981 = vperm.slane %v1977, 2
    %1985 = vmatpush.msra.mxu0 %v1974
    %1986 = vmatpush.msra.mxu0 %v1971
    %1987 = vmatpush.msra.mxu0 %v1968
    %1988 = vmatpush.msra.mxu0 %v1965
    %1989 = vmatpush.msra.mxu0 %v1962
    %1990 = vmatpush.msra.mxu0 %v1959
    %1991 = vmatpush.msra.mxu0 %v1956
    %1992 = vmatpush.msra.mxu0 %v1953
    %1993 = vmatpush.msra.mxu0 %v1950
    %1994 = vmatpush.msra.mxu0 %v1947
    %1995 = vmatpush.msra.mxu0 %v1944
    %1996 = vmatpush.msra.mxu0 %v1941
    %1997 = vmatpush.msra.mxu0 %v1938
    %1998 = vmatpush.msra.mxu0 %v1935
    %1999 = vmatpush.msra.mxu0 %v1932
    %2000 = vmatpush.msra.mxu0 %v1929
    %2001 = vmatmul.f32.gmra.mxu0 %v1726
    %v2002 = vpop.f32.mrf.mxu0
    %v2003 = vadd.f32 %v1979, %v2002
    %2004 = vdwg.mxu0
    %2005 = vmatpush.msra.mxu0 %v1975
    %2006 = vmatpush.msra.mxu0 %v1972
    %2007 = vmatpush.msra.mxu0 %v1969
    %2008 = vmatpush.msra.mxu0 %v1966
    %2009 = vmatpush.msra.mxu0 %v1963
    %2010 = vmatpush.msra.mxu0 %v1960
    %2011 = vmatpush.msra.mxu0 %v1957
    %2012 = vmatpush.msra.mxu0 %v1954
    %2013 = vmatpush.msra.mxu0 %v1951
    %2014 = vmatpush.msra.mxu0 %v1948
    %2015 = vmatpush.msra.mxu0 %v1945
    %2016 = vmatpush.msra.mxu0 %v1942
    %2017 = vmatpush.msra.mxu0 %v1939
    %2018 = vmatpush.msra.mxu0 %v1936
    %2019 = vmatpush.msra.mxu0 %v1933
    %2020 = vmatpush.msra.mxu0 %v1930
    %2021 = vmatmul.f32.gmra.mxu0 %v1726
    %v2022 = vpop.f32.mrf.mxu0
    %v2023 = vadd.f32 %v1980, %v2022
    %2024 = vdwg.mxu0
    %2025 = vmatpush.msra.mxu0 %v1976
    %2026 = vmatpush.msra.mxu0 %v1973
    %2027 = vmatpush.msra.mxu0 %v1970
    %2028 = vmatpush.msra.mxu0 %v1967
    %2029 = vmatpush.msra.mxu0 %v1964
    %2030 = vmatpush.msra.mxu0 %v1961
    %2031 = vmatpush.msra.mxu0 %v1958
    %2032 = vmatpush.msra.mxu0 %v1955
    %2033 = vmatpush.msra.mxu0 %v1952
    %2034 = vmatpush.msra.mxu0 %v1949
    %2035 = vmatpush.msra.mxu0 %v1946
    %2036 = vmatpush.msra.mxu0 %v1943
    %2037 = vmatpush.msra.mxu0 %v1940
    %2038 = vmatpush.msra.mxu0 %v1937
    %2039 = vmatpush.msra.mxu0 %v1934
    %2040 = vmatpush.msra.mxu0 %v1931
    %2041 = vmatmul.f32.gmra.mxu0 %v1726
    %v2042 = vpop.f32.mrf.mxu0
    %v2043 = vadd.f32 %v1981, %v2042
    %2044 = vdwg.mxu0
    %v2045 = vadd.f32 %v1887, %v2003
    %v2046 = vmul.f32 %v2045, 0.5
    %v2047 = vtanh.pop %v2046
    %v2048 = vadd.f32 %v2047, 1.0
    %v2049 = vmul.f32 %v2048, 0.5
    %v2050 = vadd.f32 %v1907, %v2023
    %v2051 = vmul.f32 %v2050, 0.5
    %v2052 = vtanh.pop %v2051
    %v2053 = vadd.f32 %v2052, 1.0
    %v2054 = vmul.f32 %v2053, 0.5
    %v2055 = vmul.f32 %v2049, %v2043
    %v2056 = vadd.f32 %v1927, %v2055
    %v2057 = vtanh.pop %v2056
    %v2058 = vsub.f32 1.0, %v2054
    %v2059 = vmul.f32 %v2058, %v2057
    %v2060 = vmul.f32 %v2054, %v1726
    %v2061 = vadd.f32 %v2059, %v2060
    %v2062 = vld [vmem:[#allocation12] sm:$0xff]
    %v2063 = vld [vmem:[#allocation12 + $0x8] sm:$0xff]
    %v2064 = vld [vmem:[#allocation12 + $0x10] sm:$0xff]
    %v2065 = vld [vmem:[#allocation12 + $0x18] sm:$0xff]
    %v2066 = vld [vmem:[#allocation12 + $0x20] sm:$0xff]
    %v2067 = vld [vmem:[#allocation12 + $0x28] sm:$0xff]
    %v2068 = vld [vmem:[#allocation12 + $0x30] sm:$0xff]
    %v2069 = vld [vmem:[#allocation12 + $0x38] sm:$0xff]
    %v2070 = vld [vmem:[#allocation12 + $0x40] sm:$0xff]
    %v2071 = vld [vmem:[#allocation12 + $0x48] sm:$0xff]
    %v2072 = vld [vmem:[#allocation12 + $0x50] sm:$0xff]
    %v2073 = vld [vmem:[#allocation12 + $0x58] sm:$0xff]
    %v2074 = vld [vmem:[#allocation12 + $0x60] sm:$0xff]
    %v2075 = vld [vmem:[#allocation12 + $0x68] sm:$0xff]
    %v2076 = vld [vmem:[#allocation12 + $0x70] sm:$0xff]
    %v2077 = vld [vmem:[#allocation12 + $0x78] sm:$0xff]
    %v2078 = vld [vmem:[%s6] sm:$0x1]
    %v2080 = vperm.slane %v2078, 0
    %2082 = vmatpush.msra.mxu0 %v2077
    %2083 = vmatpush.msra.mxu0 %v2076
    %2084 = vmatpush.msra.mxu0 %v2075
    %2085 = vmatpush.msra.mxu0 %v2074
    %2086 = vmatpush.msra.mxu0 %v2073
    %2087 = vmatpush.msra.mxu0 %v2072
    %2088 = vmatpush.msra.mxu0 %v2071
    %2089 = vmatpush.msra.mxu0 %v2070
    %2090 = vmatpush.msra.mxu0 %v2069
    %2091 = vmatpush.msra.mxu0 %v2068
    %2092 = vmatpush.msra.mxu0 %v2067
    %2093 = vmatpush.msra.mxu0 %v2066
    %2094 = vmatpush.msra.mxu0 %v2065
    %2095 = vmatpush.msra.mxu0 %v2064
    %2096 = vmatpush.msra.mxu0 %v2063
    %2097 = vmatpush.msra.mxu0 %v2062
    %2098 = vmatmul.f32.gmra.mxu0 %v2061
    %v2099 = vpop.f32.mrf.mxu0
    %v2100 = vadd.f32 %v2080, %v2099
    %2101 = vdwg.mxu0
    %v2102 = vtanh.pop %v2100
    %v2103 = vld [vmem:[#allocation13] sm:$0xff]
    %v2104 = vld [vmem:[#allocation13 + $0x8] sm:$0xff]
    %v2105 = vld [vmem:[#allocation13 + $0x10] sm:$0xff]
    %v2106 = vld [vmem:[#allocation13 + $0x18] sm:$0xff]
    %v2107 = vld [vmem:[#allocation13 + $0x20] sm:$0xff]
    %v2108 = vld [vmem:[#allocation13 + $0x28] sm:$0xff]
    %v2109 = vld [vmem:[#allocation13 + $0x30] sm:$0xff]
    %v2110 = vld [vmem:[#allocation13 + $0x38] sm:$0xff]
    %v2111 = vld [vmem:[#allocation13 + $0x40] sm:$0xff]
    %v2112 = vld [vmem:[#allocation13 + $0x48] sm:$0xff]
    %v2113 = vld [vmem:[#allocation13 + $0x50] sm:$0xff]
    %v2114 = vld [vmem:[#allocation13 + $0x58] sm:$0xff]
    %v2115 = vld [vmem:[#allocation13 + $0x60] sm:$0xff]
    %v2116 = vld [vmem:[#allocation13 + $0x68] sm:$0xff]
    %v2117 = vld [vmem:[#allocation13 + $0x70] sm:$0xff]
    %v2118 = vld [vmem:[#allocation13 + $0x78] sm:$0xff]
    %v2119 = vld [vmem:[%s8] sm:$0x1]
    %v2121 = vperm.slane %v2119, 0
    %2123 = vmatpush.msra.mxu0 %v2118
    %2124 = vmatpush.msra.mxu0 %v2117
    %2125 = vmatpush.msra.mxu0 %v2116
    %2126 = vmatpush.msra.mxu0 %v2115
    %2127 = vmatpush.msra.mxu0 %v2114
    %2128 = vmatpush.msra.mxu0 %v2113
    %2129 = vmatpush.msra.mxu0 %v2112
    %2130 = vmatpush.msra.mxu0 %v2111
    %2131 = vmatpush.msra.mxu0 %v2110
    %2132 = vmatpush.msra.mxu0 %v2109
    %2133 = vmatpush.msra.mxu0 %v2108
    %2134 = vmatpush.msra.mxu0 %v2107
    %2135 = vmatpush.msra.mxu0 %v2106
    %2136 = vmatpush.msra.mxu0 %v2105
    %2137 = vmatpush.msra.mxu0 %v2104
    %2138 = vmatpush.msra.mxu0 %v2103
    %2139 = vmatmul.f32.gmra.mxu0 %v2102
    %v2140 = vpop.f32.mrf.mxu0
    %v2141 = vadd.f32 %v2121, %v2140
    %2142 = vdwg.mxu0
    %s2143 = scalar_lea.vmem [#allocation15], 40
    %2144 = vst [vmem:[%s2143] sm:$0xff] %v2061
    %s2145 = scalar_lea.vmem [#allocation16], 40
    %2146 = vst [vmem:[%s2145] sm:$0xff] %v2141
    %s2147 = scalar_lea.vmem [#allocation7], 6
    %v2148 = vld [vmem:[%s2147] ss:$8 sm:$0x7]
    %v2149 = vld [vmem:[#allocation9] sm:$0xff]
    %v2150 = vld [vmem:[#allocation9 + $0x8] sm:$0xff]
    %v2151 = vld [vmem:[#allocation9 + $0x10] sm:$0xff]
    %v2152 = vld [vmem:[#allocation9 + $0x18] sm:$0xff]
    %v2153 = vld [vmem:[#allocation9 + $0x20] sm:$0xff]
    %v2154 = vld [vmem:[#allocation9 + $0x28] sm:$0xff]
    %v2155 = vld [vmem:[#allocation9 + $0x30] sm:$0xff]
    %v2156 = vld [vmem:[#allocation9 + $0x38] sm:$0xff]
    %v2157 = vld [vmem:[#allocation9 + $0x40] sm:$0xff]
    %v2158 = vld [vmem:[#allocation9 + $0x48] sm:$0xff]
    %v2159 = vld [vmem:[#allocation9 + $0x50] sm:$0xff]
    %v2160 = vld [vmem:[#allocation9 + $0x58] sm:$0xff]
    %v2161 = vld [vmem:[#allocation9 + $0x60] sm:$0xff]
    %v2162 = vld [vmem:[#allocation9 + $0x68] sm:$0xff]
    %v2163 = vld [vmem:[#allocation9 + $0x70] sm:$0xff]
    %v2164 = vld [vmem:[#allocation9 + $0x78] sm:$0xff]
    %v2165 = vld [vmem:[#allocation9 + $0x80] sm:$0xff]
    %v2166 = vld [vmem:[#allocation9 + $0x88] sm:$0xff]
    %v2167 = vld [vmem:[#allocation9 + $0x90] sm:$0xff]
    %v2168 = vld [vmem:[#allocation9 + $0x98] sm:$0xff]
    %v2169 = vld [vmem:[#allocation9 + $0xa0] sm:$0xff]
    %v2170 = vld [vmem:[#allocation9 + $0xa8] sm:$0xff]
    %v2171 = vld [vmem:[#allocation9 + $0xb0] sm:$0xff]
    %v2172 = vld [vmem:[#allocation9 + $0xb8] sm:$0xff]
    %v2173 = vld [vmem:[#allocation9 + $0xc0] sm:$0xff]
    %v2174 = vld [vmem:[#allocation9 + $0xc8] sm:$0xff]
    %v2175 = vld [vmem:[#allocation9 + $0xd0] sm:$0xff]
    %v2176 = vld [vmem:[#allocation9 + $0xd8] sm:$0xff]
    %v2177 = vld [vmem:[#allocation9 + $0xe0] sm:$0xff]
    %v2178 = vld [vmem:[#allocation9 + $0xe8] sm:$0xff]
    %v2179 = vld [vmem:[#allocation9 + $0xf0] sm:$0xff]
    %v2180 = vld [vmem:[#allocation9 + $0xf8] sm:$0xff]
    %v2181 = vld [vmem:[#allocation9 + $0x100] sm:$0xff]
    %v2182 = vld [vmem:[#allocation9 + $0x108] sm:$0xff]
    %v2183 = vld [vmem:[#allocation9 + $0x110] sm:$0xff]
    %v2184 = vld [vmem:[#allocation9 + $0x118] sm:$0xff]
    %v2185 = vld [vmem:[#allocation9 + $0x120] sm:$0xff]
    %v2186 = vld [vmem:[#allocation9 + $0x128] sm:$0xff]
    %v2187 = vld [vmem:[#allocation9 + $0x130] sm:$0xff]
    %v2188 = vld [vmem:[#allocation9 + $0x138] sm:$0xff]
    %v2189 = vld [vmem:[#allocation9 + $0x140] sm:$0xff]
    %v2190 = vld [vmem:[#allocation9 + $0x148] sm:$0xff]
    %v2191 = vld [vmem:[#allocation9 + $0x150] sm:$0xff]
    %v2192 = vld [vmem:[#allocation9 + $0x158] sm:$0xff]
    %v2193 = vld [vmem:[#allocation9 + $0x160] sm:$0xff]
    %v2194 = vld [vmem:[#allocation9 + $0x168] sm:$0xff]
    %v2195 = vld [vmem:[#allocation9 + $0x170] sm:$0xff]
    %v2196 = vld [vmem:[#allocation9 + $0x178] sm:$0xff]
    %v2198 = vperm.slane %v2148, 0
    %v2199 = vperm.slane %v2148, 1
    %v2200 = vperm.slane %v2148, 2
    %2204 = vmatpush.msra.mxu0 %v2194
    %2205 = vmatpush.msra.mxu0 %v2191
    %2206 = vmatpush.msra.mxu0 %v2188
    %2207 = vmatpush.msra.mxu0 %v2185
    %2208 = vmatpush.msra.mxu0 %v2182
    %2209 = vmatpush.msra.mxu0 %v2179
    %2210 = vmatpush.msra.mxu0 %v2176
    %2211 = vmatpush.msra.mxu0 %v2173
    %2212 = vmatpush.msra.mxu0 %v2170
    %2213 = vmatpush.msra.mxu0 %v2167
    %2214 = vmatpush.msra.mxu0 %v2164
    %2215 = vmatpush.msra.mxu0 %v2161
    %2216 = vmatpush.msra.mxu0 %v2158
    %2217 = vmatpush.msra.mxu0 %v2155
    %2218 = vmatpush.msra.mxu0 %v2152
    %2219 = vmatpush.msra.mxu0 %v2149
    %2220 = vmatmul.f32.gmra.mxu0 %v2141
    %v2221 = vpop.f32.mrf.mxu0
    %v2222 = vadd.f32 %v2198, %v2221
    %2223 = vdwg.mxu0
    %2224 = vmatpush.msra.mxu0 %v2195
    %2225 = vmatpush.msra.mxu0 %v2192
    %2226 = vmatpush.msra.mxu0 %v2189
    %2227 = vmatpush.msra.mxu0 %v2186
    %2228 = vmatpush.msra.mxu0 %v2183
    %2229 = vmatpush.msra.mxu0 %v2180
    %2230 = vmatpush.msra.mxu0 %v2177
    %2231 = vmatpush.msra.mxu0 %v2174
    %2232 = vmatpush.msra.mxu0 %v2171
    %2233 = vmatpush.msra.mxu0 %v2168
    %2234 = vmatpush.msra.mxu0 %v2165
    %2235 = vmatpush.msra.mxu0 %v2162
    %2236 = vmatpush.msra.mxu0 %v2159
    %2237 = vmatpush.msra.mxu0 %v2156
    %2238 = vmatpush.msra.mxu0 %v2153
    %2239 = vmatpush.msra.mxu0 %v2150
    %2240 = vmatmul.f32.gmra.mxu0 %v2141
    %v2241 = vpop.f32.mrf.mxu0
    %v2242 = vadd.f32 %v2199, %v2241
    %2243 = vdwg.mxu0
    %2244 = vmatpush.msra.mxu0 %v2196
    %2245 = vmatpush.msra.mxu0 %v2193
    %2246 = vmatpush.msra.mxu0 %v2190
    %2247 = vmatpush.msra.mxu0 %v2187
    %2248 = vmatpush.msra.mxu0 %v2184
    %2249 = vmatpush.msra.mxu0 %v2181
    %2250 = vmatpush.msra.mxu0 %v2178
    %2251 = vmatpush.msra.mxu0 %v2175
    %2252 = vmatpush.msra.mxu0 %v2172
    %2253 = vmatpush.msra.mxu0 %v2169
    %2254 = vmatpush.msra.mxu0 %v2166
    %2255 = vmatpush.msra.mxu0 %v2163
    %2256 = vmatpush.msra.mxu0 %v2160
    %2257 = vmatpush.msra.mxu0 %v2157
    %2258 = vmatpush.msra.mxu0 %v2154
    %2259 = vmatpush.msra.mxu0 %v2151
    %2260 = vmatmul.f32.gmra.mxu0 %v2141
    %v2261 = vpop.f32.mrf.mxu0
    %v2262 = vadd.f32 %v2200, %v2261
    %2263 = vdwg.mxu0
    %v2264 = vld [vmem:[#allocation10] sm:$0xff]
    %v2265 = vld [vmem:[#allocation10 + $0x8] sm:$0xff]
    %v2266 = vld [vmem:[#allocation10 + $0x10] sm:$0xff]
    %v2267 = vld [vmem:[#allocation10 + $0x18] sm:$0xff]
    %v2268 = vld [vmem:[#allocation10 + $0x20] sm:$0xff]
    %v2269 = vld [vmem:[#allocation10 + $0x28] sm:$0xff]
    %v2270 = vld [vmem:[#allocation10 + $0x30] sm:$0xff]
    %v2271 = vld [vmem:[#allocation10 + $0x38] sm:$0xff]
    %v2272 = vld [vmem:[#allocation10 + $0x40] sm:$0xff]
    %v2273 = vld [vmem:[#allocation10 + $0x48] sm:$0xff]
    %v2274 = vld [vmem:[#allocation10 + $0x50] sm:$0xff]
    %v2275 = vld [vmem:[#allocation10 + $0x58] sm:$0xff]
    %v2276 = vld [vmem:[#allocation10 + $0x60] sm:$0xff]
    %v2277 = vld [vmem:[#allocation10 + $0x68] sm:$0xff]
    %v2278 = vld [vmem:[#allocation10 + $0x70] sm:$0xff]
    %v2279 = vld [vmem:[#allocation10 + $0x78] sm:$0xff]
    %v2280 = vld [vmem:[#allocation10 + $0x80] sm:$0xff]
    %v2281 = vld [vmem:[#allocation10 + $0x88] sm:$0xff]
    %v2282 = vld [vmem:[#allocation10 + $0x90] sm:$0xff]
    %v2283 = vld [vmem:[#allocation10 + $0x98] sm:$0xff]
    %v2284 = vld [vmem:[#allocation10 + $0xa0] sm:$0xff]
    %v2285 = vld [vmem:[#allocation10 + $0xa8] sm:$0xff]
    %v2286 = vld [vmem:[#allocation10 + $0xb0] sm:$0xff]
    %v2287 = vld [vmem:[#allocation10 + $0xb8] sm:$0xff]
    %v2288 = vld [vmem:[#allocation10 + $0xc0] sm:$0xff]
    %v2289 = vld [vmem:[#allocation10 + $0xc8] sm:$0xff]
    %v2290 = vld [vmem:[#allocation10 + $0xd0] sm:$0xff]
    %v2291 = vld [vmem:[#allocation10 + $0xd8] sm:$0xff]
    %v2292 = vld [vmem:[#allocation10 + $0xe0] sm:$0xff]
    %v2293 = vld [vmem:[#allocation10 + $0xe8] sm:$0xff]
    %v2294 = vld [vmem:[#allocation10 + $0xf0] sm:$0xff]
    %v2295 = vld [vmem:[#allocation10 + $0xf8] sm:$0xff]
    %v2296 = vld [vmem:[#allocation10 + $0x100] sm:$0xff]
    %v2297 = vld [vmem:[#allocation10 + $0x108] sm:$0xff]
    %v2298 = vld [vmem:[#allocation10 + $0x110] sm:$0xff]
    %v2299 = vld [vmem:[#allocation10 + $0x118] sm:$0xff]
    %v2300 = vld [vmem:[#allocation10 + $0x120] sm:$0xff]
    %v2301 = vld [vmem:[#allocation10 + $0x128] sm:$0xff]
    %v2302 = vld [vmem:[#allocation10 + $0x130] sm:$0xff]
    %v2303 = vld [vmem:[#allocation10 + $0x138] sm:$0xff]
    %v2304 = vld [vmem:[#allocation10 + $0x140] sm:$0xff]
    %v2305 = vld [vmem:[#allocation10 + $0x148] sm:$0xff]
    %v2306 = vld [vmem:[#allocation10 + $0x150] sm:$0xff]
    %v2307 = vld [vmem:[#allocation10 + $0x158] sm:$0xff]
    %v2308 = vld [vmem:[#allocation10 + $0x160] sm:$0xff]
    %v2309 = vld [vmem:[#allocation10 + $0x168] sm:$0xff]
    %v2310 = vld [vmem:[#allocation10 + $0x170] sm:$0xff]
    %v2311 = vld [vmem:[#allocation10 + $0x178] sm:$0xff]
    %v2312 = vld [vmem:[%s4] sm:$0x7]
    %v2314 = vperm.slane %v2312, 0
    %v2315 = vperm.slane %v2312, 1
    %v2316 = vperm.slane %v2312, 2
    %2320 = vmatpush.msra.mxu0 %v2309
    %2321 = vmatpush.msra.mxu0 %v2306
    %2322 = vmatpush.msra.mxu0 %v2303
    %2323 = vmatpush.msra.mxu0 %v2300
    %2324 = vmatpush.msra.mxu0 %v2297
    %2325 = vmatpush.msra.mxu0 %v2294
    %2326 = vmatpush.msra.mxu0 %v2291
    %2327 = vmatpush.msra.mxu0 %v2288
    %2328 = vmatpush.msra.mxu0 %v2285
    %2329 = vmatpush.msra.mxu0 %v2282
    %2330 = vmatpush.msra.mxu0 %v2279
    %2331 = vmatpush.msra.mxu0 %v2276
    %2332 = vmatpush.msra.mxu0 %v2273
    %2333 = vmatpush.msra.mxu0 %v2270
    %2334 = vmatpush.msra.mxu0 %v2267
    %2335 = vmatpush.msra.mxu0 %v2264
    %2336 = vmatmul.f32.gmra.mxu0 %v2061
    %v2337 = vpop.f32.mrf.mxu0
    %v2338 = vadd.f32 %v2314, %v2337
    %2339 = vdwg.mxu0
    %2340 = vmatpush.msra.mxu0 %v2310
    %2341 = vmatpush.msra.mxu0 %v2307
    %2342 = vmatpush.msra.mxu0 %v2304
    %2343 = vmatpush.msra.mxu0 %v2301
    %2344 = vmatpush.msra.mxu0 %v2298
    %2345 = vmatpush.msra.mxu0 %v2295
    %2346 = vmatpush.msra.mxu0 %v2292
    %2347 = vmatpush.msra.mxu0 %v2289
    %2348 = vmatpush.msra.mxu0 %v2286
    %2349 = vmatpush.msra.mxu0 %v2283
    %2350 = vmatpush.msra.mxu0 %v2280
    %2351 = vmatpush.msra.mxu0 %v2277
    %2352 = vmatpush.msra.mxu0 %v2274
    %2353 = vmatpush.msra.mxu0 %v2271
    %2354 = vmatpush.msra.mxu0 %v2268
    %2355 = vmatpush.msra.mxu0 %v2265
    %2356 = vmatmul.f32.gmra.mxu0 %v2061
    %v2357 = vpop.f32.mrf.mxu0
    %v2358 = vadd.f32 %v2315, %v2357
    %2359 = vdwg.mxu0
    %2360 = vmatpush.msra.mxu0 %v2311
    %2361 = vmatpush.msra.mxu0 %v2308
    %2362 = vmatpush.msra.mxu0 %v2305
    %2363 = vmatpush.msra.mxu0 %v2302
    %2364 = vmatpush.msra.mxu0 %v2299
    %2365 = vmatpush.msra.mxu0 %v2296
    %2366 = vmatpush.msra.mxu0 %v2293
    %2367 = vmatpush.msra.mxu0 %v2290
    %2368 = vmatpush.msra.mxu0 %v2287
    %2369 = vmatpush.msra.mxu0 %v2284
    %2370 = vmatpush.msra.mxu0 %v2281
    %2371 = vmatpush.msra.mxu0 %v2278
    %2372 = vmatpush.msra.mxu0 %v2275
    %2373 = vmatpush.msra.mxu0 %v2272
    %2374 = vmatpush.msra.mxu0 %v2269
    %2375 = vmatpush.msra.mxu0 %v2266
    %2376 = vmatmul.f32.gmra.mxu0 %v2061
    %v2377 = vpop.f32.mrf.mxu0
    %v2378 = vadd.f32 %v2316, %v2377
    %2379 = vdwg.mxu0
    %v2380 = vadd.f32 %v2222, %v2338
    %v2381 = vmul.f32 %v2380, 0.5
    %v2382 = vtanh.pop %v2381
    %v2383 = vadd.f32 %v2382, 1.0
    %v2384 = vmul.f32 %v2383, 0.5
    %v2385 = vadd.f32 %v2242, %v2358
    %v2386 = vmul.f32 %v2385, 0.5
    %v2387 = vtanh.pop %v2386
    %v2388 = vadd.f32 %v2387, 1.0
    %v2389 = vmul.f32 %v2388, 0.5
    %v2390 = vmul.f32 %v2384, %v2378
    %v2391 = vadd.f32 %v2262, %v2390
    %v2392 = vtanh.pop %v2391
    %v2393 = vsub.f32 1.0, %v2389
    %v2394 = vmul.f32 %v2393, %v2392
    %v2395 = vmul.f32 %v2389, %v2061
    %v2396 = vadd.f32 %v2394, %v2395
    %v2397 = vld [vmem:[#allocation12] sm:$0xff]
    %v2398 = vld [vmem:[#allocation12 + $0x8] sm:$0xff]
    %v2399 = vld [vmem:[#allocation12 + $0x10] sm:$0xff]
    %v2400 = vld [vmem:[#allocation12 + $0x18] sm:$0xff]
    %v2401 = vld [vmem:[#allocation12 + $0x20] sm:$0xff]
    %v2402 = vld [vmem:[#allocation12 + $0x28] sm:$0xff]
    %v2403 = vld [vmem:[#allocation12 + $0x30] sm:$0xff]
    %v2404 = vld [vmem:[#allocation12 + $0x38] sm:$0xff]
    %v2405 = vld [vmem:[#allocation12 + $0x40] sm:$0xff]
    %v2406 = vld [vmem:[#allocation12 + $0x48] sm:$0xff]
    %v2407 = vld [vmem:[#allocation12 + $0x50] sm:$0xff]
    %v2408 = vld [vmem:[#allocation12 + $0x58] sm:$0xff]
    %v2409 = vld [vmem:[#allocation12 + $0x60] sm:$0xff]
    %v2410 = vld [vmem:[#allocation12 + $0x68] sm:$0xff]
    %v2411 = vld [vmem:[#allocation12 + $0x70] sm:$0xff]
    %v2412 = vld [vmem:[#allocation12 + $0x78] sm:$0xff]
    %v2413 = vld [vmem:[%s6] sm:$0x1]
    %v2415 = vperm.slane %v2413, 0
    %2417 = vmatpush.msra.mxu0 %v2412
    %2418 = vmatpush.msra.mxu0 %v2411
    %2419 = vmatpush.msra.mxu0 %v2410
    %2420 = vmatpush.msra.mxu0 %v2409
    %2421 = vmatpush.msra.mxu0 %v2408
    %2422 = vmatpush.msra.mxu0 %v2407
    %2423 = vmatpush.msra.mxu0 %v2406
    %2424 = vmatpush.msra.mxu0 %v2405
    %2425 = vmatpush.msra.mxu0 %v2404
    %2426 = vmatpush.msra.mxu0 %v2403
    %2427 = vmatpush.msra.mxu0 %v2402
    %2428 = vmatpush.msra.mxu0 %v2401
    %2429 = vmatpush.msra.mxu0 %v2400
    %2430 = vmatpush.msra.mxu0 %v2399
    %2431 = vmatpush.msra.mxu0 %v2398
    %2432 = vmatpush.msra.mxu0 %v2397
    %2433 = vmatmul.f32.gmra.mxu0 %v2396
    %v2434 = vpop.f32.mrf.mxu0
    %v2435 = vadd.f32 %v2415, %v2434
    %2436 = vdwg.mxu0
    %v2437 = vtanh.pop %v2435
    %v2438 = vld [vmem:[#allocation13] sm:$0xff]
    %v2439 = vld [vmem:[#allocation13 + $0x8] sm:$0xff]
    %v2440 = vld [vmem:[#allocation13 + $0x10] sm:$0xff]
    %v2441 = vld [vmem:[#allocation13 + $0x18] sm:$0xff]
    %v2442 = vld [vmem:[#allocation13 + $0x20] sm:$0xff]
    %v2443 = vld [vmem:[#allocation13 + $0x28] sm:$0xff]
    %v2444 = vld [vmem:[#allocation13 + $0x30] sm:$0xff]
    %v2445 = vld [vmem:[#allocation13 + $0x38] sm:$0xff]
    %v2446 = vld [vmem:[#allocation13 + $0x40] sm:$0xff]
    %v2447 = vld [vmem:[#allocation13 + $0x48] sm:$0xff]
    %v2448 = vld [vmem:[#allocation13 + $0x50] sm:$0xff]
    %v2449 = vld [vmem:[#allocation13 + $0x58] sm:$0xff]
    %v2450 = vld [vmem:[#allocation13 + $0x60] sm:$0xff]
    %v2451 = vld [vmem:[#allocation13 + $0x68] sm:$0xff]
    %v2452 = vld [vmem:[#allocation13 + $0x70] sm:$0xff]
    %v2453 = vld [vmem:[#allocation13 + $0x78] sm:$0xff]
    %v2454 = vld [vmem:[%s8] sm:$0x1]
    %v2456 = vperm.slane %v2454, 0
    %2458 = vmatpush.msra.mxu0 %v2453
    %2459 = vmatpush.msra.mxu0 %v2452
    %2460 = vmatpush.msra.mxu0 %v2451
    %2461 = vmatpush.msra.mxu0 %v2450
    %2462 = vmatpush.msra.mxu0 %v2449
    %2463 = vmatpush.msra.mxu0 %v2448
    %2464 = vmatpush.msra.mxu0 %v2447
    %2465 = vmatpush.msra.mxu0 %v2446
    %2466 = vmatpush.msra.mxu0 %v2445
    %2467 = vmatpush.msra.mxu0 %v2444
    %2468 = vmatpush.msra.mxu0 %v2443
    %2469 = vmatpush.msra.mxu0 %v2442
    %2470 = vmatpush.msra.mxu0 %v2441
    %2471 = vmatpush.msra.mxu0 %v2440
    %2472 = vmatpush.msra.mxu0 %v2439
    %2473 = vmatpush.msra.mxu0 %v2438
    %2474 = vmatmul.f32.gmra.mxu0 %v2437
    %v2475 = vpop.f32.mrf.mxu0
    %v2476 = vadd.f32 %v2456, %v2475
    %2477 = vdwg.mxu0
    %s2478 = scalar_lea.vmem [#allocation15], 48
    %2479 = vst [vmem:[%s2478] sm:$0xff] %v2396
    %s2480 = scalar_lea.vmem [#allocation16], 48
    %2481 = vst [vmem:[%s2480] sm:$0xff] %v2476
    %s2482 = scalar_lea.vmem [#allocation7], 7
    %v2483 = vld [vmem:[%s2482] ss:$8 sm:$0x7]
    %v2484 = vld [vmem:[#allocation9] sm:$0xff]
    %v2485 = vld [vmem:[#allocation9 + $0x8] sm:$0xff]
    %v2486 = vld [vmem:[#allocation9 + $0x10] sm:$0xff]
    %v2487 = vld [vmem:[#allocation9 + $0x18] sm:$0xff]
    %v2488 = vld [vmem:[#allocation9 + $0x20] sm:$0xff]
    %v2489 = vld [vmem:[#allocation9 + $0x28] sm:$0xff]
    %v2490 = vld [vmem:[#allocation9 + $0x30] sm:$0xff]
    %v2491 = vld [vmem:[#allocation9 + $0x38] sm:$0xff]
    %v2492 = vld [vmem:[#allocation9 + $0x40] sm:$0xff]
    %v2493 = vld [vmem:[#allocation9 + $0x48] sm:$0xff]
    %v2494 = vld [vmem:[#allocation9 + $0x50] sm:$0xff]
    %v2495 = vld [vmem:[#allocation9 + $0x58] sm:$0xff]
    %v2496 = vld [vmem:[#allocation9 + $0x60] sm:$0xff]
    %v2497 = vld [vmem:[#allocation9 + $0x68] sm:$0xff]
    %v2498 = vld [vmem:[#allocation9 + $0x70] sm:$0xff]
    %v2499 = vld [vmem:[#allocation9 + $0x78] sm:$0xff]
    %v2500 = vld [vmem:[#allocation9 + $0x80] sm:$0xff]
    %v2501 = vld [vmem:[#allocation9 + $0x88] sm:$0xff]
    %v2502 = vld [vmem:[#allocation9 + $0x90] sm:$0xff]
    %v2503 = vld [vmem:[#allocation9 + $0x98] sm:$0xff]
    %v2504 = vld [vmem:[#allocation9 + $0xa0] sm:$0xff]
    %v2505 = vld [vmem:[#allocation9 + $0xa8] sm:$0xff]
    %v2506 = vld [vmem:[#allocation9 + $0xb0] sm:$0xff]
    %v2507 = vld [vmem:[#allocation9 + $0xb8] sm:$0xff]
    %v2508 = vld [vmem:[#allocation9 + $0xc0] sm:$0xff]
    %v2509 = vld [vmem:[#allocation9 + $0xc8] sm:$0xff]
    %v2510 = vld [vmem:[#allocation9 + $0xd0] sm:$0xff]
    %v2511 = vld [vmem:[#allocation9 + $0xd8] sm:$0xff]
    %v2512 = vld [vmem:[#allocation9 + $0xe0] sm:$0xff]
    %v2513 = vld [vmem:[#allocation9 + $0xe8] sm:$0xff]
    %v2514 = vld [vmem:[#allocation9 + $0xf0] sm:$0xff]
    %v2515 = vld [vmem:[#allocation9 + $0xf8] sm:$0xff]
    %v2516 = vld [vmem:[#allocation9 + $0x100] sm:$0xff]
    %v2517 = vld [vmem:[#allocation9 + $0x108] sm:$0xff]
    %v2518 = vld [vmem:[#allocation9 + $0x110] sm:$0xff]
    %v2519 = vld [vmem:[#allocation9 + $0x118] sm:$0xff]
    %v2520 = vld [vmem:[#allocation9 + $0x120] sm:$0xff]
    %v2521 = vld [vmem:[#allocation9 + $0x128] sm:$0xff]
    %v2522 = vld [vmem:[#allocation9 + $0x130] sm:$0xff]
    %v2523 = vld [vmem:[#allocation9 + $0x138] sm:$0xff]
    %v2524 = vld [vmem:[#allocation9 + $0x140] sm:$0xff]
    %v2525 = vld [vmem:[#allocation9 + $0x148] sm:$0xff]
    %v2526 = vld [vmem:[#allocation9 + $0x150] sm:$0xff]
    %v2527 = vld [vmem:[#allocation9 + $0x158] sm:$0xff]
    %v2528 = vld [vmem:[#allocation9 + $0x160] sm:$0xff]
    %v2529 = vld [vmem:[#allocation9 + $0x168] sm:$0xff]
    %v2530 = vld [vmem:[#allocation9 + $0x170] sm:$0xff]
    %v2531 = vld [vmem:[#allocation9 + $0x178] sm:$0xff]
    %v2533 = vperm.slane %v2483, 0
    %v2534 = vperm.slane %v2483, 1
    %v2535 = vperm.slane %v2483, 2
    %2539 = vmatpush.msra.mxu0 %v2529
    %2540 = vmatpush.msra.mxu0 %v2526
    %2541 = vmatpush.msra.mxu0 %v2523
    %2542 = vmatpush.msra.mxu0 %v2520
    %2543 = vmatpush.msra.mxu0 %v2517
    %2544 = vmatpush.msra.mxu0 %v2514
    %2545 = vmatpush.msra.mxu0 %v2511
    %2546 = vmatpush.msra.mxu0 %v2508
    %2547 = vmatpush.msra.mxu0 %v2505
    %2548 = vmatpush.msra.mxu0 %v2502
    %2549 = vmatpush.msra.mxu0 %v2499
    %2550 = vmatpush.msra.mxu0 %v2496
    %2551 = vmatpush.msra.mxu0 %v2493
    %2552 = vmatpush.msra.mxu0 %v2490
    %2553 = vmatpush.msra.mxu0 %v2487
    %2554 = vmatpush.msra.mxu0 %v2484
    %2555 = vmatmul.f32.gmra.mxu0 %v2476
    %v2556 = vpop.f32.mrf.mxu0
    %v2557 = vadd.f32 %v2533, %v2556
    %2558 = vdwg.mxu0
    %2559 = vmatpush.msra.mxu0 %v2530
    %2560 = vmatpush.msra.mxu0 %v2527
    %2561 = vmatpush.msra.mxu0 %v2524
    %2562 = vmatpush.msra.mxu0 %v2521
    %2563 = vmatpush.msra.mxu0 %v2518
    %2564 = vmatpush.msra.mxu0 %v2515
    %2565 = vmatpush.msra.mxu0 %v2512
    %2566 = vmatpush.msra.mxu0 %v2509
    %2567 = vmatpush.msra.mxu0 %v2506
    %2568 = vmatpush.msra.mxu0 %v2503
    %2569 = vmatpush.msra.mxu0 %v2500
    %2570 = vmatpush.msra.mxu0 %v2497
    %2571 = vmatpush.msra.mxu0 %v2494
    %2572 = vmatpush.msra.mxu0 %v2491
    %2573 = vmatpush.msra.mxu0 %v2488
    %2574 = vmatpush.msra.mxu0 %v2485
    %2575 = vmatmul.f32.gmra.mxu0 %v2476
    %v2576 = vpop.f32.mrf.mxu0
    %v2577 = vadd.f32 %v2534, %v2576
    %2578 = vdwg.mxu0
    %2579 = vmatpush.msra.mxu0 %v2531
    %2580 = vmatpush.msra.mxu0 %v2528
    %2581 = vmatpush.msra.mxu0 %v2525
    %2582 = vmatpush.msra.mxu0 %v2522
    %2583 = vmatpush.msra.mxu0 %v2519
    %2584 = vmatpush.msra.mxu0 %v2516
    %2585 = vmatpush.msra.mxu0 %v2513
    %2586 = vmatpush.msra.mxu0 %v2510
    %2587 = vmatpush.msra.mxu0 %v2507
    %2588 = vmatpush.msra.mxu0 %v2504
    %2589 = vmatpush.msra.mxu0 %v2501
    %2590 = vmatpush.msra.mxu0 %v2498
    %2591 = vmatpush.msra.mxu0 %v2495
    %2592 = vmatpush.msra.mxu0 %v2492
    %2593 = vmatpush.msra.mxu0 %v2489
    %2594 = vmatpush.msra.mxu0 %v2486
    %2595 = vmatmul.f32.gmra.mxu0 %v2476
    %v2596 = vpop.f32.mrf.mxu0
    %v2597 = vadd.f32 %v2535, %v2596
    %2598 = vdwg.mxu0
    %v2599 = vld [vmem:[#allocation10] sm:$0xff]
    %v2600 = vld [vmem:[#allocation10 + $0x8] sm:$0xff]
    %v2601 = vld [vmem:[#allocation10 + $0x10] sm:$0xff]
    %v2602 = vld [vmem:[#allocation10 + $0x18] sm:$0xff]
    %v2603 = vld [vmem:[#allocation10 + $0x20] sm:$0xff]
    %v2604 = vld [vmem:[#allocation10 + $0x28] sm:$0xff]
    %v2605 = vld [vmem:[#allocation10 + $0x30] sm:$0xff]
    %v2606 = vld [vmem:[#allocation10 + $0x38] sm:$0xff]
    %v2607 = vld [vmem:[#allocation10 + $0x40] sm:$0xff]
    %v2608 = vld [vmem:[#allocation10 + $0x48] sm:$0xff]
    %v2609 = vld [vmem:[#allocation10 + $0x50] sm:$0xff]
    %v2610 = vld [vmem:[#allocation10 + $0x58] sm:$0xff]
    %v2611 = vld [vmem:[#allocation10 + $0x60] sm:$0xff]
    %v2612 = vld [vmem:[#allocation10 + $0x68] sm:$0xff]
    %v2613 = vld [vmem:[#allocation10 + $0x70] sm:$0xff]
    %v2614 = vld [vmem:[#allocation10 + $0x78] sm:$0xff]
    %v2615 = vld [vmem:[#allocation10 + $0x80] sm:$0xff]
    %v2616 = vld [vmem:[#allocation10 + $0x88] sm:$0xff]
    %v2617 = vld [vmem:[#allocation10 + $0x90] sm:$0xff]
    %v2618 = vld [vmem:[#allocation10 + $0x98] sm:$0xff]
    %v2619 = vld [vmem:[#allocation10 + $0xa0] sm:$0xff]
    %v2620 = vld [vmem:[#allocation10 + $0xa8] sm:$0xff]
    %v2621 = vld [vmem:[#allocation10 + $0xb0] sm:$0xff]
    %v2622 = vld [vmem:[#allocation10 + $0xb8] sm:$0xff]
    %v2623 = vld [vmem:[#allocation10 + $0xc0] sm:$0xff]
    %v2624 = vld [vmem:[#allocation10 + $0xc8] sm:$0xff]
    %v2625 = vld [vmem:[#allocation10 + $0xd0] sm:$0xff]
    %v2626 = vld [vmem:[#allocation10 + $0xd8] sm:$0xff]
    %v2627 = vld [vmem:[#allocation10 + $0xe0] sm:$0xff]
    %v2628 = vld [vmem:[#allocation10 + $0xe8] sm:$0xff]
    %v2629 = vld [vmem:[#allocation10 + $0xf0] sm:$0xff]
    %v2630 = vld [vmem:[#allocation10 + $0xf8] sm:$0xff]
    %v2631 = vld [vmem:[#allocation10 + $0x100] sm:$0xff]
    %v2632 = vld [vmem:[#allocation10 + $0x108] sm:$0xff]
    %v2633 = vld [vmem:[#allocation10 + $0x110] sm:$0xff]
    %v2634 = vld [vmem:[#allocation10 + $0x118] sm:$0xff]
    %v2635 = vld [vmem:[#allocation10 + $0x120] sm:$0xff]
    %v2636 = vld [vmem:[#allocation10 + $0x128] sm:$0xff]
    %v2637 = vld [vmem:[#allocation10 + $0x130] sm:$0xff]
    %v2638 = vld [vmem:[#allocation10 + $0x138] sm:$0xff]
    %v2639 = vld [vmem:[#allocation10 + $0x140] sm:$0xff]
    %v2640 = vld [vmem:[#allocation10 + $0x148] sm:$0xff]
    %v2641 = vld [vmem:[#allocation10 + $0x150] sm:$0xff]
    %v2642 = vld [vmem:[#allocation10 + $0x158] sm:$0xff]
    %v2643 = vld [vmem:[#allocation10 + $0x160] sm:$0xff]
    %v2644 = vld [vmem:[#allocation10 + $0x168] sm:$0xff]
    %v2645 = vld [vmem:[#allocation10 + $0x170] sm:$0xff]
    %v2646 = vld [vmem:[#allocation10 + $0x178] sm:$0xff]
    %v2647 = vld [vmem:[%s4] sm:$0x7]
    %v2649 = vperm.slane %v2647, 0
    %v2650 = vperm.slane %v2647, 1
    %v2651 = vperm.slane %v2647, 2
    %2655 = vmatpush.msra.mxu0 %v2644
    %2656 = vmatpush.msra.mxu0 %v2641
    %2657 = vmatpush.msra.mxu0 %v2638
    %2658 = vmatpush.msra.mxu0 %v2635
    %2659 = vmatpush.msra.mxu0 %v2632
    %2660 = vmatpush.msra.mxu0 %v2629
    %2661 = vmatpush.msra.mxu0 %v2626
    %2662 = vmatpush.msra.mxu0 %v2623
    %2663 = vmatpush.msra.mxu0 %v2620
    %2664 = vmatpush.msra.mxu0 %v2617
    %2665 = vmatpush.msra.mxu0 %v2614
    %2666 = vmatpush.msra.mxu0 %v2611
    %2667 = vmatpush.msra.mxu0 %v2608
    %2668 = vmatpush.msra.mxu0 %v2605
    %2669 = vmatpush.msra.mxu0 %v2602
    %2670 = vmatpush.msra.mxu0 %v2599
    %2671 = vmatmul.f32.gmra.mxu0 %v2396
    %v2672 = vpop.f32.mrf.mxu0
    %v2673 = vadd.f32 %v2649, %v2672
    %2674 = vdwg.mxu0
    %2675 = vmatpush.msra.mxu0 %v2645
    %2676 = vmatpush.msra.mxu0 %v2642
    %2677 = vmatpush.msra.mxu0 %v2639
    %2678 = vmatpush.msra.mxu0 %v2636
    %2679 = vmatpush.msra.mxu0 %v2633
    %2680 = vmatpush.msra.mxu0 %v2630
    %2681 = vmatpush.msra.mxu0 %v2627
    %2682 = vmatpush.msra.mxu0 %v2624
    %2683 = vmatpush.msra.mxu0 %v2621
    %2684 = vmatpush.msra.mxu0 %v2618
    %2685 = vmatpush.msra.mxu0 %v2615
    %2686 = vmatpush.msra.mxu0 %v2612
    %2687 = vmatpush.msra.mxu0 %v2609
    %2688 = vmatpush.msra.mxu0 %v2606
    %2689 = vmatpush.msra.mxu0 %v2603
    %2690 = vmatpush.msra.mxu0 %v2600
    %2691 = vmatmul.f32.gmra.mxu0 %v2396
    %v2692 = vpop.f32.mrf.mxu0
    %v2693 = vadd.f32 %v2650, %v2692
    %2694 = vdwg.mxu0
    %2695 = vmatpush.msra.mxu0 %v2646
    %2696 = vmatpush.msra.mxu0 %v2643
    %2697 = vmatpush.msra.mxu0 %v2640
    %2698 = vmatpush.msra.mxu0 %v2637
    %2699 = vmatpush.msra.mxu0 %v2634
    %2700 = vmatpush.msra.mxu0 %v2631
    %2701 = vmatpush.msra.mxu0 %v2628
    %2702 = vmatpush.msra.mxu0 %v2625
    %2703 = vmatpush.msra.mxu0 %v2622
    %2704 = vmatpush.msra.mxu0 %v2619
    %2705 = vmatpush.msra.mxu0 %v2616
    %2706 = vmatpush.msra.mxu0 %v2613
    %2707 = vmatpush.msra.mxu0 %v2610
    %2708 = vmatpush.msra.mxu0 %v2607
    %2709 = vmatpush.msra.mxu0 %v2604
    %2710 = vmatpush.msra.mxu0 %v2601
    %2711 = vmatmul.f32.gmra.mxu0 %v2396
    %v2712 = vpop.f32.mrf.mxu0
    %v2713 = vadd.f32 %v2651, %v2712
    %2714 = vdwg.mxu0
    %v2715 = vadd.f32 %v2557, %v2673
    %v2716 = vmul.f32 %v2715, 0.5
    %v2717 = vtanh.pop %v2716
    %v2718 = vadd.f32 %v2717, 1.0
    %v2719 = vmul.f32 %v2718, 0.5
    %v2720 = vadd.f32 %v2577, %v2693
    %v2721 = vmul.f32 %v2720, 0.5
    %v2722 = vtanh.pop %v2721
    %v2723 = vadd.f32 %v2722, 1.0
    %v2724 = vmul.f32 %v2723, 0.5
    %v2725 = vmul.f32 %v2719, %v2713
    %v2726 = vadd.f32 %v2597, %v2725
    %v2727 = vtanh.pop %v2726
    %v2728 = vsub.f32 1.0, %v2724
    %v2729 = vmul.f32 %v2728, %v2727
    %v2730 = vmul.f32 %v2724, %v2396
    %v2731 = vadd.f32 %v2729, %v2730
    %v2732 = vld [vmem:[#allocation12] sm:$0xff]
    %v2733 = vld [vmem:[#allocation12 + $0x8] sm:$0xff]
    %v2734 = vld [vmem:[#allocation12 + $0x10] sm:$0xff]
    %v2735 = vld [vmem:[#allocation12 + $0x18] sm:$0xff]
    %v2736 = vld [vmem:[#allocation12 + $0x20] sm:$0xff]
    %v2737 = vld [vmem:[#allocation12 + $0x28] sm:$0xff]
    %v2738 = vld [vmem:[#allocation12 + $0x30] sm:$0xff]
    %v2739 = vld [vmem:[#allocation12 + $0x38] sm:$0xff]
    %v2740 = vld [vmem:[#allocation12 + $0x40] sm:$0xff]
    %v2741 = vld [vmem:[#allocation12 + $0x48] sm:$0xff]
    %v2742 = vld [vmem:[#allocation12 + $0x50] sm:$0xff]
    %v2743 = vld [vmem:[#allocation12 + $0x58] sm:$0xff]
    %v2744 = vld [vmem:[#allocation12 + $0x60] sm:$0xff]
    %v2745 = vld [vmem:[#allocation12 + $0x68] sm:$0xff]
    %v2746 = vld [vmem:[#allocation12 + $0x70] sm:$0xff]
    %v2747 = vld [vmem:[#allocation12 + $0x78] sm:$0xff]
    %v2748 = vld [vmem:[%s6] sm:$0x1]
    %v2750 = vperm.slane %v2748, 0
    %2752 = vmatpush.msra.mxu0 %v2747
    %2753 = vmatpush.msra.mxu0 %v2746
    %2754 = vmatpush.msra.mxu0 %v2745
    %2755 = vmatpush.msra.mxu0 %v2744
    %2756 = vmatpush.msra.mxu0 %v2743
    %2757 = vmatpush.msra.mxu0 %v2742
    %2758 = vmatpush.msra.mxu0 %v2741
    %2759 = vmatpush.msra.mxu0 %v2740
    %2760 = vmatpush.msra.mxu0 %v2739
    %2761 = vmatpush.msra.mxu0 %v2738
    %2762 = vmatpush.msra.mxu0 %v2737
    %2763 = vmatpush.msra.mxu0 %v2736
    %2764 = vmatpush.msra.mxu0 %v2735
    %2765 = vmatpush.msra.mxu0 %v2734
    %2766 = vmatpush.msra.mxu0 %v2733
    %2767 = vmatpush.msra.mxu0 %v2732
    %2768 = vmatmul.f32.gmra.mxu0 %v2731
    %v2769 = vpop.f32.mrf.mxu0
    %v2770 = vadd.f32 %v2750, %v2769
    %2771 = vdwg.mxu0
    %v2772 = vtanh.pop %v2770
    %v2773 = vld [vmem:[#allocation13] sm:$0xff]
    %v2774 = vld [vmem:[#allocation13 + $0x8] sm:$0xff]
    %v2775 = vld [vmem:[#allocation13 + $0x10] sm:$0xff]
    %v2776 = vld [vmem:[#allocation13 + $0x18] sm:$0xff]
    %v2777 = vld [vmem:[#allocation13 + $0x20] sm:$0xff]
    %v2778 = vld [vmem:[#allocation13 + $0x28] sm:$0xff]
    %v2779 = vld [vmem:[#allocation13 + $0x30] sm:$0xff]
    %v2780 = vld [vmem:[#allocation13 + $0x38] sm:$0xff]
    %v2781 = vld [vmem:[#allocation13 + $0x40] sm:$0xff]
    %v2782 = vld [vmem:[#allocation13 + $0x48] sm:$0xff]
    %v2783 = vld [vmem:[#allocation13 + $0x50] sm:$0xff]
    %v2784 = vld [vmem:[#allocation13 + $0x58] sm:$0xff]
    %v2785 = vld [vmem:[#allocation13 + $0x60] sm:$0xff]
    %v2786 = vld [vmem:[#allocation13 + $0x68] sm:$0xff]
    %v2787 = vld [vmem:[#allocation13 + $0x70] sm:$0xff]
    %v2788 = vld [vmem:[#allocation13 + $0x78] sm:$0xff]
    %v2789 = vld [vmem:[%s8] sm:$0x1]
    %v2791 = vperm.slane %v2789, 0
    %2793 = vmatpush.msra.mxu0 %v2788
    %2794 = vmatpush.msra.mxu0 %v2787
    %2795 = vmatpush.msra.mxu0 %v2786
    %2796 = vmatpush.msra.mxu0 %v2785
    %2797 = vmatpush.msra.mxu0 %v2784
    %2798 = vmatpush.msra.mxu0 %v2783
    %2799 = vmatpush.msra.mxu0 %v2782
    %2800 = vmatpush.msra.mxu0 %v2781
    %2801 = vmatpush.msra.mxu0 %v2780
    %2802 = vmatpush.msra.mxu0 %v2779
    %2803 = vmatpush.msra.mxu0 %v2778
    %2804 = vmatpush.msra.mxu0 %v2777
    %2805 = vmatpush.msra.mxu0 %v2776
    %2806 = vmatpush.msra.mxu0 %v2775
    %2807 = vmatpush.msra.mxu0 %v2774
    %2808 = vmatpush.msra.mxu0 %v2773
    %2809 = vmatmul.f32.gmra.mxu0 %v2772
    %v2810 = vpop.f32.mrf.mxu0
    %v2811 = vadd.f32 %v2791, %v2810
    %2812 = vdwg.mxu0
    %s2813 = scalar_lea.vmem [#allocation15], 56
    %2814 = vst [vmem:[%s2813] sm:$0xff] %v2731
    %s2815 = scalar_lea.vmem [#allocation16], 56
    %2816 = vst [vmem:[%s2815] sm:$0xff] %v2811
    %2817 = vst [vmem:[#allocation2] sm:$0xff] %v2731
    %2818 = vst [vmem:[#allocation3] sm:$0xff] %v2811
    // Predicated region
    $region66: #{tpu_custom_call.1} parent=1 // pred_check
      _
    $region67: #{tpu_custom_call.1} parent=1 // pred_check_branch
      %2820 = sbr.rel (0) target = $region69
    $region68: #{tpu_custom_call.1} parent=1 // pred_region
      %2822 = vsyncadd [#allocation6], 0
      %s2823 = sshll.u32 [#allocation15], 4
      %s2824 = int_to_ptr.vmem [resolvable:$true] %s2823
      %s2825 = sshll.u32 %s9, 4
      %s2826 = int_to_ptr.hbm [resolvable:$true] %s2825
      %2831 = dma.vmem_to_hbm [thread:$0]  %s2824, 1024, %s2826, [#allocation6], 128, 128, 8
    $region69: #{tpu_custom_call.1} parent=1 // pred_fallthru
      _
    // Predicated region
    $region70: #{tpu_custom_call.1} parent=1 // pred_check
      _
    $region71: #{tpu_custom_call.1} parent=1 // pred_check_branch
      %2833 = sbr.rel (0) target = $region73
    $region72: #{tpu_custom_call.1} parent=1 // pred_region
      %2835 = vsyncadd [#allocation17], 0
      %s2836 = sshll.u32 [#allocation16], 4
      %s2837 = int_to_ptr.vmem [resolvable:$true] %s2836
      %s2838 = sshll.u32 %s10, 4
      %s2839 = int_to_ptr.hbm [resolvable:$true] %s2838
      %2844 = dma.vmem_to_hbm [thread:$0]  %s2837, 1024, %s2839, [#allocation17], 128, 128, 8
    $region73: #{tpu_custom_call.1} parent=1 // pred_fallthru
      _
    // Predicated region
    $region74: #{tpu_custom_call.1} parent=1 // pred_check
      _
    $region75: #{tpu_custom_call.1} parent=1 // pred_check_branch
      %2846 = sbr.rel (0) target = $region77
    $region76: #{tpu_custom_call.1} parent=1 // pred_region
      %2848 = dma.done [#allocation6], 1024
    $region77: #{tpu_custom_call.1} parent=1 // pred_fallthru
      _
    // Predicated region
    $region78: #{tpu_custom_call.1} parent=1 // pred_check
      _
    $region79: #{tpu_custom_call.1} parent=1 // pred_check_branch
      %2850 = sbr.rel (0) target = $region81
    $region80: #{tpu_custom_call.1} parent=1 // pred_region
      %2852 = dma.done [#allocation17], 1024
    $region81: #{tpu_custom_call.1} parent=1 // pred_fallthru
      _
    %2853 = vsyncpa [#allocation5], 1
    %2854 = vsyncpa [#allocation8], 1
    %2855 = vsyncpa [#allocation11], 1
    %2856 = vsyncpa [#allocation14], 1
    %2857 = vsyncpa [#allocation6], 1
    %2858 = vsyncpa [#allocation17], 1

</llo_original>
